<compile_context>
chip_gen: v7x
topology: tpu7x:2x2x1
jax: 0.10.0
libtpu: 0.0.40
codegen_flags: <defaults>
</compile_context>

<pallas_src>
import jax
import jax.numpy as jnp
from jax.experimental import pallas as pl
from jax.experimental.pallas import tpu as pltpu

# ---------------- hyper-parameters (the `args` of the PyTorch module) --------
N_NODE   = 50      # items; embedding has N_NODE+1 rows (row 0 = padding)
EMB      = 32      # args.embSize == hidden_size == emb_size
TIME_D   = 32      # args.time_dims (must equal emb_size for HyperGAT's t_i matmul)
SEQ_LEN  = 8       # args.seq_len
N_UNIQ   = 8       # unique items per session
BATCH    = 4       # args.batchSize (== number of sessions inside HyperGAT)
INTENT   = 3       # args.intent_num
BETA     = 0.01    # args.beta
NEG_INF  = -9.0e15
SLOPE    = 0.2     # LeakyReLU negative slope
K_LOCAL  = 5       # LocalAggregator heads a_0..a_4
K_SESS   = 13      # SessionHCov heads a_n / t_n
SESS_PAD = 8       # pad session-graph side to a full sublane group
LANE_PAD = 128     # lane-dense score output width

assert TIME_D == EMB, "HyperGAT contracts (.., TIME_D) against (EMB,) vectors"
# TODO(synk): nn.Dropout(args.dropout) is treated as identity (p=0 / eval mode).


def _leaky_relu(x):
    return jnp.where(x > 0, x, SLOPE * x)


def _row_softmax(alpha):
    m = jnp.max(alpha, axis=-1, keepdims=True)
    p = jnp.exp(alpha - m)
    return p / jnp.sum(p, axis=-1, keepdims=True)


# =========================== the single fused kernel =========================
def _enhsg_fused_kernel(
    # LocalAggregator (Type_agg)
    emb_ref, adj_ref, enc_ref, agg_a_ref, agg_iw_ref,
    # alias gather + generate_session read-out
    alias_ref, psel_ref, q1t_ref, q2t_ref, w1h_ref, w2h_ref, w3_ref,
    mask_ref, sw_ref,
    # SessionHCov.HyperGAT (padded to SESS_PAD sessions)
    hs_ref, ovl_ref, tdenc_ref, hg_a_ref, hg_t_ref,
    # score weights (lane-padded)
    bpad_ref,
    # outputs
    td_ref, lg_ref, score_ref,
):
    f32 = jnp.float32

    # ---- LocalAggregator: all B sessions and all 5 heads in one MXU pass ----
    h = emb_ref[...]                                   # (B, Nu, D)
    adj = adj_ref[...]                                 # (B, Nu, Nu) int32
    B, Nu, D = h.shape
    A = agg_a_ref[...]                                 # (K1, D)
    IW = agg_iw_ref[...]                               # (K1, T)
    K1 = A.shape[0]
    T = IW.shape[1]

    # a_input[b,i,j,:] = h[b,i,:] * h[b,j,:]   (exactly torch's a_input)
    a_in = (h[:, :, None, :] * h[:, None, :, :]).reshape(B * Nu * Nu, D)
    e = jax.lax.dot_general(a_in, A, (((1,), (1,)), ((), ())),
                            preferred_element_type=f32)            # (B*Nu*Nu, K1)
    t = jax.lax.dot_general(enc_ref[...].reshape(B * Nu * Nu, T), IW,
                            (((1,), (1,)), ((), ())),
                            preferred_element_type=f32)            # (B*Nu*Nu, K1)
    logit = _leaky_relu(e + t).reshape(B, Nu, Nu, K1)
    head = jax.lax.broadcasted_iota(jnp.int32, (B, Nu, Nu, K1), 3) + 1
    sel = adj[:, :, :, None] == head                               # (B, Nu, Nu, K1)
    alpha = jnp.sum(jnp.where(sel, logit, 0.0), axis=-1)           # masked head select
    alpha = jnp.where((adj >= 1) & (adj <= K1), alpha, NEG_INF)
    att1 = _row_softmax(alpha)
    u_td = jax.lax.dot_general(att1, h, (((2,), (1,)), ((0,), (0,))),
                               preferred_element_type=f32)         # (B, Nu, D)

    # ---- alias_inputs gather as a one-hot batched matmul --------------------
    hidden = jax.lax.dot_general(alias_ref[...], u_td,
                                 (((2,), (1,)), ((0,), (0,))),
                                 preferred_element_type=f32)       # (B, L, D)
    L = hidden.shape[1]

    # ---- generate_session read-out, all intents vectorized ------------------
    hflat = hidden.reshape(B * L, D)                               # layout-preserving
    hw1 = jax.lax.dot_general(hflat, w1h_ref[...], (((1,), (0,)), ((), ())),
                              preferred_element_type=f32).reshape(B, L, D)
    q2 = q2t_ref[...] + jax.lax.dot_general(
        hflat, w2h_ref[...], (((1,), (0,)), ((), ())),
        preferred_element_type=f32).reshape(B, L, D)               # (B, L, H)
    psel = psel_ref[...]                                           # (B, IN, L)
    q1 = q1t_ref[...] + jax.lax.dot_general(
        psel, hw1, (((2,), (1,)), ((0,), (0,))),
        preferred_element_type=f32)                                # (B, IN, H)
    g = jax.nn.sigmoid(q1[:, :, None, :] + q2[:, None, :, :])      # (B, IN, L, H)
    a = jnp.sum(g * w3_ref[...], axis=-1)                          # (B, IN, L)
    hm = hidden * mask_ref[...][:, :, None]                        # (B, L, H)
    s = jax.lax.dot_general(a, hm, (((2,), (1,)), ((0,), (0,))),
                            preferred_element_type=f32)            # (B, IN, H)
    td = jnp.sum(sw_ref[...][None, :, :] * s, axis=1)              # (B, H)
    td_ref[...] = td

    # ---- SessionHCov.HyperGAT: 13 heads in one MXU pass ---------------------
    hs = hs_ref[...]                                               # (BP, D)
    ovl = ovl_ref[...]                                             # (BP, BP) int32
    BP = hs.shape[0]
    HA = hg_a_ref[...]                                             # (K2, D)
    HT = hg_t_ref[...]                                             # (K2, D)
    K2 = HA.shape[0]
    a2 = (hs[:, None, :] * hs[None, :, :]).reshape(BP * BP, D)
    e2 = jax.lax.dot_general(a2, HA, (((1,), (1,)), ((), ())),
                             preferred_element_type=f32)           # (BP*BP, K2)
    t2 = jax.lax.dot_general(tdenc_ref[...].reshape(BP * BP, -1), HT,
                             (((1,), (1,)), ((), ())),
                             preferred_element_type=f32)           # (BP*BP, K2)
    logit2 = _leaky_relu(e2 + t2).reshape(BP, BP, K2)
    head2 = jax.lax.broadcasted_iota(jnp.int32, (BP, BP, K2), 2) + 1
    sel2 = ovl[:, :, None] == head2
    alpha2 = jnp.sum(jnp.where(sel2, logit2, 0.0), axis=-1)
    alpha2 = jnp.where((ovl >= 1) & (ovl <= K2), alpha2, NEG_INF)
    att2 = _row_softmax(alpha2)
    lg_ref[...] = jnp.dot(att2, hs, preferred_element_type=f32)    # (BP, D)

    # ---- final score, lane-dense (item dim padded to 128) -------------------
    score_ref[...] = jnp.dot(td, bpad_ref[...], preferred_element_type=f32)


def enhsg_fused(emb, adj, enc, agg_a, agg_iw, alias_oh, pool_sel, q1_time,
                q2_time, w1h_T, w2h_T, w3, mask, sw, hs_pad, ovl_pad, td_pad,
                hg_a, hg_t, b_pad):
    B, Nu, D = emb.shape
    BP = hs_pad.shape[0]
    NPAD = b_pad.shape[1]
    args = (emb, adj, enc, agg_a, agg_iw, alias_oh, pool_sel, q1_time,
            q2_time, w1h_T, w2h_T, w3, mask, sw, hs_pad, ovl_pad, td_pad,
            hg_a, hg_t, b_pad)
    vmem = lambda: pl.BlockSpec(memory_space=pltpu.MemorySpace.VMEM)
    return pl.pallas_call(
        _enhsg_fused_kernel,
        out_shape=(jax.ShapeDtypeStruct((B, D), jnp.float32),      # TD_session
                   jax.ShapeDtypeStruct((BP, D), jnp.float32),     # session_emb_lgcn (padded)
                   jax.ShapeDtypeStruct((B, NPAD), jnp.float32)),  # score (lane-padded)
        in_specs=[vmem() for _ in range(len(args))],
        out_specs=(vmem(), vmem(), vmem()),
        cost_estimate=pl.CostEstimate(flops=600_000, transcendentals=4_000,
                                      bytes_accessed=100_000),
    )(*args)


# =============================== JAX glue ====================================
def l2_normalize(x, axis=-1, eps=1e-12):
    n = jnp.sqrt(jnp.sum(x * x, axis=axis, keepdims=True))
    return x / jnp.maximum(n, eps)


def time_encode(t, w, b):
    # TimeEncode: cos(Linear(1 -> T)(t))
    return jnp.cos(t[..., None] * w + b)


def ssl_loss(sess_hgnn, sess_lgcn, key, tau=0.07):
    # TODO(synk): torch.randperm replaced by a fixed jax.random permutation.
    h = l2_normalize(sess_hgnn, axis=1)
    l = l2_normalize(sess_lgcn, axis=1)
    pos = jnp.sum(h * l, axis=1) / tau
    k1, k2 = jax.random.split(key)
    corr = h[jax.random.permutation(k1, h.shape[0])]
    corr = corr[:, jax.random.permutation(k2, h.shape[1])]
    neg = jnp.dot(l, corr.T) / tau
    logits = jnp.concatenate([pos[:, None], neg], axis=1)
    return -jnp.mean(jax.nn.log_softmax(logits, axis=1)[:, 0])


def enhsg_forward(params, inputs, ssl_key):
    (full_items, unique_items, alias_inputs, interval_full, session_len,
     overlap_type, matrix, mask, A_item, A_interval, interval_unique,
     session_stamp) = inputs
    tw, tb = params["time_w"], params["time_b"]
    emb_table = params["embedding"]

    B, L = alias_inputs.shape
    Nu = unique_items.shape[1]
    D = emb_table.shape[1]
    T = tw.shape[0]

    # ---- embedding lookups + time encodings (cheap XLA work) ---------------
    emb = l2_normalize(emb_table[unique_items], axis=-1)            # (B, Nu, D)
    full_emb = emb_table[full_items]                                # (B, L, D)
    enc_A_interval = time_encode(A_interval, tw, tb)                # (B, Nu, Nu, T)
    time_diff = session_stamp[None, :] - session_stamp[:, None]     # (B, B)
    time_diff_enc = time_encode(time_diff, tw, tb)                  # (B, B, T)
    flipped = jnp.flip(interval_full, axis=1)
    reversed_interval = time_encode(jnp.flip(jnp.cumsum(flipped, axis=1), axis=1), tw, tb)
    interval_emb = time_encode(interval_full, tw, tb)

    # ---- generate_session precompute (linear_one / linear_two split) -------
    w1, b1 = params["w1_w"], params["w1_b"]                         # (H, T+H), (H,)
    w2, b2 = params["w2_w"], params["w2_b"]                         # (H, 2T+H), (H,)
    q2_time = (jnp.concatenate([reversed_interval, interval_emb], axis=-1)
               @ w2[:, :2 * T].T + b2)                              # (B, L, H)
    w1h_T = w1[:, T:].T                                             # (H, H)
    w2h_T = w2[:, 2 * T:].T                                         # (H, H)

    lengths = jnp.sum(mask, axis=1).astype(jnp.int32)               # (B,)
    last_idx = lengths - 1
    pos = jnp.arange(L)
    q1_rows, pool_rows = [], []
    for intent in range(1, INTENT + 1):
        start = jnp.maximum(lengths - intent, 0)
        rng = (pos[None, :] > start[:, None]) & (pos[None, :] <= lengths[:, None])
        last_int = jnp.sum(interval_full * rng.astype(interval_full.dtype), axis=-1)
        q1_rows.append(time_encode(last_int, tw, tb) @ w1[:, :T].T + b1)   # (B, H)
        lo = last_idx - (intent - 1)
        psel = (pos[None, :] >= lo[:, None]) & (pos[None, :] <= last_idx[:, None])
        pool_rows.append(psel.astype(jnp.float32) / float(intent))         # (B, L)
    q1_time = jnp.stack(q1_rows, axis=1)                            # (B, IN, H)
    pool_sel = jnp.stack(pool_rows, axis=1)                          # (B, IN, L)
    alias_oh = jax.nn.one_hot(alias_inputs, Nu, dtype=jnp.float32)   # (B, L, Nu)
    sw = jax.nn.softmax(params["multi_weight"], axis=1)[0]           # (IN, 1)

    # ---- SessionHCov precompute, padded to SESS_PAD sessions ----------------
    h_sess = jnp.sum(full_emb, axis=1) / session_len                 # (B, D)
    BP = SESS_PAD
    hs_pad = jnp.zeros((BP, D), jnp.float32).at[:B].set(h_sess)
    ovl_pad = jnp.zeros((BP, BP), jnp.int32).at[:B, :B].set(overlap_type)
    td_pad = jnp.zeros((BP, BP, T), jnp.float32).at[:B, :B].set(time_diff_enc)

    # ---- score weights, lane-padded to 128 ----------------------------------
    b_emb = l2_normalize(emb_table[1:], axis=-1)                     # dataset != 'Yoochoose64'
    n_node = b_emb.shape[0]
    n_pad = ((n_node + LANE_PAD - 1) // LANE_PAD) * LANE_PAD
    b_pad = jnp.zeros((D, n_pad), jnp.float32).at[:, :n_node].set(b_emb.T)

    # ---- single fused Pallas kernel -----------------------------------------
    td_session, lg_padded, score_padded = enhsg_fused(
        emb, A_item, enc_A_interval, params["agg_a"], params["agg_iw"],
        alias_oh, pool_sel, q1_time, q2_time, w1h_T, w2h_T,
        params["w3_w"], mask, sw,
        hs_pad, ovl_pad, td_pad, params["hg_a"], params["hg_t"], b_pad)

    session_emb_lgcn = lg_padded[:B]
    session_loss = ssl_loss(session_emb_lgcn, td_session, ssl_key)
    score = score_padded[:, :n_node]
    return session_loss * BETA, score


# ============================ params & inputs ================================
def init_params(key):
    stdv = 1.0 / (EMB ** 0.5)

    def unif(k, shape):
        return jax.random.uniform(k, shape, jnp.float32, -stdv, stdv)

    ks = jax.random.split(key, 11)
    embedding = unif(ks[0], (N_NODE + 1, EMB)).at[0].set(0.0)     # padding_idx=0
    return dict(
        embedding=embedding,
        agg_a=unif(ks[1], (K_LOCAL, EMB)),      # LocalAggregator a_0..a_4 (rows)
        agg_iw=unif(ks[2], (K_LOCAL, TIME_D)),  # interval_weight_0..4 (rows)
        hg_a=unif(ks[3], (K_SESS, EMB)),        # SessionHCov a_n (rows)
        hg_t=unif(ks[4], (K_SESS, EMB)),        # SessionHCov t_n (rows)
        w1_w=unif(ks[5], (EMB, TIME_D + EMB)),       # linear_one
        w1_b=unif(ks[6], (EMB,)),
        w2_w=unif(ks[7], (EMB, 2 * TIME_D + EMB)),   # linear_two
        w2_b=unif(ks[8], (EMB,)),
        w3_w=unif(ks[9], (1, EMB)),                  # linear_three (no bias)
        multi_weight=unif(ks[10], (1, INTENT, 1)),
        # canonical TimeEncode reset (1/10**linspace(0,9,T), zero bias)
        time_w=(1.0 / 10.0 ** jnp.linspace(0.0, 9.0, TIME_D)).astype(jnp.float32),
        time_b=jnp.zeros((TIME_D,), jnp.float32),
    )


def make_inputs(key):
    ks = jax.random.split(key, 10)
    full_items = jax.random.randint(ks[0], (BATCH, SEQ_LEN), 1, N_NODE + 1)
    unique_items = jax.random.randint(ks[1], (BATCH, N_UNIQ), 1, N_NODE + 1)
    alias_inputs = jax.random.randint(ks[2], (BATCH, SEQ_LEN), 0, N_UNIQ)
    interval_full = jax.random.uniform(ks[3], (BATCH, SEQ_LEN), jnp.float32, 0.0, 10.0)
    lengths = jnp.array([SEQ_LEN, 5, 3, 6], dtype=jnp.int32)[:BATCH]
    mask = (jnp.arange(SEQ_LEN)[None, :] < lengths[:, None]).astype(jnp.float32)
    session_len = lengths.astype(jnp.float32)[:, None]
    overlap_type = jax.random.randint(ks[4], (BATCH, BATCH), 0, 14)
    matrix = jax.random.uniform(ks[5], (BATCH, BATCH), jnp.float32)   # unused downstream (as in torch)
    A_item = jax.random.randint(ks[6], (BATCH, N_UNIQ, N_UNIQ), 0, 6)
    A_interval = jax.random.uniform(ks[7], (BATCH, N_UNIQ, N_UNIQ), jnp.float32, 0.0, 100.0)
    interval_unique = jax.random.uniform(ks[8], (BATCH, N_UNIQ), jnp.float32, 0.0, 10.0)
    session_stamp = jax.random.uniform(ks[9], (BATCH,), jnp.float32, 0.0, 1000.0)
    return (full_items, unique_items, alias_inputs, interval_full, session_len,
            overlap_type, matrix, mask, A_item, A_interval, interval_unique,
            session_stamp)


if __name__ == "__main__":
    key = jax.random.PRNGKey(0)
    pkey, ikey, skey = jax.random.split(key, 3)
    params = init_params(pkey)
    inputs = make_inputs(ikey)
    fwd = jax.jit(enhsg_forward)
    loss, score = fwd(params, inputs, skey)
    jax.block_until_ready((loss, score))
    assert score.shape == (BATCH, N_NODE)
    assert bool(jnp.isfinite(loss)) and bool(jnp.all(jnp.isfinite(score)))
    print("KERNEL_OK")
</pallas_src>

<mosaic_0001>
module attributes {stable_mosaic.version = 11 : i64} {
  func.func @_enhsg_fused_kernel(%arg0: memref<4x8x32xf32, #tpu.memory_space<vmem>>, %arg1: memref<4x8x8xi32, #tpu.memory_space<vmem>>, %arg2: memref<4x8x8x32xf32, #tpu.memory_space<vmem>>, %arg3: memref<5x32xf32, #tpu.memory_space<vmem>>, %arg4: memref<5x32xf32, #tpu.memory_space<vmem>>, %arg5: memref<4x8x8xf32, #tpu.memory_space<vmem>>, %arg6: memref<4x3x8xf32, #tpu.memory_space<vmem>>, %arg7: memref<4x3x32xf32, #tpu.memory_space<vmem>>, %arg8: memref<4x8x32xf32, #tpu.memory_space<vmem>>, %arg9: memref<32x32xf32, #tpu.memory_space<vmem>>, %arg10: memref<32x32xf32, #tpu.memory_space<vmem>>, %arg11: memref<1x32xf32, #tpu.memory_space<vmem>>, %arg12: memref<4x8xf32, #tpu.memory_space<vmem>>, %arg13: memref<3x1xf32, #tpu.memory_space<vmem>>, %arg14: memref<8x32xf32, #tpu.memory_space<vmem>>, %arg15: memref<8x8xi32, #tpu.memory_space<vmem>>, %arg16: memref<8x8x32xf32, #tpu.memory_space<vmem>>, %arg17: memref<13x32xf32, #tpu.memory_space<vmem>>, %arg18: memref<13x32xf32, #tpu.memory_space<vmem>>, %arg19: memref<32x128xf32, #tpu.memory_space<vmem>>, %arg20: memref<4x32xf32, #tpu.memory_space<vmem>>, %arg21: memref<8x32xf32, #tpu.memory_space<vmem>>, %arg22: memref<4x128xf32, #tpu.memory_space<vmem>>) attributes {dimension_semantics = [], scalar_prefetch = 0 : i64, scratch_operands = 0 : i64, tpu.core_type = #tpu.core_type<tc>} {
    %c0 = arith.constant 0 : index
    %c0_0 = arith.constant 0 : index
    %c0_1 = arith.constant 0 : index
    %0 = vector.load %arg0[%c0, %c0_0, %c0_1] : memref<4x8x32xf32, #tpu.memory_space<vmem>>, vector<4x8x32xf32>
    %c0_2 = arith.constant 0 : index
    %c0_3 = arith.constant 0 : index
    %c0_4 = arith.constant 0 : index
    %1 = vector.load %arg1[%c0_2, %c0_3, %c0_4] : memref<4x8x8xi32, #tpu.memory_space<vmem>>, vector<4x8x8xi32>
    %c0_5 = arith.constant 0 : index
    %c0_6 = arith.constant 0 : index
    %2 = vector.load %arg3[%c0_5, %c0_6] : memref<5x32xf32, #tpu.memory_space<vmem>>, vector<5x32xf32>
    %c0_7 = arith.constant 0 : index
    %c0_8 = arith.constant 0 : index
    %3 = vector.load %arg4[%c0_7, %c0_8] : memref<5x32xf32, #tpu.memory_space<vmem>>, vector<5x32xf32>
    %4 = vector.shape_cast %0 : vector<4x8x32xf32> to vector<4x8x1x32xf32>
    %5 = vector.shape_cast %0 : vector<4x8x32xf32> to vector<4x1x8x32xf32>
    %6 = vector.broadcast %4 : vector<4x8x1x32xf32> to vector<4x8x8x32xf32>
    %7 = vector.broadcast %5 : vector<4x1x8x32xf32> to vector<4x8x8x32xf32>
    %8 = arith.mulf %6, %7 : vector<4x8x8x32xf32>
    %9 = vector.shape_cast %8 : vector<4x8x8x32xf32> to vector<256x32xf32>
    %cst = arith.constant dense<0.000000e+00> : vector<256x5xf32>
    %10 = tpu.matmul %9, %2, %cst {dimension_numbers = #tpu.dot_dimension_numbers<[1], [1], [0], [0], [0, 0, 1, 0], [], []>} : vector<256x32xf32>, vector<5x32xf32>, vector<256x5xf32> -> vector<256x5xf32>
    %c0_9 = arith.constant 0 : index
    %c0_10 = arith.constant 0 : index
    %c0_11 = arith.constant 0 : index
    %c0_12 = arith.constant 0 : index
    %11 = vector.load %arg2[%c0_9, %c0_10, %c0_11, %c0_12] : memref<4x8x8x32xf32, #tpu.memory_space<vmem>>, vector<4x8x8x32xf32>
    %12 = vector.shape_cast %11 : vector<4x8x8x32xf32> to vector<256x32xf32>
    %cst_13 = arith.constant dense<0.000000e+00> : vector<256x5xf32>
    %13 = tpu.matmul %12, %3, %cst_13 {dimension_numbers = #tpu.dot_dimension_numbers<[1], [1], [0], [0], [0, 0, 1, 0], [], []>} : vector<256x32xf32>, vector<5x32xf32>, vector<256x5xf32> -> vector<256x5xf32>
    %14 = arith.addf %10, %13 : vector<256x5xf32>
    %cst_14 = arith.constant 0.000000e+00 : f32
    %15 = vector.broadcast %cst_14 : f32 to vector<256x5xf32>
    %16 = arith.cmpf ogt, %14, %15 : vector<256x5xf32>
    %cst_15 = arith.constant 2.000000e-01 : f32
    %17 = vector.broadcast %cst_15 : f32 to vector<256x5xf32>
    %18 = arith.mulf %17, %14 : vector<256x5xf32>
    %19 = arith.select %16, %14, %18 : vector<256x5xi1>, vector<256x5xf32>
    %20 = vector.shape_cast %19 : vector<256x5xf32> to vector<4x8x8x5xf32>
    %21 = tpu.iota {dimensions = array<i32: 3>} : vector<4x8x8x5xi32>
    %c1_i32 = arith.constant 1 : i32
    %22 = vector.broadcast %c1_i32 : i32 to vector<4x8x8x5xi32>
    %23 = arith.addi %21, %22 : vector<4x8x8x5xi32>
    %24 = vector.shape_cast %1 : vector<4x8x8xi32> to vector<4x8x8x1xi32>
    %25 = vector.broadcast %24 : vector<4x8x8x1xi32> to vector<4x8x8x5xi32>
    %26 = arith.cmpi eq, %25, %23 : vector<4x8x8x5xi32>
    %cst_16 = arith.constant 0.000000e+00 : f32
    %27 = vector.broadcast %cst_16 : f32 to vector<4x8x8x5xf32>
    %28 = arith.select %26, %20, %27 : vector<4x8x8x5xi1>, vector<4x8x8x5xf32>
    %cst_17 = arith.constant dense<0.000000e+00> : vector<4x8x8xf32>
    %29 = vector.multi_reduction <add>, %28, %cst_17 [3] : vector<4x8x8x5xf32> to vector<4x8x8xf32>
    %c1_i32_18 = arith.constant 1 : i32
    %30 = vector.broadcast %c1_i32_18 : i32 to vector<4x8x8xi32>
    %31 = arith.cmpi sge, %1, %30 : vector<4x8x8xi32>
    %c5_i32 = arith.constant 5 : i32
    %32 = vector.broadcast %c5_i32 : i32 to vector<4x8x8xi32>
    %33 = arith.cmpi sle, %1, %32 : vector<4x8x8xi32>
    %34 = arith.andi %31, %33 : vector<4x8x8xi1>
    %cst_19 = arith.constant -9.000000e+15 : f32
    %35 = vector.broadcast %cst_19 : f32 to vector<4x8x8xf32>
    %36 = arith.select %34, %29, %35 : vector<4x8x8xi1>, vector<4x8x8xf32>
    %cst_20 = arith.constant dense<0xFF800000> : vector<4x8xf32>
    %37 = vector.multi_reduction <maximumf>, %36, %cst_20 [2] : vector<4x8x8xf32> to vector<4x8xf32>
    %38 = vector.shape_cast %37 : vector<4x8xf32> to vector<4x8x1xf32>
    %39 = vector.broadcast %38 : vector<4x8x1xf32> to vector<4x8x8xf32>
    %40 = arith.subf %36, %39 : vector<4x8x8xf32>
    %41 = math.exp %40 : vector<4x8x8xf32>
    %cst_21 = arith.constant dense<0.000000e+00> : vector<4x8xf32>
    %42 = vector.multi_reduction <add>, %41, %cst_21 [2] : vector<4x8x8xf32> to vector<4x8xf32>
    %43 = vector.shape_cast %42 : vector<4x8xf32> to vector<4x8x1xf32>
    %44 = vector.broadcast %43 : vector<4x8x1xf32> to vector<4x8x8xf32>
    %45 = arith.divf %41, %44 : vector<4x8x8xf32>
    %cst_22 = arith.constant dense<0.000000e+00> : vector<4x8x32xf32>
    %46 = tpu.matmul %45, %0, %cst_22 {dimension_numbers = #tpu.dot_dimension_numbers<[2], [1], [1], [2], [0, 0, 0, 1, 1, 2], [0], [0]>} : vector<4x8x8xf32>, vector<4x8x32xf32>, vector<4x8x32xf32> -> vector<4x8x32xf32>
    %c0_23 = arith.constant 0 : index
    %c0_24 = arith.constant 0 : index
    %c0_25 = arith.constant 0 : index
    %47 = vector.load %arg5[%c0_23, %c0_24, %c0_25] : memref<4x8x8xf32, #tpu.memory_space<vmem>>, vector<4x8x8xf32>
    %cst_26 = arith.constant dense<0.000000e+00> : vector<4x8x32xf32>
    %48 = tpu.matmul %47, %46, %cst_26 {dimension_numbers = #tpu.dot_dimension_numbers<[2], [1], [1], [2], [0, 0, 0, 1, 1, 2], [0], [0]>} : vector<4x8x8xf32>, vector<4x8x32xf32>, vector<4x8x32xf32> -> vector<4x8x32xf32>
    %49 = vector.shape_cast %48 : vector<4x8x32xf32> to vector<32x32xf32>
    %c0_27 = arith.constant 0 : index
    %c0_28 = arith.constant 0 : index
    %50 = vector.load %arg9[%c0_27, %c0_28] : memref<32x32xf32, #tpu.memory_space<vmem>>, vector<32x32xf32>
    %cst_29 = arith.constant dense<0.000000e+00> : vector<32x32xf32>
    %51 = tpu.matmul %49, %50, %cst_29 {dimension_numbers = #tpu.dot_dimension_numbers<[1], [0], [0], [1], [0, 0, 1, 1], [], []>} : vector<32x32xf32>, vector<32x32xf32>, vector<32x32xf32> -> vector<32x32xf32>
    %52 = vector.shape_cast %51 : vector<32x32xf32> to vector<4x8x32xf32>
    %c0_30 = arith.constant 0 : index
    %c0_31 = arith.constant 0 : index
    %c0_32 = arith.constant 0 : index
    %53 = vector.load %arg8[%c0_30, %c0_31, %c0_32] : memref<4x8x32xf32, #tpu.memory_space<vmem>>, vector<4x8x32xf32>
    %c0_33 = arith.constant 0 : index
    %c0_34 = arith.constant 0 : index
    %54 = vector.load %arg10[%c0_33, %c0_34] : memref<32x32xf32, #tpu.memory_space<vmem>>, vector<32x32xf32>
    %cst_35 = arith.constant dense<0.000000e+00> : vector<32x32xf32>
    %55 = tpu.matmul %49, %54, %cst_35 {dimension_numbers = #tpu.dot_dimension_numbers<[1], [0], [0], [1], [0, 0, 1, 1], [], []>} : vector<32x32xf32>, vector<32x32xf32>, vector<32x32xf32> -> vector<32x32xf32>
    %56 = vector.shape_cast %55 : vector<32x32xf32> to vector<4x8x32xf32>
    %57 = arith.addf %53, %56 : vector<4x8x32xf32>
    %c0_36 = arith.constant 0 : index
    %c0_37 = arith.constant 0 : index
    %c0_38 = arith.constant 0 : index
    %58 = vector.load %arg6[%c0_36, %c0_37, %c0_38] : memref<4x3x8xf32, #tpu.memory_space<vmem>>, vector<4x3x8xf32>
    %c0_39 = arith.constant 0 : index
    %c0_40 = arith.constant 0 : index
    %c0_41 = arith.constant 0 : index
    %59 = vector.load %arg7[%c0_39, %c0_40, %c0_41] : memref<4x3x32xf32, #tpu.memory_space<vmem>>, vector<4x3x32xf32>
    %cst_42 = arith.constant dense<0.000000e+00> : vector<4x3x32xf32>
    %60 = tpu.matmul %58, %52, %cst_42 {dimension_numbers = #tpu.dot_dimension_numbers<[2], [1], [1], [2], [0, 0, 0, 1, 1, 2], [0], [0]>} : vector<4x3x8xf32>, vector<4x8x32xf32>, vector<4x3x32xf32> -> vector<4x3x32xf32>
    %61 = arith.addf %59, %60 : vector<4x3x32xf32>
    %62 = vector.shape_cast %61 : vector<4x3x32xf32> to vector<4x3x1x32xf32>
    %63 = vector.shape_cast %57 : vector<4x8x32xf32> to vector<4x1x8x32xf32>
    %64 = vector.broadcast %62 : vector<4x3x1x32xf32> to vector<4x3x8x32xf32>
    %65 = vector.broadcast %63 : vector<4x1x8x32xf32> to vector<4x3x8x32xf32>
    %66 = arith.addf %64, %65 : vector<4x3x8x32xf32>
    %67 = arith.negf %66 : vector<4x3x8x32xf32>
    %68 = math.exp %67 : vector<4x3x8x32xf32>
    %cst_43 = arith.constant 1.000000e+00 : f32
    %69 = vector.broadcast %cst_43 : f32 to vector<4x3x8x32xf32>
    %70 = arith.addf %69, %68 : vector<4x3x8x32xf32>
    %71 = arith.divf %69, %70 : vector<4x3x8x32xf32>
    %c0_44 = arith.constant 0 : index
    %c0_45 = arith.constant 0 : index
    %72 = vector.load %arg11[%c0_44, %c0_45] : memref<1x32xf32, #tpu.memory_space<vmem>>, vector<1x32xf32>
    %73 = vector.shape_cast %72 : vector<1x32xf32> to vector<1x1x1x32xf32>
    %74 = vector.broadcast %73 : vector<1x1x1x32xf32> to vector<4x3x8x32xf32>
    %75 = arith.mulf %71, %74 : vector<4x3x8x32xf32>
    %cst_46 = arith.constant dense<0.000000e+00> : vector<4x3x8xf32>
    %76 = vector.multi_reduction <add>, %75, %cst_46 [3] : vector<4x3x8x32xf32> to vector<4x3x8xf32>
    %c0_47 = arith.constant 0 : index
    %c0_48 = arith.constant 0 : index
    %77 = vector.load %arg12[%c0_47, %c0_48] : memref<4x8xf32, #tpu.memory_space<vmem>>, vector<4x8xf32>
    %78 = vector.shape_cast %77 : vector<4x8xf32> to vector<4x8x1xf32>
    %79 = vector.broadcast %78 : vector<4x8x1xf32> to vector<4x8x32xf32>
    %80 = arith.mulf %48, %79 : vector<4x8x32xf32>
    %cst_49 = arith.constant dense<0.000000e+00> : vector<4x3x32xf32>
    %81 = tpu.matmul %76, %80, %cst_49 {dimension_numbers = #tpu.dot_dimension_numbers<[2], [1], [1], [2], [0, 0, 0, 1, 1, 2], [0], [0]>} : vector<4x3x8xf32>, vector<4x8x32xf32>, vector<4x3x32xf32> -> vector<4x3x32xf32>
    %c0_50 = arith.constant 0 : index
    %c0_51 = arith.constant 0 : index
    %82 = vector.load %arg13[%c0_50, %c0_51] : memref<3x1xf32, #tpu.memory_space<vmem>>, vector<3x1xf32>
    %83 = vector.shape_cast %82 : vector<3x1xf32> to vector<1x3x1xf32>
    %84 = vector.broadcast %83 : vector<1x3x1xf32> to vector<4x3x32xf32>
    %85 = arith.mulf %84, %81 : vector<4x3x32xf32>
    %cst_52 = arith.constant dense<0.000000e+00> : vector<4x32xf32>
    %86 = vector.multi_reduction <add>, %85, %cst_52 [1] : vector<4x3x32xf32> to vector<4x32xf32>
    %c0_53 = arith.constant 0 : index
    %c0_54 = arith.constant 0 : index
    %87 = vector.load %arg20[%c0_53, %c0_54] : memref<4x32xf32, #tpu.memory_space<vmem>>, vector<4x32xf32>
    tpu.vector_store %arg20[%c0_53, %c0_54], %86 {strides = array<i32>} : memref<4x32xf32, #tpu.memory_space<vmem>>, vector<4x32xf32>,
    %c0_55 = arith.constant 0 : index
    %c0_56 = arith.constant 0 : index
    %88 = vector.load %arg14[%c0_55, %c0_56] : memref<8x32xf32, #tpu.memory_space<vmem>>, vector<8x32xf32>
    %c0_57 = arith.constant 0 : index
    %c0_58 = arith.constant 0 : index
    %89 = vector.load %arg15[%c0_57, %c0_58] : memref<8x8xi32, #tpu.memory_space<vmem>>, vector<8x8xi32>
    %c0_59 = arith.constant 0 : index
    %c0_60 = arith.constant 0 : index
    %90 = vector.load %arg17[%c0_59, %c0_60] : memref<13x32xf32, #tpu.memory_space<vmem>>, vector<13x32xf32>
    %c0_61 = arith.constant 0 : index
    %c0_62 = arith.constant 0 : index
    %91 = vector.load %arg18[%c0_61, %c0_62] : memref<13x32xf32, #tpu.memory_space<vmem>>, vector<13x32xf32>
    %92 = vector.shape_cast %88 : vector<8x32xf32> to vector<8x1x32xf32>
    %93 = vector.shape_cast %88 : vector<8x32xf32> to vector<1x8x32xf32>
    %94 = vector.broadcast %92 : vector<8x1x32xf32> to vector<8x8x32xf32>
    %95 = vector.broadcast %93 : vector<1x8x32xf32> to vector<8x8x32xf32>
    %96 = arith.mulf %94, %95 : vector<8x8x32xf32>
    %97 = vector.shape_cast %96 : vector<8x8x32xf32> to vector<64x32xf32>
    %cst_63 = arith.constant dense<0.000000e+00> : vector<64x13xf32>
    %98 = tpu.matmul %97, %90, %cst_63 {dimension_numbers = #tpu.dot_dimension_numbers<[1], [1], [0], [0], [0, 0, 1, 0], [], []>} : vector<64x32xf32>, vector<13x32xf32>, vector<64x13xf32> -> vector<64x13xf32>
    %c0_64 = arith.constant 0 : index
    %c0_65 = arith.constant 0 : index
    %c0_66 = arith.constant 0 : index
    %99 = vector.load %arg16[%c0_64, %c0_65, %c0_66] : memref<8x8x32xf32, #tpu.memory_space<vmem>>, vector<8x8x32xf32>
    %100 = vector.shape_cast %99 : vector<8x8x32xf32> to vector<64x32xf32>
    %cst_67 = arith.constant dense<0.000000e+00> : vector<64x13xf32>
    %101 = tpu.matmul %100, %91, %cst_67 {dimension_numbers = #tpu.dot_dimension_numbers<[1], [1], [0], [0], [0, 0, 1, 0], [], []>} : vector<64x32xf32>, vector<13x32xf32>, vector<64x13xf32> -> vector<64x13xf32>
    %102 = arith.addf %98, %101 : vector<64x13xf32>
    %cst_68 = arith.constant 0.000000e+00 : f32
    %103 = vector.broadcast %cst_68 : f32 to vector<64x13xf32>
    %104 = arith.cmpf ogt, %102, %103 : vector<64x13xf32>
    %cst_69 = arith.constant 2.000000e-01 : f32
    %105 = vector.broadcast %cst_69 : f32 to vector<64x13xf32>
    %106 = arith.mulf %105, %102 : vector<64x13xf32>
    %107 = arith.select %104, %102, %106 : vector<64x13xi1>, vector<64x13xf32>
    %108 = vector.shape_cast %107 : vector<64x13xf32> to vector<8x8x13xf32>
    %109 = tpu.iota {dimensions = array<i32: 2>} : vector<8x8x13xi32>
    %c1_i32_70 = arith.constant 1 : i32
    %110 = vector.broadcast %c1_i32_70 : i32 to vector<8x8x13xi32>
    %111 = arith.addi %109, %110 : vector<8x8x13xi32>
    %112 = vector.shape_cast %89 : vector<8x8xi32> to vector<8x8x1xi32>
    %113 = vector.broadcast %112 : vector<8x8x1xi32> to vector<8x8x13xi32>
    %114 = arith.cmpi eq, %113, %111 : vector<8x8x13xi32>
    %cst_71 = arith.constant 0.000000e+00 : f32
    %115 = vector.broadcast %cst_71 : f32 to vector<8x8x13xf32>
    %116 = arith.select %114, %108, %115 : vector<8x8x13xi1>, vector<8x8x13xf32>
    %cst_72 = arith.constant dense<0.000000e+00> : vector<8x8xf32>
    %117 = vector.multi_reduction <add>, %116, %cst_72 [2] : vector<8x8x13xf32> to vector<8x8xf32>
    %c1_i32_73 = arith.constant 1 : i32
    %118 = vector.broadcast %c1_i32_73 : i32 to vector<8x8xi32>
    %119 = arith.cmpi sge, %89, %118 : vector<8x8xi32>
    %c13_i32 = arith.constant 13 : i32
    %120 = vector.broadcast %c13_i32 : i32 to vector<8x8xi32>
    %121 = arith.cmpi sle, %89, %120 : vector<8x8xi32>
    %122 = arith.andi %119, %121 : vector<8x8xi1>
    %cst_74 = arith.constant -9.000000e+15 : f32
    %123 = vector.broadcast %cst_74 : f32 to vector<8x8xf32>
    %124 = arith.select %122, %117, %123 : vector<8x8xi1>, vector<8x8xf32>
    %cst_75 = arith.constant dense<0xFF800000> : vector<8xf32>
    %125 = vector.multi_reduction <maximumf>, %124, %cst_75 [1] : vector<8x8xf32> to vector<8xf32>
    %126 = vector.shape_cast %125 : vector<8xf32> to vector<8x1xf32>
    %127 = vector.broadcast %126 : vector<8x1xf32> to vector<8x8xf32>
    %128 = arith.subf %124, %127 : vector<8x8xf32>
    %129 = math.exp %128 : vector<8x8xf32>
    %cst_76 = arith.constant dense<0.000000e+00> : vector<8xf32>
    %130 = vector.multi_reduction <add>, %129, %cst_76 [1] : vector<8x8xf32> to vector<8xf32>
    %131 = vector.shape_cast %130 : vector<8xf32> to vector<8x1xf32>
    %132 = vector.broadcast %131 : vector<8x1xf32> to vector<8x8xf32>
    %133 = arith.divf %129, %132 : vector<8x8xf32>
    %cst_77 = arith.constant dense<0.000000e+00> : vector<8x32xf32>
    %134 = tpu.matmul %133, %88, %cst_77 {dimension_numbers = #tpu.dot_dimension_numbers<[1], [0], [0], [1], [0, 0, 1, 1], [], []>} : vector<8x8xf32>, vector<8x32xf32>, vector<8x32xf32> -> vector<8x32xf32>
    %c0_78 = arith.constant 0 : index
    %c0_79 = arith.constant 0 : index
    %135 = vector.load %arg21[%c0_78, %c0_79] : memref<8x32xf32, #tpu.memory_space<vmem>>, vector<8x32xf32>
    tpu.vector_store %arg21[%c0_78, %c0_79], %134 {strides = array<i32>} : memref<8x32xf32, #tpu.memory_space<vmem>>, vector<8x32xf32>,
    %c0_80 = arith.constant 0 : index
    %c0_81 = arith.constant 0 : index
    %136 = vector.load %arg19[%c0_80, %c0_81] : memref<32x128xf32, #tpu.memory_space<vmem>>, vector<32x128xf32>
    %cst_82 = arith.constant dense<0.000000e+00> : vector<4x128xf32>
    %137 = tpu.matmul %86, %136, %cst_82 {dimension_numbers = #tpu.dot_dimension_numbers<[1], [0], [0], [1], [0, 0, 1, 1], [], []>} : vector<4x32xf32>, vector<32x128xf32>, vector<4x128xf32> -> vector<4x128xf32>
    %c0_83 = arith.constant 0 : index
    %c0_84 = arith.constant 0 : index
    %138 = vector.load %arg22[%c0_83, %c0_84] : memref<4x128xf32, #tpu.memory_space<vmem>>, vector<4x128xf32>
    tpu.vector_store %arg22[%c0_83, %c0_84], %137 {strides = array<i32>} : memref<4x128xf32, #tpu.memory_space<vmem>>, vector<4x128xf32>,
    return
  }
}

</mosaic_0001>

<llo_original>
// kernel: enhsg_forward.1
$region0: #{enhsg_forward.1}
  #allocation0 [shape = 'u32[]', space=smem, size = 0x4, offset = 0x4, fixed_abs, tag = 'smem constant byte address 0x4 - core index']
  #allocation1 [shape = 'u32[144,128]{1,0:T(1,128)}', space=vmem, size = 0x12000, scoped, tag = 'internal scratch']
  %s0 = inlined_call_operand.vmem [shape: f32[4,8,32], index: 0, kind: input, shape index: {}]
  %s1 = inlined_call_operand.vmem [shape: s32[4,8,8], index: 1, kind: input, shape index: {}]
  %s2 = inlined_call_operand.vmem [shape: f32[4,8,8,32], index: 2, kind: input, shape index: {}]
  %s3 = inlined_call_operand.vmem [shape: f32[5,32], index: 3, kind: input, shape index: {}]
  %s4 = inlined_call_operand.vmem [shape: f32[5,32], index: 4, kind: input, shape index: {}]
  %s5 = inlined_call_operand.vmem [shape: f32[4,8,8], index: 5, kind: input, shape index: {}]
  %s6 = inlined_call_operand.vmem [shape: f32[4,3,8], index: 6, kind: input, shape index: {}]
  %s7 = inlined_call_operand.vmem [shape: f32[4,3,32], index: 7, kind: input, shape index: {}]
  %s8 = inlined_call_operand.vmem [shape: f32[4,8,32], index: 8, kind: input, shape index: {}]
  %s9 = inlined_call_operand.vmem [shape: f32[32,32], index: 9, kind: input, shape index: {}]
  %s10 = inlined_call_operand.vmem [shape: f32[32,32], index: 10, kind: input, shape index: {}]
  %s11 = inlined_call_operand.vmem [shape: f32[1,32], index: 11, kind: input, shape index: {}]
  %s12 = inlined_call_operand.vmem [shape: f32[4,8], index: 12, kind: input, shape index: {}]
  %s13 = inlined_call_operand.vmem [shape: f32[3,1], index: 13, kind: input, shape index: {}]
  %s14 = inlined_call_operand.vmem [shape: f32[8,32], index: 14, kind: input, shape index: {}]
  %s15 = inlined_call_operand.vmem [shape: s32[8,8], index: 15, kind: input, shape index: {}]
  %s16 = inlined_call_operand.vmem [shape: f32[8,8,32], index: 16, kind: input, shape index: {}]
  %s17 = inlined_call_operand.vmem [shape: f32[13,32], index: 17, kind: input, shape index: {}]
  %s18 = inlined_call_operand.vmem [shape: f32[13,32], index: 18, kind: input, shape index: {}]
  %s19 = inlined_call_operand.vmem [shape: f32[32,128], index: 19, kind: input, shape index: {}]
  %s20 = inlined_call_operand.vmem [shape: f32[4,32], index: 20, kind: output, shape index: {0}]
  %s21 = inlined_call_operand.vmem [shape: f32[8,32], index: 21, kind: output, shape index: {1}]
  %s22 = inlined_call_operand.hbm [shape: f32[4,128], index: 22, kind: output, shape index: {2}]
  %23 = xla_tuple %s20, %s21, %s22
  %s24 = sld [smem:[#allocation0]]
  $region106: #{enhsg_forward.1} parent=0
    _
  %s26 = ssub.s32 1, %s24
  %s27 = scalar_select 0, %s26, %s24
  $region1: #{enhsg_forward.1} parent=0
    #allocation2 [shape = 'u8[2048]{0}', space=vmem, size = 0x800, scoped, tag = 'output window, operand 2, single buffered']
    #allocation3 [shape = 's32[1]{0}', space=sflag, size = 0x4, scoped, tag = 'scoped memory for enhsg_forward.1']
    %28 = vsyncpa [#allocation3], 0
    // Predicated region
    $region2: #{enhsg_forward.1} parent=1 // pred_check
      _
    $region3: #{enhsg_forward.1} parent=1 // pred_check_branch
      %30 = sbr.rel (0) target = $region5
    $region4: #{enhsg_forward.1} parent=1 // pred_region
      _
    $region5: #{enhsg_forward.1} parent=1 // pred_fallthru
      _
    // Predicated region
    $region6: #{enhsg_forward.1} parent=1 // pred_check
      _
    $region7: #{enhsg_forward.1} parent=1 // pred_check_branch
      %32 = sbr.rel (0) target = $region9
    $region8: #{enhsg_forward.1} parent=1 // pred_region
      _
    $region9: #{enhsg_forward.1} parent=1 // pred_fallthru
      _
    // Predicated region
    $region10: #{enhsg_forward.1} parent=1 // pred_check
      _
    $region11: #{enhsg_forward.1} parent=1 // pred_check_branch
      %34 = sbr.rel (0) target = $region13
    $region12: #{enhsg_forward.1} parent=1 // pred_region
      _
    $region13: #{enhsg_forward.1} parent=1 // pred_fallthru
      _
    // Predicated region
    $region14: #{enhsg_forward.1} parent=1 // pred_check
      _
    $region15: #{enhsg_forward.1} parent=1 // pred_check_branch
      %36 = sbr.rel (0) target = $region17
    $region16: #{enhsg_forward.1} parent=1 // pred_region
      _
    $region17: #{enhsg_forward.1} parent=1 // pred_fallthru
      _
    // Predicated region
    $region18: #{enhsg_forward.1} parent=1 // pred_check
      _
    $region19: #{enhsg_forward.1} parent=1 // pred_check_branch
      %38 = sbr.rel (0) target = $region21
    $region20: #{enhsg_forward.1} parent=1 // pred_region
      _
    $region21: #{enhsg_forward.1} parent=1 // pred_fallthru
      _
    // Predicated region
    $region22: #{enhsg_forward.1} parent=1 // pred_check
      _
    $region23: #{enhsg_forward.1} parent=1 // pred_check_branch
      %40 = sbr.rel (0) target = $region25
    $region24: #{enhsg_forward.1} parent=1 // pred_region
      _
    $region25: #{enhsg_forward.1} parent=1 // pred_fallthru
      _
    // Predicated region
    $region26: #{enhsg_forward.1} parent=1 // pred_check
      _
    $region27: #{enhsg_forward.1} parent=1 // pred_check_branch
      %42 = sbr.rel (0) target = $region29
    $region28: #{enhsg_forward.1} parent=1 // pred_region
      _
    $region29: #{enhsg_forward.1} parent=1 // pred_fallthru
      _
    // Predicated region
    $region30: #{enhsg_forward.1} parent=1 // pred_check
      _
    $region31: #{enhsg_forward.1} parent=1 // pred_check_branch
      %44 = sbr.rel (0) target = $region33
    $region32: #{enhsg_forward.1} parent=1 // pred_region
      _
    $region33: #{enhsg_forward.1} parent=1 // pred_fallthru
      _
    // Predicated region
    $region34: #{enhsg_forward.1} parent=1 // pred_check
      _
    $region35: #{enhsg_forward.1} parent=1 // pred_check_branch
      %46 = sbr.rel (0) target = $region37
    $region36: #{enhsg_forward.1} parent=1 // pred_region
      _
    $region37: #{enhsg_forward.1} parent=1 // pred_fallthru
      _
    // Predicated region
    $region38: #{enhsg_forward.1} parent=1 // pred_check
      _
    $region39: #{enhsg_forward.1} parent=1 // pred_check_branch
      %48 = sbr.rel (0) target = $region41
    $region40: #{enhsg_forward.1} parent=1 // pred_region
      _
    $region41: #{enhsg_forward.1} parent=1 // pred_fallthru
      _
    // Predicated region
    $region42: #{enhsg_forward.1} parent=1 // pred_check
      _
    $region43: #{enhsg_forward.1} parent=1 // pred_check_branch
      %50 = sbr.rel (0) target = $region45
    $region44: #{enhsg_forward.1} parent=1 // pred_region
      _
    $region45: #{enhsg_forward.1} parent=1 // pred_fallthru
      _
    // Predicated region
    $region46: #{enhsg_forward.1} parent=1 // pred_check
      _
    $region47: #{enhsg_forward.1} parent=1 // pred_check_branch
      %52 = sbr.rel (0) target = $region49
    $region48: #{enhsg_forward.1} parent=1 // pred_region
      _
    $region49: #{enhsg_forward.1} parent=1 // pred_fallthru
      _
    // Predicated region
    $region50: #{enhsg_forward.1} parent=1 // pred_check
      _
    $region51: #{enhsg_forward.1} parent=1 // pred_check_branch
      %54 = sbr.rel (0) target = $region53
    $region52: #{enhsg_forward.1} parent=1 // pred_region
      _
    $region53: #{enhsg_forward.1} parent=1 // pred_fallthru
      _
    // Predicated region
    $region54: #{enhsg_forward.1} parent=1 // pred_check
      _
    $region55: #{enhsg_forward.1} parent=1 // pred_check_branch
      %56 = sbr.rel (0) target = $region57
    $region56: #{enhsg_forward.1} parent=1 // pred_region
      _
    $region57: #{enhsg_forward.1} parent=1 // pred_fallthru
      _
    // Predicated region
    $region58: #{enhsg_forward.1} parent=1 // pred_check
      _
    $region59: #{enhsg_forward.1} parent=1 // pred_check_branch
      %58 = sbr.rel (0) target = $region61
    $region60: #{enhsg_forward.1} parent=1 // pred_region
      _
    $region61: #{enhsg_forward.1} parent=1 // pred_fallthru
      _
    // Predicated region
    $region62: #{enhsg_forward.1} parent=1 // pred_check
      _
    $region63: #{enhsg_forward.1} parent=1 // pred_check_branch
      %60 = sbr.rel (0) target = $region65
    $region64: #{enhsg_forward.1} parent=1 // pred_region
      _
    $region65: #{enhsg_forward.1} parent=1 // pred_fallthru
      _
    // Predicated region
    $region66: #{enhsg_forward.1} parent=1 // pred_check
      _
    $region67: #{enhsg_forward.1} parent=1 // pred_check_branch
      %62 = sbr.rel (0) target = $region69
    $region68: #{enhsg_forward.1} parent=1 // pred_region
      _
    $region69: #{enhsg_forward.1} parent=1 // pred_fallthru
      _
    // Predicated region
    $region70: #{enhsg_forward.1} parent=1 // pred_check
      _
    $region71: #{enhsg_forward.1} parent=1 // pred_check_branch
      %64 = sbr.rel (0) target = $region73
    $region72: #{enhsg_forward.1} parent=1 // pred_region
      _
    $region73: #{enhsg_forward.1} parent=1 // pred_fallthru
      _
    // Predicated region
    $region74: #{enhsg_forward.1} parent=1 // pred_check
      _
    $region75: #{enhsg_forward.1} parent=1 // pred_check_branch
      %66 = sbr.rel (0) target = $region77
    $region76: #{enhsg_forward.1} parent=1 // pred_region
      _
    $region77: #{enhsg_forward.1} parent=1 // pred_fallthru
      _
    // Predicated region
    $region78: #{enhsg_forward.1} parent=1 // pred_check
      _
    $region79: #{enhsg_forward.1} parent=1 // pred_check_branch
      %68 = sbr.rel (0) target = $region81
    $region80: #{enhsg_forward.1} parent=1 // pred_region
      _
    $region81: #{enhsg_forward.1} parent=1 // pred_fallthru
      _
    %v69 = vld [vmem:[%s0] sm:$0xff]
    %v70 = vld [vmem:[%s0 + $0x8] sm:$0xff]
    %v71 = vld [vmem:[%s0 + $0x10] sm:$0xff]
    %v72 = vld [vmem:[%s0 + $0x18] sm:$0xff]
    %v73 = vld [vmem:[%s1] sm:$0xff]
    %v74 = vld [vmem:[%s1 + $0x8] sm:$0xff]
    %v75 = vld [vmem:[%s1 + $0x10] sm:$0xff]
    %v76 = vld [vmem:[%s1 + $0x18] sm:$0xff]
    %v77 = vld [vmem:[%s3] sm:$0x1f]
    %v78 = vld [vmem:[%s4] sm:$0x1f]
    %v83 = vcombine.high %v69, %v69
    %v85 = vunpack.c.l.s4 1966171168
    %v86 = vunpack.c.0.s8 %v85
    %v87 = vlaneseq
    %v88 = vshrl.u32 %v87, 7
    %v89 = vsub.s32 %v86, %v88
    %v90 = vrot.slane %v69, %v89
    %v92 = vunpack.c.l.s4 1966171168
    %v93 = vunpack.c.0.s8 %v92
    %v94 = vlaneseq
    %v95 = vshrl.u32 %v94, 7
    %v96 = vsub.s32 %v93, %v95
    %v97 = vrot.slane %v83, %v96
    %v98 = vcombine.high %v90, %v90
    %v99 = vcombine.high %v97, %v97
    %v101 = vunpack.c.l.s4 1966171168
    %v102 = vunpack.c.0.s8 %v101
    %v103 = vlaneseq
    %v104 = vshrl.u32 %v103, 7
    %v105 = vsub.s32 %v102, %v104
    %v106 = vrot.slane %v90, %v105
    %v108 = vunpack.c.l.s4 1966171168
    %v109 = vunpack.c.0.s8 %v108
    %v110 = vlaneseq
    %v111 = vshrl.u32 %v110, 7
    %v112 = vsub.s32 %v109, %v111
    %v113 = vrot.slane %v97, %v112
    %v115 = vunpack.c.l.s4 1966171168
    %v116 = vunpack.c.0.s8 %v115
    %v117 = vlaneseq
    %v118 = vshrl.u32 %v117, 7
    %v119 = vsub.s32 %v116, %v118
    %v120 = vrot.slane %v98, %v119
    %v122 = vunpack.c.l.s4 1966171168
    %v123 = vunpack.c.0.s8 %v122
    %v124 = vlaneseq
    %v125 = vshrl.u32 %v124, 7
    %v126 = vsub.s32 %v123, %v125
    %v127 = vrot.slane %v99, %v126
    %v128 = vcombine.high %v106, %v106
    %v129 = vcombine.high %v113, %v113
    %v130 = vcombine.high %v120, %v120
    %v131 = vcombine.high %v127, %v127
    %v132 = vcombine.high %v70, %v70
    %v134 = vunpack.c.l.s4 1966171168
    %v135 = vunpack.c.0.s8 %v134
    %v136 = vlaneseq
    %v137 = vshrl.u32 %v136, 7
    %v138 = vsub.s32 %v135, %v137
    %v139 = vrot.slane %v70, %v138
    %v141 = vunpack.c.l.s4 1966171168
    %v142 = vunpack.c.0.s8 %v141
    %v143 = vlaneseq
    %v144 = vshrl.u32 %v143, 7
    %v145 = vsub.s32 %v142, %v144
    %v146 = vrot.slane %v132, %v145
    %v147 = vcombine.high %v139, %v139
    %v148 = vcombine.high %v146, %v146
    %v150 = vunpack.c.l.s4 1966171168
    %v151 = vunpack.c.0.s8 %v150
    %v152 = vlaneseq
    %v153 = vshrl.u32 %v152, 7
    %v154 = vsub.s32 %v151, %v153
    %v155 = vrot.slane %v139, %v154
    %v157 = vunpack.c.l.s4 1966171168
    %v158 = vunpack.c.0.s8 %v157
    %v159 = vlaneseq
    %v160 = vshrl.u32 %v159, 7
    %v161 = vsub.s32 %v158, %v160
    %v162 = vrot.slane %v146, %v161
    %v164 = vunpack.c.l.s4 1966171168
    %v165 = vunpack.c.0.s8 %v164
    %v166 = vlaneseq
    %v167 = vshrl.u32 %v166, 7
    %v168 = vsub.s32 %v165, %v167
    %v169 = vrot.slane %v147, %v168
    %v171 = vunpack.c.l.s4 1966171168
    %v172 = vunpack.c.0.s8 %v171
    %v173 = vlaneseq
    %v174 = vshrl.u32 %v173, 7
    %v175 = vsub.s32 %v172, %v174
    %v176 = vrot.slane %v148, %v175
    %v177 = vcombine.high %v155, %v155
    %v178 = vcombine.high %v162, %v162
    %v179 = vcombine.high %v169, %v169
    %v180 = vcombine.high %v176, %v176
    %v181 = vcombine.high %v71, %v71
    %v183 = vunpack.c.l.s4 1966171168
    %v184 = vunpack.c.0.s8 %v183
    %v185 = vlaneseq
    %v186 = vshrl.u32 %v185, 7
    %v187 = vsub.s32 %v184, %v186
    %v188 = vrot.slane %v71, %v187
    %v190 = vunpack.c.l.s4 1966171168
    %v191 = vunpack.c.0.s8 %v190
    %v192 = vlaneseq
    %v193 = vshrl.u32 %v192, 7
    %v194 = vsub.s32 %v191, %v193
    %v195 = vrot.slane %v181, %v194
    %v196 = vcombine.high %v188, %v188
    %v197 = vcombine.high %v195, %v195
    %v199 = vunpack.c.l.s4 1966171168
    %v200 = vunpack.c.0.s8 %v199
    %v201 = vlaneseq
    %v202 = vshrl.u32 %v201, 7
    %v203 = vsub.s32 %v200, %v202
    %v204 = vrot.slane %v188, %v203
    %v206 = vunpack.c.l.s4 1966171168
    %v207 = vunpack.c.0.s8 %v206
    %v208 = vlaneseq
    %v209 = vshrl.u32 %v208, 7
    %v210 = vsub.s32 %v207, %v209
    %v211 = vrot.slane %v195, %v210
    %v213 = vunpack.c.l.s4 1966171168
    %v214 = vunpack.c.0.s8 %v213
    %v215 = vlaneseq
    %v216 = vshrl.u32 %v215, 7
    %v217 = vsub.s32 %v214, %v216
    %v218 = vrot.slane %v196, %v217
    %v220 = vunpack.c.l.s4 1966171168
    %v221 = vunpack.c.0.s8 %v220
    %v222 = vlaneseq
    %v223 = vshrl.u32 %v222, 7
    %v224 = vsub.s32 %v221, %v223
    %v225 = vrot.slane %v197, %v224
    %v226 = vcombine.high %v204, %v204
    %v227 = vcombine.high %v211, %v211
    %v228 = vcombine.high %v218, %v218
    %v229 = vcombine.high %v225, %v225
    %v230 = vcombine.high %v72, %v72
    %v232 = vunpack.c.l.s4 1966171168
    %v233 = vunpack.c.0.s8 %v232
    %v234 = vlaneseq
    %v235 = vshrl.u32 %v234, 7
    %v236 = vsub.s32 %v233, %v235
    %v237 = vrot.slane %v72, %v236
    %v239 = vunpack.c.l.s4 1966171168
    %v240 = vunpack.c.0.s8 %v239
    %v241 = vlaneseq
    %v242 = vshrl.u32 %v241, 7
    %v243 = vsub.s32 %v240, %v242
    %v244 = vrot.slane %v230, %v243
    %v245 = vcombine.high %v237, %v237
    %v246 = vcombine.high %v244, %v244
    %v248 = vunpack.c.l.s4 1966171168
    %v249 = vunpack.c.0.s8 %v248
    %v250 = vlaneseq
    %v251 = vshrl.u32 %v250, 7
    %v252 = vsub.s32 %v249, %v251
    %v253 = vrot.slane %v237, %v252
    %v255 = vunpack.c.l.s4 1966171168
    %v256 = vunpack.c.0.s8 %v255
    %v257 = vlaneseq
    %v258 = vshrl.u32 %v257, 7
    %v259 = vsub.s32 %v256, %v258
    %v260 = vrot.slane %v244, %v259
    %v262 = vunpack.c.l.s4 1966171168
    %v263 = vunpack.c.0.s8 %v262
    %v264 = vlaneseq
    %v265 = vshrl.u32 %v264, 7
    %v266 = vsub.s32 %v263, %v265
    %v267 = vrot.slane %v245, %v266
    %v269 = vunpack.c.l.s4 1966171168
    %v270 = vunpack.c.0.s8 %v269
    %v271 = vlaneseq
    %v272 = vshrl.u32 %v271, 7
    %v273 = vsub.s32 %v270, %v272
    %v274 = vrot.slane %v246, %v273
    %v275 = vcombine.high %v253, %v253
    %v276 = vcombine.high %v260, %v260
    %v277 = vcombine.high %v267, %v267
    %v278 = vcombine.high %v274, %v274
    %v279 = vlaneseq
    %v280 = vshrl.u32 %v279, 7
    %v281 = vsub.s32 0, %v280
    %v282 = vrot.slane %v106, %v281
    %v283 = vlaneseq
    %v284 = vshrl.u32 %v283, 7
    %v285 = vsub.s32 0, %v284
    %v286 = vrot.slane %v120, %v285
    %v287 = vlaneseq
    %v288 = vshrl.u32 %v287, 7
    %v289 = vsub.s32 0, %v288
    %v290 = vrot.slane %v128, %v289
    %v291 = vlaneseq
    %v292 = vshrl.u32 %v291, 7
    %v293 = vsub.s32 0, %v292
    %v294 = vrot.slane %v130, %v293
    %v295 = vlaneseq
    %v296 = vshrl.u32 %v295, 7
    %v297 = vsub.s32 0, %v296
    %v298 = vrot.slane %v113, %v297
    %v299 = vlaneseq
    %v300 = vshrl.u32 %v299, 7
    %v301 = vsub.s32 0, %v300
    %v302 = vrot.slane %v127, %v301
    %v303 = vlaneseq
    %v304 = vshrl.u32 %v303, 7
    %v305 = vsub.s32 0, %v304
    %v306 = vrot.slane %v129, %v305
    %v307 = vlaneseq
    %v308 = vshrl.u32 %v307, 7
    %v309 = vsub.s32 0, %v308
    %v310 = vrot.slane %v131, %v309
    %v311 = vlaneseq
    %v312 = vshrl.u32 %v311, 7
    %v313 = vsub.s32 0, %v312
    %v314 = vrot.slane %v155, %v313
    %v315 = vlaneseq
    %v316 = vshrl.u32 %v315, 7
    %v317 = vsub.s32 0, %v316
    %v318 = vrot.slane %v169, %v317
    %v319 = vlaneseq
    %v320 = vshrl.u32 %v319, 7
    %v321 = vsub.s32 0, %v320
    %v322 = vrot.slane %v177, %v321
    %v323 = vlaneseq
    %v324 = vshrl.u32 %v323, 7
    %v325 = vsub.s32 0, %v324
    %v326 = vrot.slane %v179, %v325
    %v327 = vlaneseq
    %v328 = vshrl.u32 %v327, 7
    %v329 = vsub.s32 0, %v328
    %v330 = vrot.slane %v162, %v329
    %v331 = vlaneseq
    %v332 = vshrl.u32 %v331, 7
    %v333 = vsub.s32 0, %v332
    %v334 = vrot.slane %v176, %v333
    %v335 = vlaneseq
    %v336 = vshrl.u32 %v335, 7
    %v337 = vsub.s32 0, %v336
    %v338 = vrot.slane %v178, %v337
    %v339 = vlaneseq
    %v340 = vshrl.u32 %v339, 7
    %v341 = vsub.s32 0, %v340
    %v342 = vrot.slane %v180, %v341
    %v343 = vlaneseq
    %v344 = vshrl.u32 %v343, 7
    %v345 = vsub.s32 0, %v344
    %v346 = vrot.slane %v204, %v345
    %v347 = vlaneseq
    %v348 = vshrl.u32 %v347, 7
    %v349 = vsub.s32 0, %v348
    %v350 = vrot.slane %v218, %v349
    %v351 = vlaneseq
    %v352 = vshrl.u32 %v351, 7
    %v353 = vsub.s32 0, %v352
    %v354 = vrot.slane %v226, %v353
    %v355 = vlaneseq
    %v356 = vshrl.u32 %v355, 7
    %v357 = vsub.s32 0, %v356
    %v358 = vrot.slane %v228, %v357
    %v359 = vlaneseq
    %v360 = vshrl.u32 %v359, 7
    %v361 = vsub.s32 0, %v360
    %v362 = vrot.slane %v211, %v361
    %v363 = vlaneseq
    %v364 = vshrl.u32 %v363, 7
    %v365 = vsub.s32 0, %v364
    %v366 = vrot.slane %v225, %v365
    %v367 = vlaneseq
    %v368 = vshrl.u32 %v367, 7
    %v369 = vsub.s32 0, %v368
    %v370 = vrot.slane %v227, %v369
    %v371 = vlaneseq
    %v372 = vshrl.u32 %v371, 7
    %v373 = vsub.s32 0, %v372
    %v374 = vrot.slane %v229, %v373
    %v375 = vlaneseq
    %v376 = vshrl.u32 %v375, 7
    %v377 = vsub.s32 0, %v376
    %v378 = vrot.slane %v253, %v377
    %v379 = vlaneseq
    %v380 = vshrl.u32 %v379, 7
    %v381 = vsub.s32 0, %v380
    %v382 = vrot.slane %v267, %v381
    %v383 = vlaneseq
    %v384 = vshrl.u32 %v383, 7
    %v385 = vsub.s32 0, %v384
    %v386 = vrot.slane %v275, %v385
    %v387 = vlaneseq
    %v388 = vshrl.u32 %v387, 7
    %v389 = vsub.s32 0, %v388
    %v390 = vrot.slane %v277, %v389
    %v391 = vlaneseq
    %v392 = vshrl.u32 %v391, 7
    %v393 = vsub.s32 0, %v392
    %v394 = vrot.slane %v260, %v393
    %v395 = vlaneseq
    %v396 = vshrl.u32 %v395, 7
    %v397 = vsub.s32 0, %v396
    %v398 = vrot.slane %v274, %v397
    %v399 = vlaneseq
    %v400 = vshrl.u32 %v399, 7
    %v401 = vsub.s32 0, %v400
    %v402 = vrot.slane %v276, %v401
    %v403 = vlaneseq
    %v404 = vshrl.u32 %v403, 7
    %v405 = vsub.s32 0, %v404
    %v406 = vrot.slane %v278, %v405
    %v439 = vmul.f32 %v282, %v69
    %v440 = vmul.f32 %v286, %v69
    %v441 = vmul.f32 %v290, %v69
    %v442 = vmul.f32 %v294, %v69
    %v443 = vmul.f32 %v298, %v69
    %v444 = vmul.f32 %v302, %v69
    %v445 = vmul.f32 %v306, %v69
    %v446 = vmul.f32 %v310, %v69
    %v447 = vmul.f32 %v314, %v70
    %v448 = vmul.f32 %v318, %v70
    %v449 = vmul.f32 %v322, %v70
    %v450 = vmul.f32 %v326, %v70
    %v451 = vmul.f32 %v330, %v70
    %v452 = vmul.f32 %v334, %v70
    %v453 = vmul.f32 %v338, %v70
    %v454 = vmul.f32 %v342, %v70
    %v455 = vmul.f32 %v346, %v71
    %v456 = vmul.f32 %v350, %v71
    %v457 = vmul.f32 %v354, %v71
    %v458 = vmul.f32 %v358, %v71
    %v459 = vmul.f32 %v362, %v71
    %v460 = vmul.f32 %v366, %v71
    %v461 = vmul.f32 %v370, %v71
    %v462 = vmul.f32 %v374, %v71
    %v463 = vmul.f32 %v378, %v72
    %v464 = vmul.f32 %v382, %v72
    %v465 = vmul.f32 %v386, %v72
    %v466 = vmul.f32 %v390, %v72
    %v467 = vmul.f32 %v394, %v72
    %v468 = vmul.f32 %v398, %v72
    %v469 = vmul.f32 %v402, %v72
    %v470 = vmul.f32 %v406, %v72
    %v471 = vld [vmem:[%s2] sm:$0xff]
    %v472 = vld [vmem:[%s2 + $0x8] sm:$0xff]
    %v473 = vld [vmem:[%s2 + $0x10] sm:$0xff]
    %v474 = vld [vmem:[%s2 + $0x18] sm:$0xff]
    %v475 = vld [vmem:[%s2 + $0x20] sm:$0xff]
    %v476 = vld [vmem:[%s2 + $0x28] sm:$0xff]
    %v477 = vld [vmem:[%s2 + $0x30] sm:$0xff]
    %v478 = vld [vmem:[%s2 + $0x38] sm:$0xff]
    %v479 = vld [vmem:[%s2 + $0x40] sm:$0xff]
    %v480 = vld [vmem:[%s2 + $0x48] sm:$0xff]
    %v481 = vld [vmem:[%s2 + $0x50] sm:$0xff]
    %v482 = vld [vmem:[%s2 + $0x58] sm:$0xff]
    %v483 = vld [vmem:[%s2 + $0x60] sm:$0xff]
    %v484 = vld [vmem:[%s2 + $0x68] sm:$0xff]
    %v485 = vld [vmem:[%s2 + $0x70] sm:$0xff]
    %v486 = vld [vmem:[%s2 + $0x78] sm:$0xff]
    %v487 = vld [vmem:[%s2 + $0x80] sm:$0xff]
    %v488 = vld [vmem:[%s2 + $0x88] sm:$0xff]
    %v489 = vld [vmem:[%s2 + $0x90] sm:$0xff]
    %v490 = vld [vmem:[%s2 + $0x98] sm:$0xff]
    %v491 = vld [vmem:[%s2 + $0xa0] sm:$0xff]
    %v492 = vld [vmem:[%s2 + $0xa8] sm:$0xff]
    %v493 = vld [vmem:[%s2 + $0xb0] sm:$0xff]
    %v494 = vld [vmem:[%s2 + $0xb8] sm:$0xff]
    %v495 = vld [vmem:[%s2 + $0xc0] sm:$0xff]
    %v496 = vld [vmem:[%s2 + $0xc8] sm:$0xff]
    %v497 = vld [vmem:[%s2 + $0xd0] sm:$0xff]
    %v498 = vld [vmem:[%s2 + $0xd8] sm:$0xff]
    %v499 = vld [vmem:[%s2 + $0xe0] sm:$0xff]
    %v500 = vld [vmem:[%s2 + $0xe8] sm:$0xff]
    %v501 = vld [vmem:[%s2 + $0xf0] sm:$0xff]
    %v502 = vld [vmem:[%s2 + $0xf8] sm:$0xff]
    %vm503 = vcmask 261120
    %v505 = vsel %vm503, %v471, 0
    %v508 = vsel %vm503, %v472, 0
    %v511 = vsel %vm503, %v473, 0
    %v514 = vsel %vm503, %v474, 0
    %v517 = vsel %vm503, %v475, 0
    %v520 = vsel %vm503, %v476, 0
    %v523 = vsel %vm503, %v477, 0
    %v526 = vsel %vm503, %v478, 0
    %v529 = vsel %vm503, %v479, 0
    %v532 = vsel %vm503, %v480, 0
    %v535 = vsel %vm503, %v481, 0
    %v538 = vsel %vm503, %v482, 0
    %v541 = vsel %vm503, %v483, 0
    %v544 = vsel %vm503, %v484, 0
    %v547 = vsel %vm503, %v485, 0
    %v550 = vsel %vm503, %v486, 0
    %v553 = vsel %vm503, %v487, 0
    %v556 = vsel %vm503, %v488, 0
    %v559 = vsel %vm503, %v489, 0
    %v562 = vsel %vm503, %v490, 0
    %v565 = vsel %vm503, %v491, 0
    %v568 = vsel %vm503, %v492, 0
    %v571 = vsel %vm503, %v493, 0
    %v574 = vsel %vm503, %v494, 0
    %v577 = vsel %vm503, %v495, 0
    %v580 = vsel %vm503, %v496, 0
    %v583 = vsel %vm503, %v497, 0
    %v586 = vsel %vm503, %v498, 0
    %v589 = vsel %vm503, %v499, 0
    %v592 = vsel %vm503, %v500, 0
    %v595 = vsel %vm503, %v501, 0
    %v598 = vsel %vm503, %v502, 0
    %v601 = vsel %vm503, %v78, 0
    %603 = vmatprep.subr.mxu0 0.0
    %604 = vmatpush1.xpose.msra.mxu0 %v601
    %605 = vmatprep.subr.mxu0 0.0
    %606 = vmatpush1.xpose.msra.mxu0 0.0
    %607 = vmatprep.subr.mxu0 0.0
    %608 = vmatpush1.xpose.msra.mxu0 0.0
    %609 = vmatprep.subr.mxu0 0.0
    %610 = vmatpush1.xpose.msra.mxu0 0.0
    %611 = vmatprep.subr.mxu0 0.0
    %612 = vmatpush1.xpose.msra.mxu0 0.0
    %613 = vmatprep.subr.mxu0 0.0
    %614 = vmatpush1.xpose.msra.mxu0 0.0
    %615 = vmatprep.subr.mxu0 0.0
    %616 = vmatpush1.xpose.msra.mxu0 0.0
    %617 = vmatprep.subr.mxu0 0.0
    %618 = vmatpush1.xpose.msra.mxu0 0.0
    %619 = vmatprep.subr.mxu0 0.0
    %620 = vmatpush1.xpose.msra.mxu0 0.0
    %621 = vmatprep.subr.mxu0 0.0
    %622 = vmatpush1.xpose.msra.mxu0 0.0
    %623 = vmatprep.subr.mxu0 0.0
    %624 = vmatpush1.xpose.msra.mxu0 0.0
    %625 = vmatprep.subr.mxu0 0.0
    %626 = vmatpush1.xpose.msra.mxu0 0.0
    %627 = vmatprep.subr.mxu0 0.0
    %628 = vmatpush1.xpose.msra.mxu0 0.0
    %629 = vmatprep.subr.mxu0 0.0
    %630 = vmatpush1.xpose.msra.mxu0 0.0
    %631 = vmatprep.subr.mxu0 0.0
    %632 = vmatpush1.xpose.msra.mxu0 0.0
    %633 = vmatprep.subr.mxu0 0.0
    %634 = vmatpush1.xpose.msra.mxu0 0.0
    %635 = vmatprep.subr.mxu0 0.0
    %636 = vmatpush1.xpose.msra.mxu0 0.0
    %637 = vmatprep.subr.mxu0 0.0
    %638 = vmatpush1.xpose.msra.mxu0 0.0
    %639 = vmatprep.subr.mxu0 0.0
    %640 = vmatpush1.xpose.msra.mxu0 0.0
    %641 = vmatprep.subr.mxu0 0.0
    %642 = vmatpush1.xpose.msra.mxu0 0.0
    %643 = vmatprep.subr.mxu0 0.0
    %644 = vmatpush1.xpose.msra.mxu0 0.0
    %645 = vmatprep.subr.mxu0 0.0
    %646 = vmatpush1.xpose.msra.mxu0 0.0
    %647 = vmatprep.subr.mxu0 0.0
    %648 = vmatpush1.xpose.msra.mxu0 0.0
    %649 = vmatprep.subr.mxu0 0.0
    %650 = vmatpush1.xpose.msra.mxu0 0.0
    %651 = vmatprep.subr.mxu0 0.0
    %652 = vmatpush1.xpose.msra.mxu0 0.0
    %653 = vmatprep.subr.mxu0 0.0
    %654 = vmatpush1.xpose.msra.mxu0 0.0
    %655 = vmatprep.subr.mxu0 0.0
    %656 = vmatpush1.xpose.msra.mxu0 0.0
    %657 = vmatprep.subr.mxu0 0.0
    %658 = vmatpush1.xpose.msra.mxu0 0.0
    %659 = vmatprep.subr.mxu0 0.0
    %660 = vmatpush1.xpose.msra.mxu0 0.0
    %661 = vmatprep.subr.mxu0 0.0
    %662 = vmatpush1.xpose.msra.mxu0 0.0
    %663 = vmatprep.subr.mxu0 0.0
    %664 = vmatpush1.xpose.msra.mxu0 0.0
    %665 = vmatprep.subr.mxu0 0.0
    %666 = vmatpush1.xpose.msra.mxu0 0.0
    %667 = vmatprep.mubr.f32.mxu0 0.0
    %668 = vmatmul.mubr.f32.gmra.mrb[0].mxu0 %v505
    %v669 = vpop.f32.mrb[0].mxu0
    %v670 = vadd.f32 0.0, %v669
    %v671 = vpop.f32.mrb[0].mxu0
    %672 = vmatprep.mubr.f32.mxu0 0.0
    %673 = vmatmul.mubr.f32.gmra.mrb[0].mxu0 %v508
    %v674 = vpop.f32.mrb[0].mxu0
    %v675 = vadd.f32 0.0, %v674
    %v676 = vpop.f32.mrb[0].mxu0
    %677 = vmatprep.mubr.f32.mxu0 0.0
    %678 = vmatmul.mubr.f32.gmra.mrb[0].mxu0 %v511
    %v679 = vpop.f32.mrb[0].mxu0
    %v680 = vadd.f32 0.0, %v679
    %v681 = vpop.f32.mrb[0].mxu0
    %682 = vmatprep.mubr.f32.mxu0 0.0
    %683 = vmatmul.mubr.f32.gmra.mrb[0].mxu0 %v514
    %v684 = vpop.f32.mrb[0].mxu0
    %v685 = vadd.f32 0.0, %v684
    %v686 = vpop.f32.mrb[0].mxu0
    %687 = vmatprep.mubr.f32.mxu0 0.0
    %688 = vmatmul.mubr.f32.gmra.mrb[0].mxu0 %v517
    %v689 = vpop.f32.mrb[0].mxu0
    %v690 = vadd.f32 0.0, %v689
    %v691 = vpop.f32.mrb[0].mxu0
    %692 = vmatprep.mubr.f32.mxu0 0.0
    %693 = vmatmul.mubr.f32.gmra.mrb[0].mxu0 %v520
    %v694 = vpop.f32.mrb[0].mxu0
    %v695 = vadd.f32 0.0, %v694
    %v696 = vpop.f32.mrb[0].mxu0
    %697 = vmatprep.mubr.f32.mxu0 0.0
    %698 = vmatmul.mubr.f32.gmra.mrb[0].mxu0 %v523
    %v699 = vpop.f32.mrb[0].mxu0
    %v700 = vadd.f32 0.0, %v699
    %v701 = vpop.f32.mrb[0].mxu0
    %702 = vmatprep.mubr.f32.mxu0 0.0
    %703 = vmatmul.mubr.f32.gmra.mrb[0].mxu0 %v526
    %v704 = vpop.f32.mrb[0].mxu0
    %v705 = vadd.f32 0.0, %v704
    %v706 = vpop.f32.mrb[0].mxu0
    %707 = vmatprep.mubr.f32.mxu0 0.0
    %708 = vmatmul.mubr.f32.gmra.mrb[0].mxu0 %v529
    %v709 = vpop.f32.mrb[0].mxu0
    %v710 = vadd.f32 0.0, %v709
    %v711 = vpop.f32.mrb[0].mxu0
    %712 = vmatprep.mubr.f32.mxu0 0.0
    %713 = vmatmul.mubr.f32.gmra.mrb[0].mxu0 %v532
    %v714 = vpop.f32.mrb[0].mxu0
    %v715 = vadd.f32 0.0, %v714
    %v716 = vpop.f32.mrb[0].mxu0
    %717 = vmatprep.mubr.f32.mxu0 0.0
    %718 = vmatmul.mubr.f32.gmra.mrb[0].mxu0 %v535
    %v719 = vpop.f32.mrb[0].mxu0
    %v720 = vadd.f32 0.0, %v719
    %v721 = vpop.f32.mrb[0].mxu0
    %722 = vmatprep.mubr.f32.mxu0 0.0
    %723 = vmatmul.mubr.f32.gmra.mrb[0].mxu0 %v538
    %v724 = vpop.f32.mrb[0].mxu0
    %v725 = vadd.f32 0.0, %v724
    %v726 = vpop.f32.mrb[0].mxu0
    %727 = vmatprep.mubr.f32.mxu0 0.0
    %728 = vmatmul.mubr.f32.gmra.mrb[0].mxu0 %v541
    %v729 = vpop.f32.mrb[0].mxu0
    %v730 = vadd.f32 0.0, %v729
    %v731 = vpop.f32.mrb[0].mxu0
    %732 = vmatprep.mubr.f32.mxu0 0.0
    %733 = vmatmul.mubr.f32.gmra.mrb[0].mxu0 %v544
    %v734 = vpop.f32.mrb[0].mxu0
    %v735 = vadd.f32 0.0, %v734
    %v736 = vpop.f32.mrb[0].mxu0
    %737 = vmatprep.mubr.f32.mxu0 0.0
    %738 = vmatmul.mubr.f32.gmra.mrb[0].mxu0 %v547
    %v739 = vpop.f32.mrb[0].mxu0
    %v740 = vadd.f32 0.0, %v739
    %v741 = vpop.f32.mrb[0].mxu0
    %742 = vmatprep.mubr.f32.mxu0 0.0
    %743 = vmatmul.mubr.f32.gmra.mrb[0].mxu0 %v550
    %v744 = vpop.f32.mrb[0].mxu0
    %v745 = vadd.f32 0.0, %v744
    %v746 = vpop.f32.mrb[0].mxu0
    %747 = vmatprep.mubr.f32.mxu0 0.0
    %748 = vmatmul.mubr.f32.gmra.mrb[0].mxu0 %v553
    %v749 = vpop.f32.mrb[0].mxu0
    %v750 = vadd.f32 0.0, %v749
    %v751 = vpop.f32.mrb[0].mxu0
    %752 = vmatprep.mubr.f32.mxu0 0.0
    %753 = vmatmul.mubr.f32.gmra.mrb[0].mxu0 %v556
    %v754 = vpop.f32.mrb[0].mxu0
    %v755 = vadd.f32 0.0, %v754
    %v756 = vpop.f32.mrb[0].mxu0
    %757 = vmatprep.mubr.f32.mxu0 0.0
    %758 = vmatmul.mubr.f32.gmra.mrb[0].mxu0 %v559
    %v759 = vpop.f32.mrb[0].mxu0
    %v760 = vadd.f32 0.0, %v759
    %v761 = vpop.f32.mrb[0].mxu0
    %762 = vmatprep.mubr.f32.mxu0 0.0
    %763 = vmatmul.mubr.f32.gmra.mrb[0].mxu0 %v562
    %v764 = vpop.f32.mrb[0].mxu0
    %v765 = vadd.f32 0.0, %v764
    %v766 = vpop.f32.mrb[0].mxu0
    %767 = vmatprep.mubr.f32.mxu0 0.0
    %768 = vmatmul.mubr.f32.gmra.mrb[0].mxu0 %v565
    %v769 = vpop.f32.mrb[0].mxu0
    %v770 = vadd.f32 0.0, %v769
    %v771 = vpop.f32.mrb[0].mxu0
    %772 = vmatprep.mubr.f32.mxu0 0.0
    %773 = vmatmul.mubr.f32.gmra.mrb[0].mxu0 %v568
    %v774 = vpop.f32.mrb[0].mxu0
    %v775 = vadd.f32 0.0, %v774
    %v776 = vpop.f32.mrb[0].mxu0
    %777 = vmatprep.mubr.f32.mxu0 0.0
    %778 = vmatmul.mubr.f32.gmra.mrb[0].mxu0 %v571
    %v779 = vpop.f32.mrb[0].mxu0
    %v780 = vadd.f32 0.0, %v779
    %v781 = vpop.f32.mrb[0].mxu0
    %782 = vmatprep.mubr.f32.mxu0 0.0
    %783 = vmatmul.mubr.f32.gmra.mrb[0].mxu0 %v574
    %v784 = vpop.f32.mrb[0].mxu0
    %v785 = vadd.f32 0.0, %v784
    %v786 = vpop.f32.mrb[0].mxu0
    %787 = vmatprep.mubr.f32.mxu0 0.0
    %788 = vmatmul.mubr.f32.gmra.mrb[0].mxu0 %v577
    %v789 = vpop.f32.mrb[0].mxu0
    %v790 = vadd.f32 0.0, %v789
    %v791 = vpop.f32.mrb[0].mxu0
    %792 = vmatprep.mubr.f32.mxu0 0.0
    %793 = vmatmul.mubr.f32.gmra.mrb[0].mxu0 %v580
    %v794 = vpop.f32.mrb[0].mxu0
    %v795 = vadd.f32 0.0, %v794
    %v796 = vpop.f32.mrb[0].mxu0
    %797 = vmatprep.mubr.f32.mxu0 0.0
    %798 = vmatmul.mubr.f32.gmra.mrb[0].mxu0 %v583
    %v799 = vpop.f32.mrb[0].mxu0
    %v800 = vadd.f32 0.0, %v799
    %v801 = vpop.f32.mrb[0].mxu0
    %802 = vmatprep.mubr.f32.mxu0 0.0
    %803 = vmatmul.mubr.f32.gmra.mrb[0].mxu0 %v586
    %v804 = vpop.f32.mrb[0].mxu0
    %v805 = vadd.f32 0.0, %v804
    %v806 = vpop.f32.mrb[0].mxu0
    %807 = vmatprep.mubr.f32.mxu0 0.0
    %808 = vmatmul.mubr.f32.gmra.mrb[0].mxu0 %v589
    %v809 = vpop.f32.mrb[0].mxu0
    %v810 = vadd.f32 0.0, %v809
    %v811 = vpop.f32.mrb[0].mxu0
    %812 = vmatprep.mubr.f32.mxu0 0.0
    %813 = vmatmul.mubr.f32.gmra.mrb[0].mxu0 %v592
    %v814 = vpop.f32.mrb[0].mxu0
    %v815 = vadd.f32 0.0, %v814
    %v816 = vpop.f32.mrb[0].mxu0
    %817 = vmatprep.mubr.f32.mxu0 0.0
    %818 = vmatmul.mubr.f32.gmra.mrb[0].mxu0 %v595
    %v819 = vpop.f32.mrb[0].mxu0
    %v820 = vadd.f32 0.0, %v819
    %v821 = vpop.f32.mrb[0].mxu0
    %822 = vmatprep.mubr.f32.mxu0 0.0
    %823 = vmatmul.mubr.f32.gmra.mrb[0].mxu0 %v598
    %v824 = vpop.f32.mrb[0].mxu0
    %v825 = vadd.f32 0.0, %v824
    %v826 = vpop.f32.mrb[0].mxu0
    %827 = vdwg.mxu0
    %v829 = vsel %vm503, %v439, 0
    %v832 = vsel %vm503, %v440, 0
    %v835 = vsel %vm503, %v441, 0
    %v838 = vsel %vm503, %v442, 0
    %v841 = vsel %vm503, %v443, 0
    %v844 = vsel %vm503, %v444, 0
    %v847 = vsel %vm503, %v445, 0
    %v850 = vsel %vm503, %v446, 0
    %v853 = vsel %vm503, %v447, 0
    %v856 = vsel %vm503, %v448, 0
    %v859 = vsel %vm503, %v449, 0
    %v862 = vsel %vm503, %v450, 0
    %v865 = vsel %vm503, %v451, 0
    %v868 = vsel %vm503, %v452, 0
    %v871 = vsel %vm503, %v453, 0
    %v874 = vsel %vm503, %v454, 0
    %v877 = vsel %vm503, %v455, 0
    %v880 = vsel %vm503, %v456, 0
    %v883 = vsel %vm503, %v457, 0
    %v886 = vsel %vm503, %v458, 0
    %v889 = vsel %vm503, %v459, 0
    %v892 = vsel %vm503, %v460, 0
    %v895 = vsel %vm503, %v461, 0
    %v898 = vsel %vm503, %v462, 0
    %v901 = vsel %vm503, %v463, 0
    %v904 = vsel %vm503, %v464, 0
    %v907 = vsel %vm503, %v465, 0
    %v910 = vsel %vm503, %v466, 0
    %v913 = vsel %vm503, %v467, 0
    %v916 = vsel %vm503, %v468, 0
    %v919 = vsel %vm503, %v469, 0
    %v922 = vsel %vm503, %v470, 0
    %v925 = vsel %vm503, %v77, 0
    %927 = vmatprep.subr.mxu0 0.0
    %928 = vmatpush1.xpose.msra.mxu0 %v925
    %929 = vmatprep.subr.mxu0 0.0
    %930 = vmatpush1.xpose.msra.mxu0 0.0
    %931 = vmatprep.subr.mxu0 0.0
    %932 = vmatpush1.xpose.msra.mxu0 0.0
    %933 = vmatprep.subr.mxu0 0.0
    %934 = vmatpush1.xpose.msra.mxu0 0.0
    %935 = vmatprep.subr.mxu0 0.0
    %936 = vmatpush1.xpose.msra.mxu0 0.0
    %937 = vmatprep.subr.mxu0 0.0
    %938 = vmatpush1.xpose.msra.mxu0 0.0
    %939 = vmatprep.subr.mxu0 0.0
    %940 = vmatpush1.xpose.msra.mxu0 0.0
    %941 = vmatprep.subr.mxu0 0.0
    %942 = vmatpush1.xpose.msra.mxu0 0.0
    %943 = vmatprep.subr.mxu0 0.0
    %944 = vmatpush1.xpose.msra.mxu0 0.0
    %945 = vmatprep.subr.mxu0 0.0
    %946 = vmatpush1.xpose.msra.mxu0 0.0
    %947 = vmatprep.subr.mxu0 0.0
    %948 = vmatpush1.xpose.msra.mxu0 0.0
    %949 = vmatprep.subr.mxu0 0.0
    %950 = vmatpush1.xpose.msra.mxu0 0.0
    %951 = vmatprep.subr.mxu0 0.0
    %952 = vmatpush1.xpose.msra.mxu0 0.0
    %953 = vmatprep.subr.mxu0 0.0
    %954 = vmatpush1.xpose.msra.mxu0 0.0
    %955 = vmatprep.subr.mxu0 0.0
    %956 = vmatpush1.xpose.msra.mxu0 0.0
    %957 = vmatprep.subr.mxu0 0.0
    %958 = vmatpush1.xpose.msra.mxu0 0.0
    %959 = vmatprep.subr.mxu0 0.0
    %960 = vmatpush1.xpose.msra.mxu0 0.0
    %961 = vmatprep.subr.mxu0 0.0
    %962 = vmatpush1.xpose.msra.mxu0 0.0
    %963 = vmatprep.subr.mxu0 0.0
    %964 = vmatpush1.xpose.msra.mxu0 0.0
    %965 = vmatprep.subr.mxu0 0.0
    %966 = vmatpush1.xpose.msra.mxu0 0.0
    %967 = vmatprep.subr.mxu0 0.0
    %968 = vmatpush1.xpose.msra.mxu0 0.0
    %969 = vmatprep.subr.mxu0 0.0
    %970 = vmatpush1.xpose.msra.mxu0 0.0
    %971 = vmatprep.subr.mxu0 0.0
    %972 = vmatpush1.xpose.msra.mxu0 0.0
    %973 = vmatprep.subr.mxu0 0.0
    %974 = vmatpush1.xpose.msra.mxu0 0.0
    %975 = vmatprep.subr.mxu0 0.0
    %976 = vmatpush1.xpose.msra.mxu0 0.0
    %977 = vmatprep.subr.mxu0 0.0
    %978 = vmatpush1.xpose.msra.mxu0 0.0
    %979 = vmatprep.subr.mxu0 0.0
    %980 = vmatpush1.xpose.msra.mxu0 0.0
    %981 = vmatprep.subr.mxu0 0.0
    %982 = vmatpush1.xpose.msra.mxu0 0.0
    %983 = vmatprep.subr.mxu0 0.0
    %984 = vmatpush1.xpose.msra.mxu0 0.0
    %985 = vmatprep.subr.mxu0 0.0
    %986 = vmatpush1.xpose.msra.mxu0 0.0
    %987 = vmatprep.subr.mxu0 0.0
    %988 = vmatpush1.xpose.msra.mxu0 0.0
    %989 = vmatprep.subr.mxu0 0.0
    %990 = vmatpush1.xpose.msra.mxu0 0.0
    %991 = vmatprep.mubr.f32.mxu0 0.0
    %992 = vmatmul.mubr.f32.gmra.mrb[0].mxu0 %v829
    %v993 = vpop.f32.mrb[0].mxu0
    %v994 = vadd.f32 %v670, %v993
    %v995 = vpop.f32.mrb[0].mxu0
    %996 = vmatprep.mubr.f32.mxu0 0.0
    %997 = vmatmul.mubr.f32.gmra.mrb[0].mxu0 %v832
    %v998 = vpop.f32.mrb[0].mxu0
    %v999 = vadd.f32 %v675, %v998
    %v1000 = vpop.f32.mrb[0].mxu0
    %1001 = vmatprep.mubr.f32.mxu0 0.0
    %1002 = vmatmul.mubr.f32.gmra.mrb[0].mxu0 %v835
    %v1003 = vpop.f32.mrb[0].mxu0
    %v1004 = vadd.f32 %v680, %v1003
    %v1005 = vpop.f32.mrb[0].mxu0
    %1006 = vmatprep.mubr.f32.mxu0 0.0
    %1007 = vmatmul.mubr.f32.gmra.mrb[0].mxu0 %v838
    %v1008 = vpop.f32.mrb[0].mxu0
    %v1009 = vadd.f32 %v685, %v1008
    %v1010 = vpop.f32.mrb[0].mxu0
    %1011 = vmatprep.mubr.f32.mxu0 0.0
    %1012 = vmatmul.mubr.f32.gmra.mrb[0].mxu0 %v841
    %v1013 = vpop.f32.mrb[0].mxu0
    %v1014 = vadd.f32 %v690, %v1013
    %v1015 = vpop.f32.mrb[0].mxu0
    %1016 = vmatprep.mubr.f32.mxu0 0.0
    %1017 = vmatmul.mubr.f32.gmra.mrb[0].mxu0 %v844
    %v1018 = vpop.f32.mrb[0].mxu0
    %v1019 = vadd.f32 %v695, %v1018
    %v1020 = vpop.f32.mrb[0].mxu0
    %1021 = vmatprep.mubr.f32.mxu0 0.0
    %1022 = vmatmul.mubr.f32.gmra.mrb[0].mxu0 %v847
    %v1023 = vpop.f32.mrb[0].mxu0
    %v1024 = vadd.f32 %v700, %v1023
    %v1025 = vpop.f32.mrb[0].mxu0
    %1026 = vmatprep.mubr.f32.mxu0 0.0
    %1027 = vmatmul.mubr.f32.gmra.mrb[0].mxu0 %v850
    %v1028 = vpop.f32.mrb[0].mxu0
    %v1029 = vadd.f32 %v705, %v1028
    %v1030 = vpop.f32.mrb[0].mxu0
    %1031 = vmatprep.mubr.f32.mxu0 0.0
    %1032 = vmatmul.mubr.f32.gmra.mrb[0].mxu0 %v853
    %v1033 = vpop.f32.mrb[0].mxu0
    %v1034 = vadd.f32 %v710, %v1033
    %v1035 = vpop.f32.mrb[0].mxu0
    %1036 = vmatprep.mubr.f32.mxu0 0.0
    %1037 = vmatmul.mubr.f32.gmra.mrb[0].mxu0 %v856
    %v1038 = vpop.f32.mrb[0].mxu0
    %v1039 = vadd.f32 %v715, %v1038
    %v1040 = vpop.f32.mrb[0].mxu0
    %1041 = vmatprep.mubr.f32.mxu0 0.0
    %1042 = vmatmul.mubr.f32.gmra.mrb[0].mxu0 %v859
    %v1043 = vpop.f32.mrb[0].mxu0
    %v1044 = vadd.f32 %v720, %v1043
    %v1045 = vpop.f32.mrb[0].mxu0
    %1046 = vmatprep.mubr.f32.mxu0 0.0
    %1047 = vmatmul.mubr.f32.gmra.mrb[0].mxu0 %v862
    %v1048 = vpop.f32.mrb[0].mxu0
    %v1049 = vadd.f32 %v725, %v1048
    %v1050 = vpop.f32.mrb[0].mxu0
    %1051 = vmatprep.mubr.f32.mxu0 0.0
    %1052 = vmatmul.mubr.f32.gmra.mrb[0].mxu0 %v865
    %v1053 = vpop.f32.mrb[0].mxu0
    %v1054 = vadd.f32 %v730, %v1053
    %v1055 = vpop.f32.mrb[0].mxu0
    %1056 = vmatprep.mubr.f32.mxu0 0.0
    %1057 = vmatmul.mubr.f32.gmra.mrb[0].mxu0 %v868
    %v1058 = vpop.f32.mrb[0].mxu0
    %v1059 = vadd.f32 %v735, %v1058
    %v1060 = vpop.f32.mrb[0].mxu0
    %1061 = vmatprep.mubr.f32.mxu0 0.0
    %1062 = vmatmul.mubr.f32.gmra.mrb[0].mxu0 %v871
    %v1063 = vpop.f32.mrb[0].mxu0
    %v1064 = vadd.f32 %v740, %v1063
    %v1065 = vpop.f32.mrb[0].mxu0
    %1066 = vmatprep.mubr.f32.mxu0 0.0
    %1067 = vmatmul.mubr.f32.gmra.mrb[0].mxu0 %v874
    %v1068 = vpop.f32.mrb[0].mxu0
    %v1069 = vadd.f32 %v745, %v1068
    %v1070 = vpop.f32.mrb[0].mxu0
    %1071 = vmatprep.mubr.f32.mxu0 0.0
    %1072 = vmatmul.mubr.f32.gmra.mrb[0].mxu0 %v877
    %v1073 = vpop.f32.mrb[0].mxu0
    %v1074 = vadd.f32 %v750, %v1073
    %v1075 = vpop.f32.mrb[0].mxu0
    %1076 = vmatprep.mubr.f32.mxu0 0.0
    %1077 = vmatmul.mubr.f32.gmra.mrb[0].mxu0 %v880
    %v1078 = vpop.f32.mrb[0].mxu0
    %v1079 = vadd.f32 %v755, %v1078
    %v1080 = vpop.f32.mrb[0].mxu0
    %1081 = vmatprep.mubr.f32.mxu0 0.0
    %1082 = vmatmul.mubr.f32.gmra.mrb[0].mxu0 %v883
    %v1083 = vpop.f32.mrb[0].mxu0
    %v1084 = vadd.f32 %v760, %v1083
    %v1085 = vpop.f32.mrb[0].mxu0
    %1086 = vmatprep.mubr.f32.mxu0 0.0
    %1087 = vmatmul.mubr.f32.gmra.mrb[0].mxu0 %v886
    %v1088 = vpop.f32.mrb[0].mxu0
    %v1089 = vadd.f32 %v765, %v1088
    %v1090 = vpop.f32.mrb[0].mxu0
    %1091 = vmatprep.mubr.f32.mxu0 0.0
    %1092 = vmatmul.mubr.f32.gmra.mrb[0].mxu0 %v889
    %v1093 = vpop.f32.mrb[0].mxu0
    %v1094 = vadd.f32 %v770, %v1093
    %v1095 = vpop.f32.mrb[0].mxu0
    %1096 = vmatprep.mubr.f32.mxu0 0.0
    %1097 = vmatmul.mubr.f32.gmra.mrb[0].mxu0 %v892
    %v1098 = vpop.f32.mrb[0].mxu0
    %v1099 = vadd.f32 %v775, %v1098
    %v1100 = vpop.f32.mrb[0].mxu0
    %1101 = vmatprep.mubr.f32.mxu0 0.0
    %1102 = vmatmul.mubr.f32.gmra.mrb[0].mxu0 %v895
    %v1103 = vpop.f32.mrb[0].mxu0
    %v1104 = vadd.f32 %v780, %v1103
    %v1105 = vpop.f32.mrb[0].mxu0
    %1106 = vmatprep.mubr.f32.mxu0 0.0
    %1107 = vmatmul.mubr.f32.gmra.mrb[0].mxu0 %v898
    %v1108 = vpop.f32.mrb[0].mxu0
    %v1109 = vadd.f32 %v785, %v1108
    %v1110 = vpop.f32.mrb[0].mxu0
    %1111 = vmatprep.mubr.f32.mxu0 0.0
    %1112 = vmatmul.mubr.f32.gmra.mrb[0].mxu0 %v901
    %v1113 = vpop.f32.mrb[0].mxu0
    %v1114 = vadd.f32 %v790, %v1113
    %v1115 = vpop.f32.mrb[0].mxu0
    %1116 = vmatprep.mubr.f32.mxu0 0.0
    %1117 = vmatmul.mubr.f32.gmra.mrb[0].mxu0 %v904
    %v1118 = vpop.f32.mrb[0].mxu0
    %v1119 = vadd.f32 %v795, %v1118
    %v1120 = vpop.f32.mrb[0].mxu0
    %1121 = vmatprep.mubr.f32.mxu0 0.0
    %1122 = vmatmul.mubr.f32.gmra.mrb[0].mxu0 %v907
    %v1123 = vpop.f32.mrb[0].mxu0
    %v1124 = vadd.f32 %v800, %v1123
    %v1125 = vpop.f32.mrb[0].mxu0
    %1126 = vmatprep.mubr.f32.mxu0 0.0
    %1127 = vmatmul.mubr.f32.gmra.mrb[0].mxu0 %v910
    %v1128 = vpop.f32.mrb[0].mxu0
    %v1129 = vadd.f32 %v805, %v1128
    %v1130 = vpop.f32.mrb[0].mxu0
    %1131 = vmatprep.mubr.f32.mxu0 0.0
    %1132 = vmatmul.mubr.f32.gmra.mrb[0].mxu0 %v913
    %v1133 = vpop.f32.mrb[0].mxu0
    %v1134 = vadd.f32 %v810, %v1133
    %v1135 = vpop.f32.mrb[0].mxu0
    %1136 = vmatprep.mubr.f32.mxu0 0.0
    %1137 = vmatmul.mubr.f32.gmra.mrb[0].mxu0 %v916
    %v1138 = vpop.f32.mrb[0].mxu0
    %v1139 = vadd.f32 %v815, %v1138
    %v1140 = vpop.f32.mrb[0].mxu0
    %1141 = vmatprep.mubr.f32.mxu0 0.0
    %1142 = vmatmul.mubr.f32.gmra.mrb[0].mxu0 %v919
    %v1143 = vpop.f32.mrb[0].mxu0
    %v1144 = vadd.f32 %v820, %v1143
    %v1145 = vpop.f32.mrb[0].mxu0
    %1146 = vmatprep.mubr.f32.mxu0 0.0
    %1147 = vmatmul.mubr.f32.gmra.mrb[0].mxu0 %v922
    %v1148 = vpop.f32.mrb[0].mxu0
    %v1149 = vadd.f32 %v825, %v1148
    %v1150 = vpop.f32.mrb[0].mxu0
    %1151 = vdwg.mxu0
    %vm1152 = vcmp.gt.f32.partialorder %v994, 0.0
    %vm1153 = vcmp.gt.f32.partialorder %v999, 0.0
    %vm1154 = vcmp.gt.f32.partialorder %v1004, 0.0
    %vm1155 = vcmp.gt.f32.partialorder %v1009, 0.0
    %vm1156 = vcmp.gt.f32.partialorder %v1014, 0.0
    %vm1157 = vcmp.gt.f32.partialorder %v1019, 0.0
    %vm1158 = vcmp.gt.f32.partialorder %v1024, 0.0
    %vm1159 = vcmp.gt.f32.partialorder %v1029, 0.0
    %vm1160 = vcmp.gt.f32.partialorder %v1034, 0.0
    %vm1161 = vcmp.gt.f32.partialorder %v1039, 0.0
    %vm1162 = vcmp.gt.f32.partialorder %v1044, 0.0
    %vm1163 = vcmp.gt.f32.partialorder %v1049, 0.0
    %vm1164 = vcmp.gt.f32.partialorder %v1054, 0.0
    %vm1165 = vcmp.gt.f32.partialorder %v1059, 0.0
    %vm1166 = vcmp.gt.f32.partialorder %v1064, 0.0
    %vm1167 = vcmp.gt.f32.partialorder %v1069, 0.0
    %vm1168 = vcmp.gt.f32.partialorder %v1074, 0.0
    %vm1169 = vcmp.gt.f32.partialorder %v1079, 0.0
    %vm1170 = vcmp.gt.f32.partialorder %v1084, 0.0
    %vm1171 = vcmp.gt.f32.partialorder %v1089, 0.0
    %vm1172 = vcmp.gt.f32.partialorder %v1094, 0.0
    %vm1173 = vcmp.gt.f32.partialorder %v1099, 0.0
    %vm1174 = vcmp.gt.f32.partialorder %v1104, 0.0
    %vm1175 = vcmp.gt.f32.partialorder %v1109, 0.0
    %vm1176 = vcmp.gt.f32.partialorder %v1114, 0.0
    %vm1177 = vcmp.gt.f32.partialorder %v1119, 0.0
    %vm1178 = vcmp.gt.f32.partialorder %v1124, 0.0
    %vm1179 = vcmp.gt.f32.partialorder %v1129, 0.0
    %vm1180 = vcmp.gt.f32.partialorder %v1134, 0.0
    %vm1181 = vcmp.gt.f32.partialorder %v1139, 0.0
    %vm1182 = vcmp.gt.f32.partialorder %v1144, 0.0
    %vm1183 = vcmp.gt.f32.partialorder %v1149, 0.0
    %v1184 = vmul.f32 %v994, 0.2
    %v1185 = vmul.f32 %v999, 0.2
    %v1186 = vmul.f32 %v1004, 0.2
    %v1187 = vmul.f32 %v1009, 0.2
    %v1188 = vmul.f32 %v1014, 0.2
    %v1189 = vmul.f32 %v1019, 0.2
    %v1190 = vmul.f32 %v1024, 0.2
    %v1191 = vmul.f32 %v1029, 0.2
    %v1192 = vmul.f32 %v1034, 0.2
    %v1193 = vmul.f32 %v1039, 0.2
    %v1194 = vmul.f32 %v1044, 0.2
    %v1195 = vmul.f32 %v1049, 0.2
    %v1196 = vmul.f32 %v1054, 0.2
    %v1197 = vmul.f32 %v1059, 0.2
    %v1198 = vmul.f32 %v1064, 0.2
    %v1199 = vmul.f32 %v1069, 0.2
    %v1200 = vmul.f32 %v1074, 0.2
    %v1201 = vmul.f32 %v1079, 0.2
    %v1202 = vmul.f32 %v1084, 0.2
    %v1203 = vmul.f32 %v1089, 0.2
    %v1204 = vmul.f32 %v1094, 0.2
    %v1205 = vmul.f32 %v1099, 0.2
    %v1206 = vmul.f32 %v1104, 0.2
    %v1207 = vmul.f32 %v1109, 0.2
    %v1208 = vmul.f32 %v1114, 0.2
    %v1209 = vmul.f32 %v1119, 0.2
    %v1210 = vmul.f32 %v1124, 0.2
    %v1211 = vmul.f32 %v1129, 0.2
    %v1212 = vmul.f32 %v1134, 0.2
    %v1213 = vmul.f32 %v1139, 0.2
    %v1214 = vmul.f32 %v1144, 0.2
    %v1215 = vmul.f32 %v1149, 0.2
    %v1216 = vsel %vm1152, %v994, %v1184
    %v1217 = vsel %vm1153, %v999, %v1185
    %v1218 = vsel %vm1154, %v1004, %v1186
    %v1219 = vsel %vm1155, %v1009, %v1187
    %v1220 = vsel %vm1156, %v1014, %v1188
    %v1221 = vsel %vm1157, %v1019, %v1189
    %v1222 = vsel %vm1158, %v1024, %v1190
    %v1223 = vsel %vm1159, %v1029, %v1191
    %v1224 = vsel %vm1160, %v1034, %v1192
    %v1225 = vsel %vm1161, %v1039, %v1193
    %v1226 = vsel %vm1162, %v1044, %v1194
    %v1227 = vsel %vm1163, %v1049, %v1195
    %v1228 = vsel %vm1164, %v1054, %v1196
    %v1229 = vsel %vm1165, %v1059, %v1197
    %v1230 = vsel %vm1166, %v1064, %v1198
    %v1231 = vsel %vm1167, %v1069, %v1199
    %v1232 = vsel %vm1168, %v1074, %v1200
    %v1233 = vsel %vm1169, %v1079, %v1201
    %v1234 = vsel %vm1170, %v1084, %v1202
    %v1235 = vsel %vm1171, %v1089, %v1203
    %v1236 = vsel %vm1172, %v1094, %v1204
    %v1237 = vsel %vm1173, %v1099, %v1205
    %v1238 = vsel %vm1174, %v1104, %v1206
    %v1239 = vsel %vm1175, %v1109, %v1207
    %v1240 = vsel %vm1176, %v1114, %v1208
    %v1241 = vsel %vm1177, %v1119, %v1209
    %v1242 = vsel %vm1178, %v1124, %v1210
    %v1243 = vsel %vm1179, %v1129, %v1211
    %v1244 = vsel %vm1180, %v1134, %v1212
    %v1245 = vsel %vm1181, %v1139, %v1213
    %v1246 = vsel %vm1182, %v1144, %v1214
    %v1247 = vsel %vm1183, %v1149, %v1215
    %v1248 = vlaneseq
    %v1249 = vand.u32 %v1248, 127
    %v1250 = vadd.s32 %v1249, 1
    %v1251 = vlaneseq
    %v1252 = vshrl.u32 %v1251, 7
    %v1253 = vsub.s32 0, %v1252
    %v1254 = vrot.slane %v73, %v1253
    %1256 = vbcast.lane.b32.xlu0 %v1254, 256
    %v1257 = vpop.permute.xlu0 %1256
    %v1258 = vlaneseq
    %v1259 = vshrl.u32 %v1258, 7
    %v1260 = vsub.s32 1, %v1259
    %v1261 = vrot.slane %v73, %v1260
    %1263 = vbcast.lane.b32.xlu0 %v1261, 256
    %v1264 = vpop.permute.xlu0 %1263
    %v1265 = vlaneseq
    %v1266 = vshrl.u32 %v1265, 7
    %v1267 = vsub.s32 2, %v1266
    %v1268 = vrot.slane %v73, %v1267
    %1270 = vbcast.lane.b32.xlu0 %v1268, 256
    %v1271 = vpop.permute.xlu0 %1270
    %v1272 = vlaneseq
    %v1273 = vshrl.u32 %v1272, 7
    %v1274 = vsub.s32 3, %v1273
    %v1275 = vrot.slane %v73, %v1274
    %1277 = vbcast.lane.b32.xlu0 %v1275, 256
    %v1278 = vpop.permute.xlu0 %1277
    %v1279 = vlaneseq
    %v1280 = vshrl.u32 %v1279, 7
    %v1281 = vsub.s32 4, %v1280
    %v1282 = vrot.slane %v73, %v1281
    %1284 = vbcast.lane.b32.xlu0 %v1282, 256
    %v1285 = vpop.permute.xlu0 %1284
    %v1286 = vlaneseq
    %v1287 = vshrl.u32 %v1286, 7
    %v1288 = vsub.s32 5, %v1287
    %v1289 = vrot.slane %v73, %v1288
    %1291 = vbcast.lane.b32.xlu0 %v1289, 256
    %v1292 = vpop.permute.xlu0 %1291
    %v1293 = vlaneseq
    %v1294 = vshrl.u32 %v1293, 7
    %v1295 = vsub.s32 6, %v1294
    %v1296 = vrot.slane %v73, %v1295
    %1298 = vbcast.lane.b32.xlu0 %v1296, 256
    %v1299 = vpop.permute.xlu0 %1298
    %v1300 = vlaneseq
    %v1301 = vshrl.u32 %v1300, 7
    %v1302 = vsub.s32 7, %v1301
    %v1303 = vrot.slane %v73, %v1302
    %1305 = vbcast.lane.b32.xlu0 %v1303, 256
    %v1306 = vpop.permute.xlu0 %1305
    %v1307 = vlaneseq
    %v1308 = vshrl.u32 %v1307, 7
    %v1309 = vsub.s32 0, %v1308
    %v1310 = vrot.slane %v74, %v1309
    %1312 = vbcast.lane.b32.xlu0 %v1310, 256
    %v1313 = vpop.permute.xlu0 %1312
    %v1314 = vlaneseq
    %v1315 = vshrl.u32 %v1314, 7
    %v1316 = vsub.s32 1, %v1315
    %v1317 = vrot.slane %v74, %v1316
    %1319 = vbcast.lane.b32.xlu0 %v1317, 256
    %v1320 = vpop.permute.xlu0 %1319
    %v1321 = vlaneseq
    %v1322 = vshrl.u32 %v1321, 7
    %v1323 = vsub.s32 2, %v1322
    %v1324 = vrot.slane %v74, %v1323
    %1326 = vbcast.lane.b32.xlu0 %v1324, 256
    %v1327 = vpop.permute.xlu0 %1326
    %v1328 = vlaneseq
    %v1329 = vshrl.u32 %v1328, 7
    %v1330 = vsub.s32 3, %v1329
    %v1331 = vrot.slane %v74, %v1330
    %1333 = vbcast.lane.b32.xlu0 %v1331, 256
    %v1334 = vpop.permute.xlu0 %1333
    %v1335 = vlaneseq
    %v1336 = vshrl.u32 %v1335, 7
    %v1337 = vsub.s32 4, %v1336
    %v1338 = vrot.slane %v74, %v1337
    %1340 = vbcast.lane.b32.xlu0 %v1338, 256
    %v1341 = vpop.permute.xlu0 %1340
    %v1342 = vlaneseq
    %v1343 = vshrl.u32 %v1342, 7
    %v1344 = vsub.s32 5, %v1343
    %v1345 = vrot.slane %v74, %v1344
    %1347 = vbcast.lane.b32.xlu0 %v1345, 256
    %v1348 = vpop.permute.xlu0 %1347
    %v1349 = vlaneseq
    %v1350 = vshrl.u32 %v1349, 7
    %v1351 = vsub.s32 6, %v1350
    %v1352 = vrot.slane %v74, %v1351
    %1354 = vbcast.lane.b32.xlu0 %v1352, 256
    %v1355 = vpop.permute.xlu0 %1354
    %v1356 = vlaneseq
    %v1357 = vshrl.u32 %v1356, 7
    %v1358 = vsub.s32 7, %v1357
    %v1359 = vrot.slane %v74, %v1358
    %1361 = vbcast.lane.b32.xlu0 %v1359, 256
    %v1362 = vpop.permute.xlu0 %1361
    %v1363 = vlaneseq
    %v1364 = vshrl.u32 %v1363, 7
    %v1365 = vsub.s32 0, %v1364
    %v1366 = vrot.slane %v75, %v1365
    %1368 = vbcast.lane.b32.xlu0 %v1366, 256
    %v1369 = vpop.permute.xlu0 %1368
    %v1370 = vlaneseq
    %v1371 = vshrl.u32 %v1370, 7
    %v1372 = vsub.s32 1, %v1371
    %v1373 = vrot.slane %v75, %v1372
    %1375 = vbcast.lane.b32.xlu0 %v1373, 256
    %v1376 = vpop.permute.xlu0 %1375
    %v1377 = vlaneseq
    %v1378 = vshrl.u32 %v1377, 7
    %v1379 = vsub.s32 2, %v1378
    %v1380 = vrot.slane %v75, %v1379
    %1382 = vbcast.lane.b32.xlu0 %v1380, 256
    %v1383 = vpop.permute.xlu0 %1382
    %v1384 = vlaneseq
    %v1385 = vshrl.u32 %v1384, 7
    %v1386 = vsub.s32 3, %v1385
    %v1387 = vrot.slane %v75, %v1386
    %1389 = vbcast.lane.b32.xlu0 %v1387, 256
    %v1390 = vpop.permute.xlu0 %1389
    %v1391 = vlaneseq
    %v1392 = vshrl.u32 %v1391, 7
    %v1393 = vsub.s32 4, %v1392
    %v1394 = vrot.slane %v75, %v1393
    %1396 = vbcast.lane.b32.xlu0 %v1394, 256
    %v1397 = vpop.permute.xlu0 %1396
    %v1398 = vlaneseq
    %v1399 = vshrl.u32 %v1398, 7
    %v1400 = vsub.s32 5, %v1399
    %v1401 = vrot.slane %v75, %v1400
    %1403 = vbcast.lane.b32.xlu0 %v1401, 256
    %v1404 = vpop.permute.xlu0 %1403
    %v1405 = vlaneseq
    %v1406 = vshrl.u32 %v1405, 7
    %v1407 = vsub.s32 6, %v1406
    %v1408 = vrot.slane %v75, %v1407
    %1410 = vbcast.lane.b32.xlu0 %v1408, 256
    %v1411 = vpop.permute.xlu0 %1410
    %v1412 = vlaneseq
    %v1413 = vshrl.u32 %v1412, 7
    %v1414 = vsub.s32 7, %v1413
    %v1415 = vrot.slane %v75, %v1414
    %1417 = vbcast.lane.b32.xlu0 %v1415, 256
    %v1418 = vpop.permute.xlu0 %1417
    %v1419 = vlaneseq
    %v1420 = vshrl.u32 %v1419, 7
    %v1421 = vsub.s32 0, %v1420
    %v1422 = vrot.slane %v76, %v1421
    %1424 = vbcast.lane.b32.xlu0 %v1422, 256
    %v1425 = vpop.permute.xlu0 %1424
    %v1426 = vlaneseq
    %v1427 = vshrl.u32 %v1426, 7
    %v1428 = vsub.s32 1, %v1427
    %v1429 = vrot.slane %v76, %v1428
    %1431 = vbcast.lane.b32.xlu0 %v1429, 256
    %v1432 = vpop.permute.xlu0 %1431
    %v1433 = vlaneseq
    %v1434 = vshrl.u32 %v1433, 7
    %v1435 = vsub.s32 2, %v1434
    %v1436 = vrot.slane %v76, %v1435
    %1438 = vbcast.lane.b32.xlu0 %v1436, 256
    %v1439 = vpop.permute.xlu0 %1438
    %v1440 = vlaneseq
    %v1441 = vshrl.u32 %v1440, 7
    %v1442 = vsub.s32 3, %v1441
    %v1443 = vrot.slane %v76, %v1442
    %1445 = vbcast.lane.b32.xlu0 %v1443, 256
    %v1446 = vpop.permute.xlu0 %1445
    %v1447 = vlaneseq
    %v1448 = vshrl.u32 %v1447, 7
    %v1449 = vsub.s32 4, %v1448
    %v1450 = vrot.slane %v76, %v1449
    %1452 = vbcast.lane.b32.xlu0 %v1450, 256
    %v1453 = vpop.permute.xlu0 %1452
    %v1454 = vlaneseq
    %v1455 = vshrl.u32 %v1454, 7
    %v1456 = vsub.s32 5, %v1455
    %v1457 = vrot.slane %v76, %v1456
    %1459 = vbcast.lane.b32.xlu0 %v1457, 256
    %v1460 = vpop.permute.xlu0 %1459
    %v1461 = vlaneseq
    %v1462 = vshrl.u32 %v1461, 7
    %v1463 = vsub.s32 6, %v1462
    %v1464 = vrot.slane %v76, %v1463
    %1466 = vbcast.lane.b32.xlu0 %v1464, 256
    %v1467 = vpop.permute.xlu0 %1466
    %v1468 = vlaneseq
    %v1469 = vshrl.u32 %v1468, 7
    %v1470 = vsub.s32 7, %v1469
    %v1471 = vrot.slane %v76, %v1470
    %1473 = vbcast.lane.b32.xlu0 %v1471, 256
    %v1474 = vpop.permute.xlu0 %1473
    %vm1475 = vcmp.eq.s32.totalorder %v1257, %v1250
    %vm1476 = vcmp.eq.s32.totalorder %v1264, %v1250
    %vm1477 = vcmp.eq.s32.totalorder %v1271, %v1250
    %vm1478 = vcmp.eq.s32.totalorder %v1278, %v1250
    %vm1479 = vcmp.eq.s32.totalorder %v1285, %v1250
    %vm1480 = vcmp.eq.s32.totalorder %v1292, %v1250
    %vm1481 = vcmp.eq.s32.totalorder %v1299, %v1250
    %vm1482 = vcmp.eq.s32.totalorder %v1306, %v1250
    %vm1483 = vcmp.eq.s32.totalorder %v1313, %v1250
    %vm1484 = vcmp.eq.s32.totalorder %v1320, %v1250
    %vm1485 = vcmp.eq.s32.totalorder %v1327, %v1250
    %vm1486 = vcmp.eq.s32.totalorder %v1334, %v1250
    %vm1487 = vcmp.eq.s32.totalorder %v1341, %v1250
    %vm1488 = vcmp.eq.s32.totalorder %v1348, %v1250
    %vm1489 = vcmp.eq.s32.totalorder %v1355, %v1250
    %vm1490 = vcmp.eq.s32.totalorder %v1362, %v1250
    %vm1491 = vcmp.eq.s32.totalorder %v1369, %v1250
    %vm1492 = vcmp.eq.s32.totalorder %v1376, %v1250
    %vm1493 = vcmp.eq.s32.totalorder %v1383, %v1250
    %vm1494 = vcmp.eq.s32.totalorder %v1390, %v1250
    %vm1495 = vcmp.eq.s32.totalorder %v1397, %v1250
    %vm1496 = vcmp.eq.s32.totalorder %v1404, %v1250
    %vm1497 = vcmp.eq.s32.totalorder %v1411, %v1250
    %vm1498 = vcmp.eq.s32.totalorder %v1418, %v1250
    %vm1499 = vcmp.eq.s32.totalorder %v1425, %v1250
    %vm1500 = vcmp.eq.s32.totalorder %v1432, %v1250
    %vm1501 = vcmp.eq.s32.totalorder %v1439, %v1250
    %vm1502 = vcmp.eq.s32.totalorder %v1446, %v1250
    %vm1503 = vcmp.eq.s32.totalorder %v1453, %v1250
    %vm1504 = vcmp.eq.s32.totalorder %v1460, %v1250
    %vm1505 = vcmp.eq.s32.totalorder %v1467, %v1250
    %vm1506 = vcmp.eq.s32.totalorder %v1474, %v1250
    %v1507 = vsel %vm1475, %v1216, 0.0
    %v1508 = vsel %vm1476, %v1217, 0.0
    %v1509 = vsel %vm1477, %v1218, 0.0
    %v1510 = vsel %vm1478, %v1219, 0.0
    %v1511 = vsel %vm1479, %v1220, 0.0
    %v1512 = vsel %vm1480, %v1221, 0.0
    %v1513 = vsel %vm1481, %v1222, 0.0
    %v1514 = vsel %vm1482, %v1223, 0.0
    %v1515 = vsel %vm1483, %v1224, 0.0
    %v1516 = vsel %vm1484, %v1225, 0.0
    %v1517 = vsel %vm1485, %v1226, 0.0
    %v1518 = vsel %vm1486, %v1227, 0.0
    %v1519 = vsel %vm1487, %v1228, 0.0
    %v1520 = vsel %vm1488, %v1229, 0.0
    %v1521 = vsel %vm1489, %v1230, 0.0
    %v1522 = vsel %vm1490, %v1231, 0.0
    %v1523 = vsel %vm1491, %v1232, 0.0
    %v1524 = vsel %vm1492, %v1233, 0.0
    %v1525 = vsel %vm1493, %v1234, 0.0
    %v1526 = vsel %vm1494, %v1235, 0.0
    %v1527 = vsel %vm1495, %v1236, 0.0
    %v1528 = vsel %vm1496, %v1237, 0.0
    %v1529 = vsel %vm1497, %v1238, 0.0
    %v1530 = vsel %vm1498, %v1239, 0.0
    %v1531 = vsel %vm1499, %v1240, 0.0
    %v1532 = vsel %vm1500, %v1241, 0.0
    %v1533 = vsel %vm1501, %v1242, 0.0
    %v1534 = vsel %vm1502, %v1243, 0.0
    %v1535 = vsel %vm1503, %v1244, 0.0
    %v1536 = vsel %vm1504, %v1245, 0.0
    %v1537 = vsel %vm1505, %v1246, 0.0
    %v1538 = vsel %vm1506, %v1247, 0.0
    %vm1539 = vcmask 39936
    %v1540 = vsel %vm1539, %v1507, 0.0
    %1541 = vadd.xlane.f32.xlu0 %v1540
    %v1542 = vpop.xlane.xlu0 %1541
    %v1543 = vsel %vm1539, %v1508, 0.0
    %1544 = vadd.xlane.f32.xlu0 %v1543
    %v1545 = vpop.xlane.xlu0 %1544
    %v1546 = vsel %vm1539, %v1509, 0.0
    %1547 = vadd.xlane.f32.xlu0 %v1546
    %v1548 = vpop.xlane.xlu0 %1547
    %v1549 = vsel %vm1539, %v1510, 0.0
    %1550 = vadd.xlane.f32.xlu0 %v1549
    %v1551 = vpop.xlane.xlu0 %1550
    %v1552 = vsel %vm1539, %v1511, 0.0
    %1553 = vadd.xlane.f32.xlu0 %v1552
    %v1554 = vpop.xlane.xlu0 %1553
    %v1555 = vsel %vm1539, %v1512, 0.0
    %1556 = vadd.xlane.f32.xlu0 %v1555
    %v1557 = vpop.xlane.xlu0 %1556
    %v1558 = vsel %vm1539, %v1513, 0.0
    %1559 = vadd.xlane.f32.xlu0 %v1558
    %v1560 = vpop.xlane.xlu0 %1559
    %v1561 = vsel %vm1539, %v1514, 0.0
    %1562 = vadd.xlane.f32.xlu0 %v1561
    %v1563 = vpop.xlane.xlu0 %1562
    %v1564 = vsel %vm1539, %v1515, 0.0
    %1565 = vadd.xlane.f32.xlu0 %v1564
    %v1566 = vpop.xlane.xlu0 %1565
    %v1567 = vsel %vm1539, %v1516, 0.0
    %1568 = vadd.xlane.f32.xlu0 %v1567
    %v1569 = vpop.xlane.xlu0 %1568
    %v1570 = vsel %vm1539, %v1517, 0.0
    %1571 = vadd.xlane.f32.xlu0 %v1570
    %v1572 = vpop.xlane.xlu0 %1571
    %v1573 = vsel %vm1539, %v1518, 0.0
    %1574 = vadd.xlane.f32.xlu0 %v1573
    %v1575 = vpop.xlane.xlu0 %1574
    %v1576 = vsel %vm1539, %v1519, 0.0
    %1577 = vadd.xlane.f32.xlu0 %v1576
    %v1578 = vpop.xlane.xlu0 %1577
    %v1579 = vsel %vm1539, %v1520, 0.0
    %1580 = vadd.xlane.f32.xlu0 %v1579
    %v1581 = vpop.xlane.xlu0 %1580
    %v1582 = vsel %vm1539, %v1521, 0.0
    %1583 = vadd.xlane.f32.xlu0 %v1582
    %v1584 = vpop.xlane.xlu0 %1583
    %v1585 = vsel %vm1539, %v1522, 0.0
    %1586 = vadd.xlane.f32.xlu0 %v1585
    %v1587 = vpop.xlane.xlu0 %1586
    %v1588 = vsel %vm1539, %v1523, 0.0
    %1589 = vadd.xlane.f32.xlu0 %v1588
    %v1590 = vpop.xlane.xlu0 %1589
    %v1591 = vsel %vm1539, %v1524, 0.0
    %1592 = vadd.xlane.f32.xlu0 %v1591
    %v1593 = vpop.xlane.xlu0 %1592
    %v1594 = vsel %vm1539, %v1525, 0.0
    %1595 = vadd.xlane.f32.xlu0 %v1594
    %v1596 = vpop.xlane.xlu0 %1595
    %v1597 = vsel %vm1539, %v1526, 0.0
    %1598 = vadd.xlane.f32.xlu0 %v1597
    %v1599 = vpop.xlane.xlu0 %1598
    %v1600 = vsel %vm1539, %v1527, 0.0
    %1601 = vadd.xlane.f32.xlu0 %v1600
    %v1602 = vpop.xlane.xlu0 %1601
    %v1603 = vsel %vm1539, %v1528, 0.0
    %1604 = vadd.xlane.f32.xlu0 %v1603
    %v1605 = vpop.xlane.xlu0 %1604
    %v1606 = vsel %vm1539, %v1529, 0.0
    %1607 = vadd.xlane.f32.xlu0 %v1606
    %v1608 = vpop.xlane.xlu0 %1607
    %v1609 = vsel %vm1539, %v1530, 0.0
    %1610 = vadd.xlane.f32.xlu0 %v1609
    %v1611 = vpop.xlane.xlu0 %1610
    %v1612 = vsel %vm1539, %v1531, 0.0
    %1613 = vadd.xlane.f32.xlu0 %v1612
    %v1614 = vpop.xlane.xlu0 %1613
    %v1615 = vsel %vm1539, %v1532, 0.0
    %1616 = vadd.xlane.f32.xlu0 %v1615
    %v1617 = vpop.xlane.xlu0 %1616
    %v1618 = vsel %vm1539, %v1533, 0.0
    %1619 = vadd.xlane.f32.xlu0 %v1618
    %v1620 = vpop.xlane.xlu0 %1619
    %v1621 = vsel %vm1539, %v1534, 0.0
    %1622 = vadd.xlane.f32.xlu0 %v1621
    %v1623 = vpop.xlane.xlu0 %1622
    %v1624 = vsel %vm1539, %v1535, 0.0
    %1625 = vadd.xlane.f32.xlu0 %v1624
    %v1626 = vpop.xlane.xlu0 %1625
    %v1627 = vsel %vm1539, %v1536, 0.0
    %1628 = vadd.xlane.f32.xlu0 %v1627
    %v1629 = vpop.xlane.xlu0 %1628
    %v1630 = vsel %vm1539, %v1537, 0.0
    %1631 = vadd.xlane.f32.xlu0 %v1630
    %v1632 = vpop.xlane.xlu0 %1631
    %v1633 = vsel %vm1539, %v1538, 0.0
    %1634 = vadd.xlane.f32.xlu0 %v1633
    %v1635 = vpop.xlane.xlu0 %1634
    %vm1636 = vcmp.ge.s32.totalorder %v73, 1
    %vm1637 = vcmp.ge.s32.totalorder %v74, 1
    %vm1638 = vcmp.ge.s32.totalorder %v75, 1
    %vm1639 = vcmp.ge.s32.totalorder %v76, 1
    %vm1640 = vcmp.le.s32.totalorder %v73, 5
    %vm1641 = vcmp.le.s32.totalorder %v74, 5
    %vm1642 = vcmp.le.s32.totalorder %v75, 5
    %vm1643 = vcmp.le.s32.totalorder %v76, 5
    %vm1644 = vmand %vm1636, %vm1640
    %vm1645 = vmand %vm1637, %vm1641
    %vm1646 = vmand %vm1638, %vm1642
    %vm1647 = vmand %vm1639, %vm1643
    %v1680 = vlaneseq
    %v1681 = vshrl.u32 %v1680, 7
    %v1682 = vsub.s32 %v1249, %v1681
    %v1683 = vrot.slane %v1542, %v1682
    %v1684 = vlaneseq
    %v1685 = vshrl.u32 %v1684, 7
    %v1686 = vsub.s32 %v1249, %v1685
    %v1687 = vrot.slane %v1545, %v1686
    %v1688 = vlaneseq
    %v1689 = vshrl.u32 %v1688, 7
    %v1690 = vsub.s32 %v1249, %v1689
    %v1691 = vrot.slane %v1548, %v1690
    %v1692 = vlaneseq
    %v1693 = vshrl.u32 %v1692, 7
    %v1694 = vsub.s32 %v1249, %v1693
    %v1695 = vrot.slane %v1551, %v1694
    %v1696 = vlaneseq
    %v1697 = vshrl.u32 %v1696, 7
    %v1698 = vsub.s32 %v1249, %v1697
    %v1699 = vrot.slane %v1554, %v1698
    %v1700 = vlaneseq
    %v1701 = vshrl.u32 %v1700, 7
    %v1702 = vsub.s32 %v1249, %v1701
    %v1703 = vrot.slane %v1557, %v1702
    %v1704 = vlaneseq
    %v1705 = vshrl.u32 %v1704, 7
    %v1706 = vsub.s32 %v1249, %v1705
    %v1707 = vrot.slane %v1560, %v1706
    %v1708 = vlaneseq
    %v1709 = vshrl.u32 %v1708, 7
    %v1710 = vsub.s32 %v1249, %v1709
    %v1711 = vrot.slane %v1563, %v1710
    %v1712 = vlaneseq
    %v1713 = vshrl.u32 %v1712, 7
    %v1714 = vsub.s32 %v1249, %v1713
    %v1715 = vrot.slane %v1566, %v1714
    %v1716 = vlaneseq
    %v1717 = vshrl.u32 %v1716, 7
    %v1718 = vsub.s32 %v1249, %v1717
    %v1719 = vrot.slane %v1569, %v1718
    %v1720 = vlaneseq
    %v1721 = vshrl.u32 %v1720, 7
    %v1722 = vsub.s32 %v1249, %v1721
    %v1723 = vrot.slane %v1572, %v1722
    %v1724 = vlaneseq
    %v1725 = vshrl.u32 %v1724, 7
    %v1726 = vsub.s32 %v1249, %v1725
    %v1727 = vrot.slane %v1575, %v1726
    %v1728 = vlaneseq
    %v1729 = vshrl.u32 %v1728, 7
    %v1730 = vsub.s32 %v1249, %v1729
    %v1731 = vrot.slane %v1578, %v1730
    %v1732 = vlaneseq
    %v1733 = vshrl.u32 %v1732, 7
    %v1734 = vsub.s32 %v1249, %v1733
    %v1735 = vrot.slane %v1581, %v1734
    %v1736 = vlaneseq
    %v1737 = vshrl.u32 %v1736, 7
    %v1738 = vsub.s32 %v1249, %v1737
    %v1739 = vrot.slane %v1584, %v1738
    %v1740 = vlaneseq
    %v1741 = vshrl.u32 %v1740, 7
    %v1742 = vsub.s32 %v1249, %v1741
    %v1743 = vrot.slane %v1587, %v1742
    %v1744 = vlaneseq
    %v1745 = vshrl.u32 %v1744, 7
    %v1746 = vsub.s32 %v1249, %v1745
    %v1747 = vrot.slane %v1590, %v1746
    %v1748 = vlaneseq
    %v1749 = vshrl.u32 %v1748, 7
    %v1750 = vsub.s32 %v1249, %v1749
    %v1751 = vrot.slane %v1593, %v1750
    %v1752 = vlaneseq
    %v1753 = vshrl.u32 %v1752, 7
    %v1754 = vsub.s32 %v1249, %v1753
    %v1755 = vrot.slane %v1596, %v1754
    %v1756 = vlaneseq
    %v1757 = vshrl.u32 %v1756, 7
    %v1758 = vsub.s32 %v1249, %v1757
    %v1759 = vrot.slane %v1599, %v1758
    %v1760 = vlaneseq
    %v1761 = vshrl.u32 %v1760, 7
    %v1762 = vsub.s32 %v1249, %v1761
    %v1763 = vrot.slane %v1602, %v1762
    %v1764 = vlaneseq
    %v1765 = vshrl.u32 %v1764, 7
    %v1766 = vsub.s32 %v1249, %v1765
    %v1767 = vrot.slane %v1605, %v1766
    %v1768 = vlaneseq
    %v1769 = vshrl.u32 %v1768, 7
    %v1770 = vsub.s32 %v1249, %v1769
    %v1771 = vrot.slane %v1608, %v1770
    %v1772 = vlaneseq
    %v1773 = vshrl.u32 %v1772, 7
    %v1774 = vsub.s32 %v1249, %v1773
    %v1775 = vrot.slane %v1611, %v1774
    %v1776 = vlaneseq
    %v1777 = vshrl.u32 %v1776, 7
    %v1778 = vsub.s32 %v1249, %v1777
    %v1779 = vrot.slane %v1614, %v1778
    %v1780 = vlaneseq
    %v1781 = vshrl.u32 %v1780, 7
    %v1782 = vsub.s32 %v1249, %v1781
    %v1783 = vrot.slane %v1617, %v1782
    %v1784 = vlaneseq
    %v1785 = vshrl.u32 %v1784, 7
    %v1786 = vsub.s32 %v1249, %v1785
    %v1787 = vrot.slane %v1620, %v1786
    %v1788 = vlaneseq
    %v1789 = vshrl.u32 %v1788, 7
    %v1790 = vsub.s32 %v1249, %v1789
    %v1791 = vrot.slane %v1623, %v1790
    %v1792 = vlaneseq
    %v1793 = vshrl.u32 %v1792, 7
    %v1794 = vsub.s32 %v1249, %v1793
    %v1795 = vrot.slane %v1626, %v1794
    %v1796 = vlaneseq
    %v1797 = vshrl.u32 %v1796, 7
    %v1798 = vsub.s32 %v1249, %v1797
    %v1799 = vrot.slane %v1629, %v1798
    %v1800 = vlaneseq
    %v1801 = vshrl.u32 %v1800, 7
    %v1802 = vsub.s32 %v1249, %v1801
    %v1803 = vrot.slane %v1632, %v1802
    %v1804 = vlaneseq
    %v1805 = vshrl.u32 %v1804, 7
    %v1806 = vsub.s32 %v1249, %v1805
    %v1807 = vrot.slane %v1635, %v1806
    %vm1808 = vcmask 1041409
    %v1809 = vsel %vm1808, %v1687, %v1683
    %vm1810 = vcmask 1042434
    %v1811 = vsel %vm1810, %v1691, %v1809
    %vm1812 = vcmask 1043459
    %v1813 = vsel %vm1812, %v1695, %v1811
    %vm1814 = vcmask 1044484
    %v1815 = vsel %vm1814, %v1699, %v1813
    %vm1816 = vcmask 1045509
    %v1817 = vsel %vm1816, %v1703, %v1815
    %vm1818 = vcmask 1046534
    %v1819 = vsel %vm1818, %v1707, %v1817
    %vm1820 = vcmask 1047559
    %v1821 = vsel %vm1820, %v1711, %v1819
    %v1822 = vsel %vm1808, %v1719, %v1715
    %v1823 = vsel %vm1810, %v1723, %v1822
    %v1824 = vsel %vm1812, %v1727, %v1823
    %v1825 = vsel %vm1814, %v1731, %v1824
    %v1826 = vsel %vm1816, %v1735, %v1825
    %v1827 = vsel %vm1818, %v1739, %v1826
    %v1828 = vsel %vm1820, %v1743, %v1827
    %v1829 = vsel %vm1808, %v1751, %v1747
    %v1830 = vsel %vm1810, %v1755, %v1829
    %v1831 = vsel %vm1812, %v1759, %v1830
    %v1832 = vsel %vm1814, %v1763, %v1831
    %v1833 = vsel %vm1816, %v1767, %v1832
    %v1834 = vsel %vm1818, %v1771, %v1833
    %v1835 = vsel %vm1820, %v1775, %v1834
    %v1836 = vsel %vm1808, %v1783, %v1779
    %v1837 = vsel %vm1810, %v1787, %v1836
    %v1838 = vsel %vm1812, %v1791, %v1837
    %v1839 = vsel %vm1814, %v1795, %v1838
    %v1840 = vsel %vm1816, %v1799, %v1839
    %v1841 = vsel %vm1818, %v1803, %v1840
    %v1842 = vsel %vm1820, %v1807, %v1841
    %v1847 = vsel %vm1644, %v1821, -9e+15
    %v1848 = vsel %vm1645, %v1828, -9e+15
    %v1849 = vsel %vm1646, %v1835, -9e+15
    %v1850 = vsel %vm1647, %v1842, -9e+15
    %vm1851 = vcmask 64512
    %v1852 = vsel %vm1851, %v1847, -inf
    %1853 = vmax.xlane.f32.xlu0 %v1852
    %v1854 = vpop.xlane.xlu0 %1853
    %v1855 = vsel %vm1851, %v1848, -inf
    %1856 = vmax.xlane.f32.xlu0 %v1855
    %v1857 = vpop.xlane.xlu0 %1856
    %v1858 = vsel %vm1851, %v1849, -inf
    %1859 = vmax.xlane.f32.xlu0 %v1858
    %v1860 = vpop.xlane.xlu0 %1859
    %v1861 = vsel %vm1851, %v1850, -inf
    %1862 = vmax.xlane.f32.xlu0 %v1861
    %v1863 = vpop.xlane.xlu0 %1862
    %v1864 = vsub.f32 %v1847, %v1854
    %v1865 = vsub.f32 %v1848, %v1857
    %v1866 = vsub.f32 %v1849, %v1860
    %v1867 = vsub.f32 %v1850, %v1863
    %v1868 = vmul.f32 %v1864, 1.442695
    %v1869 = vpow.pop %v1868
    %v1870 = vmul.f32 %v1865, 1.442695
    %v1871 = vpow.pop %v1870
    %v1872 = vmul.f32 %v1866, 1.442695
    %v1873 = vpow.pop %v1872
    %v1874 = vmul.f32 %v1867, 1.442695
    %v1875 = vpow.pop %v1874
    %v1876 = vsel %vm1851, %v1869, 0.0
    %1877 = vadd.xlane.f32.xlu0 %v1876
    %v1878 = vpop.xlane.xlu0 %1877
    %v1879 = vsel %vm1851, %v1871, 0.0
    %1880 = vadd.xlane.f32.xlu0 %v1879
    %v1881 = vpop.xlane.xlu0 %1880
    %v1882 = vsel %vm1851, %v1873, 0.0
    %1883 = vadd.xlane.f32.xlu0 %v1882
    %v1884 = vpop.xlane.xlu0 %1883
    %v1885 = vsel %vm1851, %v1875, 0.0
    %1886 = vadd.xlane.f32.xlu0 %v1885
    %v1887 = vpop.xlane.xlu0 %1886
    %v1888 = vrcp.pop %v1878
    %v1889 = vmul.f32 %v1869, %v1888
    %v1890 = vrcp.pop %v1881
    %v1891 = vmul.f32 %v1871, %v1890
    %v1892 = vrcp.pop %v1884
    %v1893 = vmul.f32 %v1873, %v1892
    %v1894 = vrcp.pop %v1887
    %v1895 = vmul.f32 %v1875, %v1894
    %v1897 = vsel %vm1851, %v1889, 0
    %1899 = vmatprep.subr.mxu0 0.0
    %1900 = vmatpush1.msra.mxu0 %v69
    %1901 = vmatprep.subr.mxu0 0.0
    %1902 = vmatpush1.msra.mxu0 0.0
    %1903 = vmatprep.subr.mxu0 0.0
    %1904 = vmatpush1.msra.mxu0 0.0
    %1905 = vmatprep.subr.mxu0 0.0
    %1906 = vmatpush1.msra.mxu0 0.0
    %1907 = vmatprep.subr.mxu0 0.0
    %1908 = vmatpush1.msra.mxu0 0.0
    %1909 = vmatprep.subr.mxu0 0.0
    %1910 = vmatpush1.msra.mxu0 0.0
    %1911 = vmatprep.subr.mxu0 0.0
    %1912 = vmatpush1.msra.mxu0 0.0
    %1913 = vmatprep.subr.mxu0 0.0
    %1914 = vmatpush1.msra.mxu0 0.0
    %1915 = vmatprep.subr.mxu0 0.0
    %1916 = vmatpush1.msra.mxu0 0.0
    %1917 = vmatprep.subr.mxu0 0.0
    %1918 = vmatpush1.msra.mxu0 0.0
    %1919 = vmatprep.subr.mxu0 0.0
    %1920 = vmatpush1.msra.mxu0 0.0
    %1921 = vmatprep.subr.mxu0 0.0
    %1922 = vmatpush1.msra.mxu0 0.0
    %1923 = vmatprep.subr.mxu0 0.0
    %1924 = vmatpush1.msra.mxu0 0.0
    %1925 = vmatprep.subr.mxu0 0.0
    %1926 = vmatpush1.msra.mxu0 0.0
    %1927 = vmatprep.subr.mxu0 0.0
    %1928 = vmatpush1.msra.mxu0 0.0
    %1929 = vmatprep.subr.mxu0 0.0
    %1930 = vmatpush1.msra.mxu0 0.0
    %1931 = vmatprep.subr.mxu0 0.0
    %1932 = vmatpush1.msra.mxu0 0.0
    %1933 = vmatprep.subr.mxu0 0.0
    %1934 = vmatpush1.msra.mxu0 0.0
    %1935 = vmatprep.subr.mxu0 0.0
    %1936 = vmatpush1.msra.mxu0 0.0
    %1937 = vmatprep.subr.mxu0 0.0
    %1938 = vmatpush1.msra.mxu0 0.0
    %1939 = vmatprep.subr.mxu0 0.0
    %1940 = vmatpush1.msra.mxu0 0.0
    %1941 = vmatprep.subr.mxu0 0.0
    %1942 = vmatpush1.msra.mxu0 0.0
    %1943 = vmatprep.subr.mxu0 0.0
    %1944 = vmatpush1.msra.mxu0 0.0
    %1945 = vmatprep.subr.mxu0 0.0
    %1946 = vmatpush1.msra.mxu0 0.0
    %1947 = vmatprep.subr.mxu0 0.0
    %1948 = vmatpush1.msra.mxu0 0.0
    %1949 = vmatprep.subr.mxu0 0.0
    %1950 = vmatpush1.msra.mxu0 0.0
    %1951 = vmatprep.subr.mxu0 0.0
    %1952 = vmatpush1.msra.mxu0 0.0
    %1953 = vmatprep.subr.mxu0 0.0
    %1954 = vmatpush1.msra.mxu0 0.0
    %1955 = vmatprep.subr.mxu0 0.0
    %1956 = vmatpush1.msra.mxu0 0.0
    %1957 = vmatprep.subr.mxu0 0.0
    %1958 = vmatpush1.msra.mxu0 0.0
    %1959 = vmatprep.subr.mxu0 0.0
    %1960 = vmatpush1.msra.mxu0 0.0
    %1961 = vmatprep.subr.mxu0 0.0
    %1962 = vmatpush1.msra.mxu0 0.0
    %1963 = vmatprep.mubr.f32.mxu0 0.0
    %1964 = vmatmul.mubr.f32.gmra.mrb[0].mxu0 %v1897
    %v1965 = vpop.f32.mrb[0].mxu0
    %v1966 = vadd.f32 0.0, %v1965
    %v1967 = vpop.f32.mrb[0].mxu0
    %1968 = vdwg.mxu0
    %v1970 = vsel %vm1851, %v1891, 0
    %1972 = vmatprep.subr.mxu0 0.0
    %1973 = vmatpush1.msra.mxu0 %v70
    %1974 = vmatprep.subr.mxu0 0.0
    %1975 = vmatpush1.msra.mxu0 0.0
    %1976 = vmatprep.subr.mxu0 0.0
    %1977 = vmatpush1.msra.mxu0 0.0
    %1978 = vmatprep.subr.mxu0 0.0
    %1979 = vmatpush1.msra.mxu0 0.0
    %1980 = vmatprep.subr.mxu0 0.0
    %1981 = vmatpush1.msra.mxu0 0.0
    %1982 = vmatprep.subr.mxu0 0.0
    %1983 = vmatpush1.msra.mxu0 0.0
    %1984 = vmatprep.subr.mxu0 0.0
    %1985 = vmatpush1.msra.mxu0 0.0
    %1986 = vmatprep.subr.mxu0 0.0
    %1987 = vmatpush1.msra.mxu0 0.0
    %1988 = vmatprep.subr.mxu0 0.0
    %1989 = vmatpush1.msra.mxu0 0.0
    %1990 = vmatprep.subr.mxu0 0.0
    %1991 = vmatpush1.msra.mxu0 0.0
    %1992 = vmatprep.subr.mxu0 0.0
    %1993 = vmatpush1.msra.mxu0 0.0
    %1994 = vmatprep.subr.mxu0 0.0
    %1995 = vmatpush1.msra.mxu0 0.0
    %1996 = vmatprep.subr.mxu0 0.0
    %1997 = vmatpush1.msra.mxu0 0.0
    %1998 = vmatprep.subr.mxu0 0.0
    %1999 = vmatpush1.msra.mxu0 0.0
    %2000 = vmatprep.subr.mxu0 0.0
    %2001 = vmatpush1.msra.mxu0 0.0
    %2002 = vmatprep.subr.mxu0 0.0
    %2003 = vmatpush1.msra.mxu0 0.0
    %2004 = vmatprep.subr.mxu0 0.0
    %2005 = vmatpush1.msra.mxu0 0.0
    %2006 = vmatprep.subr.mxu0 0.0
    %2007 = vmatpush1.msra.mxu0 0.0
    %2008 = vmatprep.subr.mxu0 0.0
    %2009 = vmatpush1.msra.mxu0 0.0
    %2010 = vmatprep.subr.mxu0 0.0
    %2011 = vmatpush1.msra.mxu0 0.0
    %2012 = vmatprep.subr.mxu0 0.0
    %2013 = vmatpush1.msra.mxu0 0.0
    %2014 = vmatprep.subr.mxu0 0.0
    %2015 = vmatpush1.msra.mxu0 0.0
    %2016 = vmatprep.subr.mxu0 0.0
    %2017 = vmatpush1.msra.mxu0 0.0
    %2018 = vmatprep.subr.mxu0 0.0
    %2019 = vmatpush1.msra.mxu0 0.0
    %2020 = vmatprep.subr.mxu0 0.0
    %2021 = vmatpush1.msra.mxu0 0.0
    %2022 = vmatprep.subr.mxu0 0.0
    %2023 = vmatpush1.msra.mxu0 0.0
    %2024 = vmatprep.subr.mxu0 0.0
    %2025 = vmatpush1.msra.mxu0 0.0
    %2026 = vmatprep.subr.mxu0 0.0
    %2027 = vmatpush1.msra.mxu0 0.0
    %2028 = vmatprep.subr.mxu0 0.0
    %2029 = vmatpush1.msra.mxu0 0.0
    %2030 = vmatprep.subr.mxu0 0.0
    %2031 = vmatpush1.msra.mxu0 0.0
    %2032 = vmatprep.subr.mxu0 0.0
    %2033 = vmatpush1.msra.mxu0 0.0
    %2034 = vmatprep.subr.mxu0 0.0
    %2035 = vmatpush1.msra.mxu0 0.0
    %2036 = vmatprep.mubr.f32.mxu0 0.0
    %2037 = vmatmul.mubr.f32.gmra.mrb[0].mxu0 %v1970
    %v2038 = vpop.f32.mrb[0].mxu0
    %v2039 = vadd.f32 0.0, %v2038
    %v2040 = vpop.f32.mrb[0].mxu0
    %2041 = vdwg.mxu0
    %v2043 = vsel %vm1851, %v1893, 0
    %2045 = vmatprep.subr.mxu0 0.0
    %2046 = vmatpush1.msra.mxu0 %v71
    %2047 = vmatprep.subr.mxu0 0.0
    %2048 = vmatpush1.msra.mxu0 0.0
    %2049 = vmatprep.subr.mxu0 0.0
    %2050 = vmatpush1.msra.mxu0 0.0
    %2051 = vmatprep.subr.mxu0 0.0
    %2052 = vmatpush1.msra.mxu0 0.0
    %2053 = vmatprep.subr.mxu0 0.0
    %2054 = vmatpush1.msra.mxu0 0.0
    %2055 = vmatprep.subr.mxu0 0.0
    %2056 = vmatpush1.msra.mxu0 0.0
    %2057 = vmatprep.subr.mxu0 0.0
    %2058 = vmatpush1.msra.mxu0 0.0
    %2059 = vmatprep.subr.mxu0 0.0
    %2060 = vmatpush1.msra.mxu0 0.0
    %2061 = vmatprep.subr.mxu0 0.0
    %2062 = vmatpush1.msra.mxu0 0.0
    %2063 = vmatprep.subr.mxu0 0.0
    %2064 = vmatpush1.msra.mxu0 0.0
    %2065 = vmatprep.subr.mxu0 0.0
    %2066 = vmatpush1.msra.mxu0 0.0
    %2067 = vmatprep.subr.mxu0 0.0
    %2068 = vmatpush1.msra.mxu0 0.0
    %2069 = vmatprep.subr.mxu0 0.0
    %2070 = vmatpush1.msra.mxu0 0.0
    %2071 = vmatprep.subr.mxu0 0.0
    %2072 = vmatpush1.msra.mxu0 0.0
    %2073 = vmatprep.subr.mxu0 0.0
    %2074 = vmatpush1.msra.mxu0 0.0
    %2075 = vmatprep.subr.mxu0 0.0
    %2076 = vmatpush1.msra.mxu0 0.0
    %2077 = vmatprep.subr.mxu0 0.0
    %2078 = vmatpush1.msra.mxu0 0.0
    %2079 = vmatprep.subr.mxu0 0.0
    %2080 = vmatpush1.msra.mxu0 0.0
    %2081 = vmatprep.subr.mxu0 0.0
    %2082 = vmatpush1.msra.mxu0 0.0
    %2083 = vmatprep.subr.mxu0 0.0
    %2084 = vmatpush1.msra.mxu0 0.0
    %2085 = vmatprep.subr.mxu0 0.0
    %2086 = vmatpush1.msra.mxu0 0.0
    %2087 = vmatprep.subr.mxu0 0.0
    %2088 = vmatpush1.msra.mxu0 0.0
    %2089 = vmatprep.subr.mxu0 0.0
    %2090 = vmatpush1.msra.mxu0 0.0
    %2091 = vmatprep.subr.mxu0 0.0
    %2092 = vmatpush1.msra.mxu0 0.0
    %2093 = vmatprep.subr.mxu0 0.0
    %2094 = vmatpush1.msra.mxu0 0.0
    %2095 = vmatprep.subr.mxu0 0.0
    %2096 = vmatpush1.msra.mxu0 0.0
    %2097 = vmatprep.subr.mxu0 0.0
    %2098 = vmatpush1.msra.mxu0 0.0
    %2099 = vmatprep.subr.mxu0 0.0
    %2100 = vmatpush1.msra.mxu0 0.0
    %2101 = vmatprep.subr.mxu0 0.0
    %2102 = vmatpush1.msra.mxu0 0.0
    %2103 = vmatprep.subr.mxu0 0.0
    %2104 = vmatpush1.msra.mxu0 0.0
    %2105 = vmatprep.subr.mxu0 0.0
    %2106 = vmatpush1.msra.mxu0 0.0
    %2107 = vmatprep.subr.mxu0 0.0
    %2108 = vmatpush1.msra.mxu0 0.0
    %2109 = vmatprep.mubr.f32.mxu0 0.0
    %2110 = vmatmul.mubr.f32.gmra.mrb[0].mxu0 %v2043
    %v2111 = vpop.f32.mrb[0].mxu0
    %v2112 = vadd.f32 0.0, %v2111
    %v2113 = vpop.f32.mrb[0].mxu0
    %2114 = vdwg.mxu0
    %v2116 = vsel %vm1851, %v1895, 0
    %2118 = vmatprep.subr.mxu0 0.0
    %2119 = vmatpush1.msra.mxu0 %v72
    %2120 = vmatprep.subr.mxu0 0.0
    %2121 = vmatpush1.msra.mxu0 0.0
    %2122 = vmatprep.subr.mxu0 0.0
    %2123 = vmatpush1.msra.mxu0 0.0
    %2124 = vmatprep.subr.mxu0 0.0
    %2125 = vmatpush1.msra.mxu0 0.0
    %2126 = vmatprep.subr.mxu0 0.0
    %2127 = vmatpush1.msra.mxu0 0.0
    %2128 = vmatprep.subr.mxu0 0.0
    %2129 = vmatpush1.msra.mxu0 0.0
    %2130 = vmatprep.subr.mxu0 0.0
    %2131 = vmatpush1.msra.mxu0 0.0
    %2132 = vmatprep.subr.mxu0 0.0
    %2133 = vmatpush1.msra.mxu0 0.0
    %2134 = vmatprep.subr.mxu0 0.0
    %2135 = vmatpush1.msra.mxu0 0.0
    %2136 = vmatprep.subr.mxu0 0.0
    %2137 = vmatpush1.msra.mxu0 0.0
    %2138 = vmatprep.subr.mxu0 0.0
    %2139 = vmatpush1.msra.mxu0 0.0
    %2140 = vmatprep.subr.mxu0 0.0
    %2141 = vmatpush1.msra.mxu0 0.0
    %2142 = vmatprep.subr.mxu0 0.0
    %2143 = vmatpush1.msra.mxu0 0.0
    %2144 = vmatprep.subr.mxu0 0.0
    %2145 = vmatpush1.msra.mxu0 0.0
    %2146 = vmatprep.subr.mxu0 0.0
    %2147 = vmatpush1.msra.mxu0 0.0
    %2148 = vmatprep.subr.mxu0 0.0
    %2149 = vmatpush1.msra.mxu0 0.0
    %2150 = vmatprep.subr.mxu0 0.0
    %2151 = vmatpush1.msra.mxu0 0.0
    %2152 = vmatprep.subr.mxu0 0.0
    %2153 = vmatpush1.msra.mxu0 0.0
    %2154 = vmatprep.subr.mxu0 0.0
    %2155 = vmatpush1.msra.mxu0 0.0
    %2156 = vmatprep.subr.mxu0 0.0
    %2157 = vmatpush1.msra.mxu0 0.0
    %2158 = vmatprep.subr.mxu0 0.0
    %2159 = vmatpush1.msra.mxu0 0.0
    %2160 = vmatprep.subr.mxu0 0.0
    %2161 = vmatpush1.msra.mxu0 0.0
    %2162 = vmatprep.subr.mxu0 0.0
    %2163 = vmatpush1.msra.mxu0 0.0
    %2164 = vmatprep.subr.mxu0 0.0
    %2165 = vmatpush1.msra.mxu0 0.0
    %2166 = vmatprep.subr.mxu0 0.0
    %2167 = vmatpush1.msra.mxu0 0.0
    %2168 = vmatprep.subr.mxu0 0.0
    %2169 = vmatpush1.msra.mxu0 0.0
    %2170 = vmatprep.subr.mxu0 0.0
    %2171 = vmatpush1.msra.mxu0 0.0
    %2172 = vmatprep.subr.mxu0 0.0
    %2173 = vmatpush1.msra.mxu0 0.0
    %2174 = vmatprep.subr.mxu0 0.0
    %2175 = vmatpush1.msra.mxu0 0.0
    %2176 = vmatprep.subr.mxu0 0.0
    %2177 = vmatpush1.msra.mxu0 0.0
    %2178 = vmatprep.subr.mxu0 0.0
    %2179 = vmatpush1.msra.mxu0 0.0
    %2180 = vmatprep.subr.mxu0 0.0
    %2181 = vmatpush1.msra.mxu0 0.0
    %2182 = vmatprep.mubr.f32.mxu0 0.0
    %2183 = vmatmul.mubr.f32.gmra.mrb[0].mxu0 %v2116
    %v2184 = vpop.f32.mrb[0].mxu0
    %v2185 = vadd.f32 0.0, %v2184
    %v2186 = vpop.f32.mrb[0].mxu0
    %2187 = vdwg.mxu0
    %v2188 = vld [vmem:[%s5] sm:$0xff]
    %v2189 = vld [vmem:[%s5 + $0x8] sm:$0xff]
    %v2190 = vld [vmem:[%s5 + $0x10] sm:$0xff]
    %v2191 = vld [vmem:[%s5 + $0x18] sm:$0xff]
    %v2193 = vsel %vm1851, %v2188, 0
    %2195 = vmatprep.subr.mxu0 0.0
    %2196 = vmatpush1.msra.mxu0 %v1966
    %2197 = vmatprep.subr.mxu0 0.0
    %2198 = vmatpush1.msra.mxu0 0.0
    %2199 = vmatprep.subr.mxu0 0.0
    %2200 = vmatpush1.msra.mxu0 0.0
    %2201 = vmatprep.subr.mxu0 0.0
    %2202 = vmatpush1.msra.mxu0 0.0
    %2203 = vmatprep.subr.mxu0 0.0
    %2204 = vmatpush1.msra.mxu0 0.0
    %2205 = vmatprep.subr.mxu0 0.0
    %2206 = vmatpush1.msra.mxu0 0.0
    %2207 = vmatprep.subr.mxu0 0.0
    %2208 = vmatpush1.msra.mxu0 0.0
    %2209 = vmatprep.subr.mxu0 0.0
    %2210 = vmatpush1.msra.mxu0 0.0
    %2211 = vmatprep.subr.mxu0 0.0
    %2212 = vmatpush1.msra.mxu0 0.0
    %2213 = vmatprep.subr.mxu0 0.0
    %2214 = vmatpush1.msra.mxu0 0.0
    %2215 = vmatprep.subr.mxu0 0.0
    %2216 = vmatpush1.msra.mxu0 0.0
    %2217 = vmatprep.subr.mxu0 0.0
    %2218 = vmatpush1.msra.mxu0 0.0
    %2219 = vmatprep.subr.mxu0 0.0
    %2220 = vmatpush1.msra.mxu0 0.0
    %2221 = vmatprep.subr.mxu0 0.0
    %2222 = vmatpush1.msra.mxu0 0.0
    %2223 = vmatprep.subr.mxu0 0.0
    %2224 = vmatpush1.msra.mxu0 0.0
    %2225 = vmatprep.subr.mxu0 0.0
    %2226 = vmatpush1.msra.mxu0 0.0
    %2227 = vmatprep.subr.mxu0 0.0
    %2228 = vmatpush1.msra.mxu0 0.0
    %2229 = vmatprep.subr.mxu0 0.0
    %2230 = vmatpush1.msra.mxu0 0.0
    %2231 = vmatprep.subr.mxu0 0.0
    %2232 = vmatpush1.msra.mxu0 0.0
    %2233 = vmatprep.subr.mxu0 0.0
    %2234 = vmatpush1.msra.mxu0 0.0
    %2235 = vmatprep.subr.mxu0 0.0
    %2236 = vmatpush1.msra.mxu0 0.0
    %2237 = vmatprep.subr.mxu0 0.0
    %2238 = vmatpush1.msra.mxu0 0.0
    %2239 = vmatprep.subr.mxu0 0.0
    %2240 = vmatpush1.msra.mxu0 0.0
    %2241 = vmatprep.subr.mxu0 0.0
    %2242 = vmatpush1.msra.mxu0 0.0
    %2243 = vmatprep.subr.mxu0 0.0
    %2244 = vmatpush1.msra.mxu0 0.0
    %2245 = vmatprep.subr.mxu0 0.0
    %2246 = vmatpush1.msra.mxu0 0.0
    %2247 = vmatprep.subr.mxu0 0.0
    %2248 = vmatpush1.msra.mxu0 0.0
    %2249 = vmatprep.subr.mxu0 0.0
    %2250 = vmatpush1.msra.mxu0 0.0
    %2251 = vmatprep.subr.mxu0 0.0
    %2252 = vmatpush1.msra.mxu0 0.0
    %2253 = vmatprep.subr.mxu0 0.0
    %2254 = vmatpush1.msra.mxu0 0.0
    %2255 = vmatprep.subr.mxu0 0.0
    %2256 = vmatpush1.msra.mxu0 0.0
    %2257 = vmatprep.subr.mxu0 0.0
    %2258 = vmatpush1.msra.mxu0 0.0
    %2259 = vmatprep.mubr.f32.mxu0 0.0
    %2260 = vmatmul.mubr.f32.gmra.mrb[0].mxu0 %v2193
    %v2261 = vpop.f32.mrb[0].mxu0
    %v2262 = vadd.f32 0.0, %v2261
    %v2263 = vpop.f32.mrb[0].mxu0
    %2264 = vdwg.mxu0
    %v2266 = vsel %vm1851, %v2189, 0
    %2268 = vmatprep.subr.mxu0 0.0
    %2269 = vmatpush1.msra.mxu0 %v2039
    %2270 = vmatprep.subr.mxu0 0.0
    %2271 = vmatpush1.msra.mxu0 0.0
    %2272 = vmatprep.subr.mxu0 0.0
    %2273 = vmatpush1.msra.mxu0 0.0
    %2274 = vmatprep.subr.mxu0 0.0
    %2275 = vmatpush1.msra.mxu0 0.0
    %2276 = vmatprep.subr.mxu0 0.0
    %2277 = vmatpush1.msra.mxu0 0.0
    %2278 = vmatprep.subr.mxu0 0.0
    %2279 = vmatpush1.msra.mxu0 0.0
    %2280 = vmatprep.subr.mxu0 0.0
    %2281 = vmatpush1.msra.mxu0 0.0
    %2282 = vmatprep.subr.mxu0 0.0
    %2283 = vmatpush1.msra.mxu0 0.0
    %2284 = vmatprep.subr.mxu0 0.0
    %2285 = vmatpush1.msra.mxu0 0.0
    %2286 = vmatprep.subr.mxu0 0.0
    %2287 = vmatpush1.msra.mxu0 0.0
    %2288 = vmatprep.subr.mxu0 0.0
    %2289 = vmatpush1.msra.mxu0 0.0
    %2290 = vmatprep.subr.mxu0 0.0
    %2291 = vmatpush1.msra.mxu0 0.0
    %2292 = vmatprep.subr.mxu0 0.0
    %2293 = vmatpush1.msra.mxu0 0.0
    %2294 = vmatprep.subr.mxu0 0.0
    %2295 = vmatpush1.msra.mxu0 0.0
    %2296 = vmatprep.subr.mxu0 0.0
    %2297 = vmatpush1.msra.mxu0 0.0
    %2298 = vmatprep.subr.mxu0 0.0
    %2299 = vmatpush1.msra.mxu0 0.0
    %2300 = vmatprep.subr.mxu0 0.0
    %2301 = vmatpush1.msra.mxu0 0.0
    %2302 = vmatprep.subr.mxu0 0.0
    %2303 = vmatpush1.msra.mxu0 0.0
    %2304 = vmatprep.subr.mxu0 0.0
    %2305 = vmatpush1.msra.mxu0 0.0
    %2306 = vmatprep.subr.mxu0 0.0
    %2307 = vmatpush1.msra.mxu0 0.0
    %2308 = vmatprep.subr.mxu0 0.0
    %2309 = vmatpush1.msra.mxu0 0.0
    %2310 = vmatprep.subr.mxu0 0.0
    %2311 = vmatpush1.msra.mxu0 0.0
    %2312 = vmatprep.subr.mxu0 0.0
    %2313 = vmatpush1.msra.mxu0 0.0
    %2314 = vmatprep.subr.mxu0 0.0
    %2315 = vmatpush1.msra.mxu0 0.0
    %2316 = vmatprep.subr.mxu0 0.0
    %2317 = vmatpush1.msra.mxu0 0.0
    %2318 = vmatprep.subr.mxu0 0.0
    %2319 = vmatpush1.msra.mxu0 0.0
    %2320 = vmatprep.subr.mxu0 0.0
    %2321 = vmatpush1.msra.mxu0 0.0
    %2322 = vmatprep.subr.mxu0 0.0
    %2323 = vmatpush1.msra.mxu0 0.0
    %2324 = vmatprep.subr.mxu0 0.0
    %2325 = vmatpush1.msra.mxu0 0.0
    %2326 = vmatprep.subr.mxu0 0.0
    %2327 = vmatpush1.msra.mxu0 0.0
    %2328 = vmatprep.subr.mxu0 0.0
    %2329 = vmatpush1.msra.mxu0 0.0
    %2330 = vmatprep.subr.mxu0 0.0
    %2331 = vmatpush1.msra.mxu0 0.0
    %2332 = vmatprep.mubr.f32.mxu0 0.0
    %2333 = vmatmul.mubr.f32.gmra.mrb[0].mxu0 %v2266
    %v2334 = vpop.f32.mrb[0].mxu0
    %v2335 = vadd.f32 0.0, %v2334
    %v2336 = vpop.f32.mrb[0].mxu0
    %2337 = vdwg.mxu0
    %v2339 = vsel %vm1851, %v2190, 0
    %2341 = vmatprep.subr.mxu0 0.0
    %2342 = vmatpush1.msra.mxu0 %v2112
    %2343 = vmatprep.subr.mxu0 0.0
    %2344 = vmatpush1.msra.mxu0 0.0
    %2345 = vmatprep.subr.mxu0 0.0
    %2346 = vmatpush1.msra.mxu0 0.0
    %2347 = vmatprep.subr.mxu0 0.0
    %2348 = vmatpush1.msra.mxu0 0.0
    %2349 = vmatprep.subr.mxu0 0.0
    %2350 = vmatpush1.msra.mxu0 0.0
    %2351 = vmatprep.subr.mxu0 0.0
    %2352 = vmatpush1.msra.mxu0 0.0
    %2353 = vmatprep.subr.mxu0 0.0
    %2354 = vmatpush1.msra.mxu0 0.0
    %2355 = vmatprep.subr.mxu0 0.0
    %2356 = vmatpush1.msra.mxu0 0.0
    %2357 = vmatprep.subr.mxu0 0.0
    %2358 = vmatpush1.msra.mxu0 0.0
    %2359 = vmatprep.subr.mxu0 0.0
    %2360 = vmatpush1.msra.mxu0 0.0
    %2361 = vmatprep.subr.mxu0 0.0
    %2362 = vmatpush1.msra.mxu0 0.0
    %2363 = vmatprep.subr.mxu0 0.0
    %2364 = vmatpush1.msra.mxu0 0.0
    %2365 = vmatprep.subr.mxu0 0.0
    %2366 = vmatpush1.msra.mxu0 0.0
    %2367 = vmatprep.subr.mxu0 0.0
    %2368 = vmatpush1.msra.mxu0 0.0
    %2369 = vmatprep.subr.mxu0 0.0
    %2370 = vmatpush1.msra.mxu0 0.0
    %2371 = vmatprep.subr.mxu0 0.0
    %2372 = vmatpush1.msra.mxu0 0.0
    %2373 = vmatprep.subr.mxu0 0.0
    %2374 = vmatpush1.msra.mxu0 0.0
    %2375 = vmatprep.subr.mxu0 0.0
    %2376 = vmatpush1.msra.mxu0 0.0
    %2377 = vmatprep.subr.mxu0 0.0
    %2378 = vmatpush1.msra.mxu0 0.0
    %2379 = vmatprep.subr.mxu0 0.0
    %2380 = vmatpush1.msra.mxu0 0.0
    %2381 = vmatprep.subr.mxu0 0.0
    %2382 = vmatpush1.msra.mxu0 0.0
    %2383 = vmatprep.subr.mxu0 0.0
    %2384 = vmatpush1.msra.mxu0 0.0
    %2385 = vmatprep.subr.mxu0 0.0
    %2386 = vmatpush1.msra.mxu0 0.0
    %2387 = vmatprep.subr.mxu0 0.0
    %2388 = vmatpush1.msra.mxu0 0.0
    %2389 = vmatprep.subr.mxu0 0.0
    %2390 = vmatpush1.msra.mxu0 0.0
    %2391 = vmatprep.subr.mxu0 0.0
    %2392 = vmatpush1.msra.mxu0 0.0
    %2393 = vmatprep.subr.mxu0 0.0
    %2394 = vmatpush1.msra.mxu0 0.0
    %2395 = vmatprep.subr.mxu0 0.0
    %2396 = vmatpush1.msra.mxu0 0.0
    %2397 = vmatprep.subr.mxu0 0.0
    %2398 = vmatpush1.msra.mxu0 0.0
    %2399 = vmatprep.subr.mxu0 0.0
    %2400 = vmatpush1.msra.mxu0 0.0
    %2401 = vmatprep.subr.mxu0 0.0
    %2402 = vmatpush1.msra.mxu0 0.0
    %2403 = vmatprep.subr.mxu0 0.0
    %2404 = vmatpush1.msra.mxu0 0.0
    %2405 = vmatprep.mubr.f32.mxu0 0.0
    %2406 = vmatmul.mubr.f32.gmra.mrb[0].mxu0 %v2339
    %v2407 = vpop.f32.mrb[0].mxu0
    %v2408 = vadd.f32 0.0, %v2407
    %v2409 = vpop.f32.mrb[0].mxu0
    %2410 = vdwg.mxu0
    %v2412 = vsel %vm1851, %v2191, 0
    %2414 = vmatprep.subr.mxu0 0.0
    %2415 = vmatpush1.msra.mxu0 %v2185
    %2416 = vmatprep.subr.mxu0 0.0
    %2417 = vmatpush1.msra.mxu0 0.0
    %2418 = vmatprep.subr.mxu0 0.0
    %2419 = vmatpush1.msra.mxu0 0.0
    %2420 = vmatprep.subr.mxu0 0.0
    %2421 = vmatpush1.msra.mxu0 0.0
    %2422 = vmatprep.subr.mxu0 0.0
    %2423 = vmatpush1.msra.mxu0 0.0
    %2424 = vmatprep.subr.mxu0 0.0
    %2425 = vmatpush1.msra.mxu0 0.0
    %2426 = vmatprep.subr.mxu0 0.0
    %2427 = vmatpush1.msra.mxu0 0.0
    %2428 = vmatprep.subr.mxu0 0.0
    %2429 = vmatpush1.msra.mxu0 0.0
    %2430 = vmatprep.subr.mxu0 0.0
    %2431 = vmatpush1.msra.mxu0 0.0
    %2432 = vmatprep.subr.mxu0 0.0
    %2433 = vmatpush1.msra.mxu0 0.0
    %2434 = vmatprep.subr.mxu0 0.0
    %2435 = vmatpush1.msra.mxu0 0.0
    %2436 = vmatprep.subr.mxu0 0.0
    %2437 = vmatpush1.msra.mxu0 0.0
    %2438 = vmatprep.subr.mxu0 0.0
    %2439 = vmatpush1.msra.mxu0 0.0
    %2440 = vmatprep.subr.mxu0 0.0
    %2441 = vmatpush1.msra.mxu0 0.0
    %2442 = vmatprep.subr.mxu0 0.0
    %2443 = vmatpush1.msra.mxu0 0.0
    %2444 = vmatprep.subr.mxu0 0.0
    %2445 = vmatpush1.msra.mxu0 0.0
    %2446 = vmatprep.subr.mxu0 0.0
    %2447 = vmatpush1.msra.mxu0 0.0
    %2448 = vmatprep.subr.mxu0 0.0
    %2449 = vmatpush1.msra.mxu0 0.0
    %2450 = vmatprep.subr.mxu0 0.0
    %2451 = vmatpush1.msra.mxu0 0.0
    %2452 = vmatprep.subr.mxu0 0.0
    %2453 = vmatpush1.msra.mxu0 0.0
    %2454 = vmatprep.subr.mxu0 0.0
    %2455 = vmatpush1.msra.mxu0 0.0
    %2456 = vmatprep.subr.mxu0 0.0
    %2457 = vmatpush1.msra.mxu0 0.0
    %2458 = vmatprep.subr.mxu0 0.0
    %2459 = vmatpush1.msra.mxu0 0.0
    %2460 = vmatprep.subr.mxu0 0.0
    %2461 = vmatpush1.msra.mxu0 0.0
    %2462 = vmatprep.subr.mxu0 0.0
    %2463 = vmatpush1.msra.mxu0 0.0
    %2464 = vmatprep.subr.mxu0 0.0
    %2465 = vmatpush1.msra.mxu0 0.0
    %2466 = vmatprep.subr.mxu0 0.0
    %2467 = vmatpush1.msra.mxu0 0.0
    %2468 = vmatprep.subr.mxu0 0.0
    %2469 = vmatpush1.msra.mxu0 0.0
    %2470 = vmatprep.subr.mxu0 0.0
    %2471 = vmatpush1.msra.mxu0 0.0
    %2472 = vmatprep.subr.mxu0 0.0
    %2473 = vmatpush1.msra.mxu0 0.0
    %2474 = vmatprep.subr.mxu0 0.0
    %2475 = vmatpush1.msra.mxu0 0.0
    %2476 = vmatprep.subr.mxu0 0.0
    %2477 = vmatpush1.msra.mxu0 0.0
    %2478 = vmatprep.mubr.f32.mxu0 0.0
    %2479 = vmatmul.mubr.f32.gmra.mrb[0].mxu0 %v2412
    %v2480 = vpop.f32.mrb[0].mxu0
    %v2481 = vadd.f32 0.0, %v2480
    %v2482 = vpop.f32.mrb[0].mxu0
    %2483 = vdwg.mxu0
    %v2484 = vld [vmem:[%s9] sm:$0xff]
    %v2485 = vld [vmem:[%s9 + $0x8] sm:$0xff]
    %v2486 = vld [vmem:[%s9 + $0x10] sm:$0xff]
    %v2487 = vld [vmem:[%s9 + $0x18] sm:$0xff]
    %v2489 = vsel %vm503, %v2262, 0
    %v2492 = vsel %vm503, %v2335, 0
    %v2495 = vsel %vm503, %v2408, 0
    %v2498 = vsel %vm503, %v2481, 0
    %2500 = vmatprep.subr.mxu0 0.0
    %2501 = vmatpush1.msra.mxu0 %v2484
    %2502 = vmatprep.subr.mxu0 0.0
    %2503 = vmatpush1.msra.mxu0 %v2485
    %2504 = vmatprep.subr.mxu0 0.0
    %2505 = vmatpush1.msra.mxu0 %v2486
    %2506 = vmatprep.subr.mxu0 0.0
    %2507 = vmatpush1.msra.mxu0 %v2487
    %2508 = vmatprep.subr.mxu0 0.0
    %2509 = vmatpush1.msra.mxu0 0.0
    %2510 = vmatprep.subr.mxu0 0.0
    %2511 = vmatpush1.msra.mxu0 0.0
    %2512 = vmatprep.subr.mxu0 0.0
    %2513 = vmatpush1.msra.mxu0 0.0
    %2514 = vmatprep.subr.mxu0 0.0
    %2515 = vmatpush1.msra.mxu0 0.0
    %2516 = vmatprep.subr.mxu0 0.0
    %2517 = vmatpush1.msra.mxu0 0.0
    %2518 = vmatprep.subr.mxu0 0.0
    %2519 = vmatpush1.msra.mxu0 0.0
    %2520 = vmatprep.subr.mxu0 0.0
    %2521 = vmatpush1.msra.mxu0 0.0
    %2522 = vmatprep.subr.mxu0 0.0
    %2523 = vmatpush1.msra.mxu0 0.0
    %2524 = vmatprep.subr.mxu0 0.0
    %2525 = vmatpush1.msra.mxu0 0.0
    %2526 = vmatprep.subr.mxu0 0.0
    %2527 = vmatpush1.msra.mxu0 0.0
    %2528 = vmatprep.subr.mxu0 0.0
    %2529 = vmatpush1.msra.mxu0 0.0
    %2530 = vmatprep.subr.mxu0 0.0
    %2531 = vmatpush1.msra.mxu0 0.0
    %2532 = vmatprep.subr.mxu0 0.0
    %2533 = vmatpush1.msra.mxu0 0.0
    %2534 = vmatprep.subr.mxu0 0.0
    %2535 = vmatpush1.msra.mxu0 0.0
    %2536 = vmatprep.subr.mxu0 0.0
    %2537 = vmatpush1.msra.mxu0 0.0
    %2538 = vmatprep.subr.mxu0 0.0
    %2539 = vmatpush1.msra.mxu0 0.0
    %2540 = vmatprep.subr.mxu0 0.0
    %2541 = vmatpush1.msra.mxu0 0.0
    %2542 = vmatprep.subr.mxu0 0.0
    %2543 = vmatpush1.msra.mxu0 0.0
    %2544 = vmatprep.subr.mxu0 0.0
    %2545 = vmatpush1.msra.mxu0 0.0
    %2546 = vmatprep.subr.mxu0 0.0
    %2547 = vmatpush1.msra.mxu0 0.0
    %2548 = vmatprep.subr.mxu0 0.0
    %2549 = vmatpush1.msra.mxu0 0.0
    %2550 = vmatprep.subr.mxu0 0.0
    %2551 = vmatpush1.msra.mxu0 0.0
    %2552 = vmatprep.subr.mxu0 0.0
    %2553 = vmatpush1.msra.mxu0 0.0
    %2554 = vmatprep.subr.mxu0 0.0
    %2555 = vmatpush1.msra.mxu0 0.0
    %2556 = vmatprep.subr.mxu0 0.0
    %2557 = vmatpush1.msra.mxu0 0.0
    %2558 = vmatprep.subr.mxu0 0.0
    %2559 = vmatpush1.msra.mxu0 0.0
    %2560 = vmatprep.subr.mxu0 0.0
    %2561 = vmatpush1.msra.mxu0 0.0
    %2562 = vmatprep.subr.mxu0 0.0
    %2563 = vmatpush1.msra.mxu0 0.0
    %2564 = vmatprep.mubr.f32.mxu0 0.0
    %2565 = vmatmul.mubr.f32.gmra.mrb[0].mxu0 %v2489
    %v2566 = vpop.f32.mrb[0].mxu0
    %v2567 = vadd.f32 0.0, %v2566
    %v2568 = vpop.f32.mrb[0].mxu0
    %2569 = vmatprep.mubr.f32.mxu0 0.0
    %2570 = vmatmul.mubr.f32.gmra.mrb[0].mxu0 %v2492
    %v2571 = vpop.f32.mrb[0].mxu0
    %v2572 = vadd.f32 0.0, %v2571
    %v2573 = vpop.f32.mrb[0].mxu0
    %2574 = vmatprep.mubr.f32.mxu0 0.0
    %2575 = vmatmul.mubr.f32.gmra.mrb[0].mxu0 %v2495
    %v2576 = vpop.f32.mrb[0].mxu0
    %v2577 = vadd.f32 0.0, %v2576
    %v2578 = vpop.f32.mrb[0].mxu0
    %2579 = vmatprep.mubr.f32.mxu0 0.0
    %2580 = vmatmul.mubr.f32.gmra.mrb[0].mxu0 %v2498
    %v2581 = vpop.f32.mrb[0].mxu0
    %v2582 = vadd.f32 0.0, %v2581
    %v2583 = vpop.f32.mrb[0].mxu0
    %2584 = vdwg.mxu0
    %v2585 = vld [vmem:[%s8] sm:$0xff]
    %v2586 = vld [vmem:[%s8 + $0x8] sm:$0xff]
    %v2587 = vld [vmem:[%s8 + $0x10] sm:$0xff]
    %v2588 = vld [vmem:[%s8 + $0x18] sm:$0xff]
    %v2589 = vld [vmem:[%s10] sm:$0xff]
    %v2590 = vld [vmem:[%s10 + $0x8] sm:$0xff]
    %v2591 = vld [vmem:[%s10 + $0x10] sm:$0xff]
    %v2592 = vld [vmem:[%s10 + $0x18] sm:$0xff]
    %2593 = vmatprep.subr.mxu0 0.0
    %2594 = vmatpush1.msra.mxu0 %v2589
    %2595 = vmatprep.subr.mxu0 0.0
    %2596 = vmatpush1.msra.mxu0 %v2590
    %2597 = vmatprep.subr.mxu0 0.0
    %2598 = vmatpush1.msra.mxu0 %v2591
    %2599 = vmatprep.subr.mxu0 0.0
    %2600 = vmatpush1.msra.mxu0 %v2592
    %2601 = vmatprep.subr.mxu0 0.0
    %2602 = vmatpush1.msra.mxu0 0.0
    %2603 = vmatprep.subr.mxu0 0.0
    %2604 = vmatpush1.msra.mxu0 0.0
    %2605 = vmatprep.subr.mxu0 0.0
    %2606 = vmatpush1.msra.mxu0 0.0
    %2607 = vmatprep.subr.mxu0 0.0
    %2608 = vmatpush1.msra.mxu0 0.0
    %2609 = vmatprep.subr.mxu0 0.0
    %2610 = vmatpush1.msra.mxu0 0.0
    %2611 = vmatprep.subr.mxu0 0.0
    %2612 = vmatpush1.msra.mxu0 0.0
    %2613 = vmatprep.subr.mxu0 0.0
    %2614 = vmatpush1.msra.mxu0 0.0
    %2615 = vmatprep.subr.mxu0 0.0
    %2616 = vmatpush1.msra.mxu0 0.0
    %2617 = vmatprep.subr.mxu0 0.0
    %2618 = vmatpush1.msra.mxu0 0.0
    %2619 = vmatprep.subr.mxu0 0.0
    %2620 = vmatpush1.msra.mxu0 0.0
    %2621 = vmatprep.subr.mxu0 0.0
    %2622 = vmatpush1.msra.mxu0 0.0
    %2623 = vmatprep.subr.mxu0 0.0
    %2624 = vmatpush1.msra.mxu0 0.0
    %2625 = vmatprep.subr.mxu0 0.0
    %2626 = vmatpush1.msra.mxu0 0.0
    %2627 = vmatprep.subr.mxu0 0.0
    %2628 = vmatpush1.msra.mxu0 0.0
    %2629 = vmatprep.subr.mxu0 0.0
    %2630 = vmatpush1.msra.mxu0 0.0
    %2631 = vmatprep.subr.mxu0 0.0
    %2632 = vmatpush1.msra.mxu0 0.0
    %2633 = vmatprep.subr.mxu0 0.0
    %2634 = vmatpush1.msra.mxu0 0.0
    %2635 = vmatprep.subr.mxu0 0.0
    %2636 = vmatpush1.msra.mxu0 0.0
    %2637 = vmatprep.subr.mxu0 0.0
    %2638 = vmatpush1.msra.mxu0 0.0
    %2639 = vmatprep.subr.mxu0 0.0
    %2640 = vmatpush1.msra.mxu0 0.0
    %2641 = vmatprep.subr.mxu0 0.0
    %2642 = vmatpush1.msra.mxu0 0.0
    %2643 = vmatprep.subr.mxu0 0.0
    %2644 = vmatpush1.msra.mxu0 0.0
    %2645 = vmatprep.subr.mxu0 0.0
    %2646 = vmatpush1.msra.mxu0 0.0
    %2647 = vmatprep.subr.mxu0 0.0
    %2648 = vmatpush1.msra.mxu0 0.0
    %2649 = vmatprep.subr.mxu0 0.0
    %2650 = vmatpush1.msra.mxu0 0.0
    %2651 = vmatprep.subr.mxu0 0.0
    %2652 = vmatpush1.msra.mxu0 0.0
    %2653 = vmatprep.subr.mxu0 0.0
    %2654 = vmatpush1.msra.mxu0 0.0
    %2655 = vmatprep.subr.mxu0 0.0
    %2656 = vmatpush1.msra.mxu0 0.0
    %2657 = vmatprep.mubr.f32.mxu0 0.0
    %2658 = vmatmul.mubr.f32.gmra.mrb[0].mxu0 %v2489
    %v2659 = vpop.f32.mrb[0].mxu0
    %v2660 = vadd.f32 0.0, %v2659
    %v2661 = vpop.f32.mrb[0].mxu0
    %2662 = vmatprep.mubr.f32.mxu0 0.0
    %2663 = vmatmul.mubr.f32.gmra.mrb[0].mxu0 %v2492
    %v2664 = vpop.f32.mrb[0].mxu0
    %v2665 = vadd.f32 0.0, %v2664
    %v2666 = vpop.f32.mrb[0].mxu0
    %2667 = vmatprep.mubr.f32.mxu0 0.0
    %2668 = vmatmul.mubr.f32.gmra.mrb[0].mxu0 %v2495
    %v2669 = vpop.f32.mrb[0].mxu0
    %v2670 = vadd.f32 0.0, %v2669
    %v2671 = vpop.f32.mrb[0].mxu0
    %2672 = vmatprep.mubr.f32.mxu0 0.0
    %2673 = vmatmul.mubr.f32.gmra.mrb[0].mxu0 %v2498
    %v2674 = vpop.f32.mrb[0].mxu0
    %v2675 = vadd.f32 0.0, %v2674
    %v2676 = vpop.f32.mrb[0].mxu0
    %2677 = vdwg.mxu0
    %v2678 = vadd.f32 %v2585, %v2660
    %v2679 = vadd.f32 %v2586, %v2665
    %v2680 = vadd.f32 %v2587, %v2670
    %v2681 = vadd.f32 %v2588, %v2675
    %v2682 = vld [vmem:[%s6] sm:$0x7]
    %v2683 = vld [vmem:[%s6 + $0x4] sm:$0x7]
    %v2684 = vld [vmem:[%s6 + $0x8] sm:$0x7]
    %v2685 = vld [vmem:[%s6 + $0xc] sm:$0x7]
    %v2686 = vld [vmem:[%s7] sm:$0x7]
    %v2687 = vld [vmem:[%s7 + $0x4] sm:$0x7]
    %v2688 = vld [vmem:[%s7 + $0x8] sm:$0x7]
    %v2689 = vld [vmem:[%s7 + $0xc] sm:$0x7]
    %v2691 = vsel %vm1851, %v2682, 0
    %2693 = vmatprep.subr.mxu0 0.0
    %2694 = vmatpush1.msra.mxu0 %v2567
    %2695 = vmatprep.subr.mxu0 0.0
    %2696 = vmatpush1.msra.mxu0 0.0
    %2697 = vmatprep.subr.mxu0 0.0
    %2698 = vmatpush1.msra.mxu0 0.0
    %2699 = vmatprep.subr.mxu0 0.0
    %2700 = vmatpush1.msra.mxu0 0.0
    %2701 = vmatprep.subr.mxu0 0.0
    %2702 = vmatpush1.msra.mxu0 0.0
    %2703 = vmatprep.subr.mxu0 0.0
    %2704 = vmatpush1.msra.mxu0 0.0
    %2705 = vmatprep.subr.mxu0 0.0
    %2706 = vmatpush1.msra.mxu0 0.0
    %2707 = vmatprep.subr.mxu0 0.0
    %2708 = vmatpush1.msra.mxu0 0.0
    %2709 = vmatprep.subr.mxu0 0.0
    %2710 = vmatpush1.msra.mxu0 0.0
    %2711 = vmatprep.subr.mxu0 0.0
    %2712 = vmatpush1.msra.mxu0 0.0
    %2713 = vmatprep.subr.mxu0 0.0
    %2714 = vmatpush1.msra.mxu0 0.0
    %2715 = vmatprep.subr.mxu0 0.0
    %2716 = vmatpush1.msra.mxu0 0.0
    %2717 = vmatprep.subr.mxu0 0.0
    %2718 = vmatpush1.msra.mxu0 0.0
    %2719 = vmatprep.subr.mxu0 0.0
    %2720 = vmatpush1.msra.mxu0 0.0
    %2721 = vmatprep.subr.mxu0 0.0
    %2722 = vmatpush1.msra.mxu0 0.0
    %2723 = vmatprep.subr.mxu0 0.0
    %2724 = vmatpush1.msra.mxu0 0.0
    %2725 = vmatprep.subr.mxu0 0.0
    %2726 = vmatpush1.msra.mxu0 0.0
    %2727 = vmatprep.subr.mxu0 0.0
    %2728 = vmatpush1.msra.mxu0 0.0
    %2729 = vmatprep.subr.mxu0 0.0
    %2730 = vmatpush1.msra.mxu0 0.0
    %2731 = vmatprep.subr.mxu0 0.0
    %2732 = vmatpush1.msra.mxu0 0.0
    %2733 = vmatprep.subr.mxu0 0.0
    %2734 = vmatpush1.msra.mxu0 0.0
    %2735 = vmatprep.subr.mxu0 0.0
    %2736 = vmatpush1.msra.mxu0 0.0
    %2737 = vmatprep.subr.mxu0 0.0
    %2738 = vmatpush1.msra.mxu0 0.0
    %2739 = vmatprep.subr.mxu0 0.0
    %2740 = vmatpush1.msra.mxu0 0.0
    %2741 = vmatprep.subr.mxu0 0.0
    %2742 = vmatpush1.msra.mxu0 0.0
    %2743 = vmatprep.subr.mxu0 0.0
    %2744 = vmatpush1.msra.mxu0 0.0
    %2745 = vmatprep.subr.mxu0 0.0
    %2746 = vmatpush1.msra.mxu0 0.0
    %2747 = vmatprep.subr.mxu0 0.0
    %2748 = vmatpush1.msra.mxu0 0.0
    %2749 = vmatprep.subr.mxu0 0.0
    %2750 = vmatpush1.msra.mxu0 0.0
    %2751 = vmatprep.subr.mxu0 0.0
    %2752 = vmatpush1.msra.mxu0 0.0
    %2753 = vmatprep.subr.mxu0 0.0
    %2754 = vmatpush1.msra.mxu0 0.0
    %2755 = vmatprep.subr.mxu0 0.0
    %2756 = vmatpush1.msra.mxu0 0.0
    %2757 = vmatprep.mubr.f32.mxu0 0.0
    %2758 = vmatmul.mubr.f32.gmra.mrb[0].mxu0 %v2691
    %v2759 = vpop.f32.mrb[0].mxu0
    %v2760 = vadd.f32 0.0, %v2759
    %v2761 = vpop.f32.mrb[0].mxu0
    %2762 = vdwg.mxu0
    %v2764 = vsel %vm1851, %v2683, 0
    %2766 = vmatprep.subr.mxu0 0.0
    %2767 = vmatpush1.msra.mxu0 %v2572
    %2768 = vmatprep.subr.mxu0 0.0
    %2769 = vmatpush1.msra.mxu0 0.0
    %2770 = vmatprep.subr.mxu0 0.0
    %2771 = vmatpush1.msra.mxu0 0.0
    %2772 = vmatprep.subr.mxu0 0.0
    %2773 = vmatpush1.msra.mxu0 0.0
    %2774 = vmatprep.subr.mxu0 0.0
    %2775 = vmatpush1.msra.mxu0 0.0
    %2776 = vmatprep.subr.mxu0 0.0
    %2777 = vmatpush1.msra.mxu0 0.0
    %2778 = vmatprep.subr.mxu0 0.0
    %2779 = vmatpush1.msra.mxu0 0.0
    %2780 = vmatprep.subr.mxu0 0.0
    %2781 = vmatpush1.msra.mxu0 0.0
    %2782 = vmatprep.subr.mxu0 0.0
    %2783 = vmatpush1.msra.mxu0 0.0
    %2784 = vmatprep.subr.mxu0 0.0
    %2785 = vmatpush1.msra.mxu0 0.0
    %2786 = vmatprep.subr.mxu0 0.0
    %2787 = vmatpush1.msra.mxu0 0.0
    %2788 = vmatprep.subr.mxu0 0.0
    %2789 = vmatpush1.msra.mxu0 0.0
    %2790 = vmatprep.subr.mxu0 0.0
    %2791 = vmatpush1.msra.mxu0 0.0
    %2792 = vmatprep.subr.mxu0 0.0
    %2793 = vmatpush1.msra.mxu0 0.0
    %2794 = vmatprep.subr.mxu0 0.0
    %2795 = vmatpush1.msra.mxu0 0.0
    %2796 = vmatprep.subr.mxu0 0.0
    %2797 = vmatpush1.msra.mxu0 0.0
    %2798 = vmatprep.subr.mxu0 0.0
    %2799 = vmatpush1.msra.mxu0 0.0
    %2800 = vmatprep.subr.mxu0 0.0
    %2801 = vmatpush1.msra.mxu0 0.0
    %2802 = vmatprep.subr.mxu0 0.0
    %2803 = vmatpush1.msra.mxu0 0.0
    %2804 = vmatprep.subr.mxu0 0.0
    %2805 = vmatpush1.msra.mxu0 0.0
    %2806 = vmatprep.subr.mxu0 0.0
    %2807 = vmatpush1.msra.mxu0 0.0
    %2808 = vmatprep.subr.mxu0 0.0
    %2809 = vmatpush1.msra.mxu0 0.0
    %2810 = vmatprep.subr.mxu0 0.0
    %2811 = vmatpush1.msra.mxu0 0.0
    %2812 = vmatprep.subr.mxu0 0.0
    %2813 = vmatpush1.msra.mxu0 0.0
    %2814 = vmatprep.subr.mxu0 0.0
    %2815 = vmatpush1.msra.mxu0 0.0
    %2816 = vmatprep.subr.mxu0 0.0
    %2817 = vmatpush1.msra.mxu0 0.0
    %2818 = vmatprep.subr.mxu0 0.0
    %2819 = vmatpush1.msra.mxu0 0.0
    %2820 = vmatprep.subr.mxu0 0.0
    %2821 = vmatpush1.msra.mxu0 0.0
    %2822 = vmatprep.subr.mxu0 0.0
    %2823 = vmatpush1.msra.mxu0 0.0
    %2824 = vmatprep.subr.mxu0 0.0
    %2825 = vmatpush1.msra.mxu0 0.0
    %2826 = vmatprep.subr.mxu0 0.0
    %2827 = vmatpush1.msra.mxu0 0.0
    %2828 = vmatprep.subr.mxu0 0.0
    %2829 = vmatpush1.msra.mxu0 0.0
    %2830 = vmatprep.mubr.f32.mxu0 0.0
    %2831 = vmatmul.mubr.f32.gmra.mrb[0].mxu0 %v2764
    %v2832 = vpop.f32.mrb[0].mxu0
    %v2833 = vadd.f32 0.0, %v2832
    %v2834 = vpop.f32.mrb[0].mxu0
    %2835 = vdwg.mxu0
    %v2837 = vsel %vm1851, %v2684, 0
    %2839 = vmatprep.subr.mxu0 0.0
    %2840 = vmatpush1.msra.mxu0 %v2577
    %2841 = vmatprep.subr.mxu0 0.0
    %2842 = vmatpush1.msra.mxu0 0.0
    %2843 = vmatprep.subr.mxu0 0.0
    %2844 = vmatpush1.msra.mxu0 0.0
    %2845 = vmatprep.subr.mxu0 0.0
    %2846 = vmatpush1.msra.mxu0 0.0
    %2847 = vmatprep.subr.mxu0 0.0
    %2848 = vmatpush1.msra.mxu0 0.0
    %2849 = vmatprep.subr.mxu0 0.0
    %2850 = vmatpush1.msra.mxu0 0.0
    %2851 = vmatprep.subr.mxu0 0.0
    %2852 = vmatpush1.msra.mxu0 0.0
    %2853 = vmatprep.subr.mxu0 0.0
    %2854 = vmatpush1.msra.mxu0 0.0
    %2855 = vmatprep.subr.mxu0 0.0
    %2856 = vmatpush1.msra.mxu0 0.0
    %2857 = vmatprep.subr.mxu0 0.0
    %2858 = vmatpush1.msra.mxu0 0.0
    %2859 = vmatprep.subr.mxu0 0.0
    %2860 = vmatpush1.msra.mxu0 0.0
    %2861 = vmatprep.subr.mxu0 0.0
    %2862 = vmatpush1.msra.mxu0 0.0
    %2863 = vmatprep.subr.mxu0 0.0
    %2864 = vmatpush1.msra.mxu0 0.0
    %2865 = vmatprep.subr.mxu0 0.0
    %2866 = vmatpush1.msra.mxu0 0.0
    %2867 = vmatprep.subr.mxu0 0.0
    %2868 = vmatpush1.msra.mxu0 0.0
    %2869 = vmatprep.subr.mxu0 0.0
    %2870 = vmatpush1.msra.mxu0 0.0
    %2871 = vmatprep.subr.mxu0 0.0
    %2872 = vmatpush1.msra.mxu0 0.0
    %2873 = vmatprep.subr.mxu0 0.0
    %2874 = vmatpush1.msra.mxu0 0.0
    %2875 = vmatprep.subr.mxu0 0.0
    %2876 = vmatpush1.msra.mxu0 0.0
    %2877 = vmatprep.subr.mxu0 0.0
    %2878 = vmatpush1.msra.mxu0 0.0
    %2879 = vmatprep.subr.mxu0 0.0
    %2880 = vmatpush1.msra.mxu0 0.0
    %2881 = vmatprep.subr.mxu0 0.0
    %2882 = vmatpush1.msra.mxu0 0.0
    %2883 = vmatprep.subr.mxu0 0.0
    %2884 = vmatpush1.msra.mxu0 0.0
    %2885 = vmatprep.subr.mxu0 0.0
    %2886 = vmatpush1.msra.mxu0 0.0
    %2887 = vmatprep.subr.mxu0 0.0
    %2888 = vmatpush1.msra.mxu0 0.0
    %2889 = vmatprep.subr.mxu0 0.0
    %2890 = vmatpush1.msra.mxu0 0.0
    %2891 = vmatprep.subr.mxu0 0.0
    %2892 = vmatpush1.msra.mxu0 0.0
    %2893 = vmatprep.subr.mxu0 0.0
    %2894 = vmatpush1.msra.mxu0 0.0
    %2895 = vmatprep.subr.mxu0 0.0
    %2896 = vmatpush1.msra.mxu0 0.0
    %2897 = vmatprep.subr.mxu0 0.0
    %2898 = vmatpush1.msra.mxu0 0.0
    %2899 = vmatprep.subr.mxu0 0.0
    %2900 = vmatpush1.msra.mxu0 0.0
    %2901 = vmatprep.subr.mxu0 0.0
    %2902 = vmatpush1.msra.mxu0 0.0
    %2903 = vmatprep.mubr.f32.mxu0 0.0
    %2904 = vmatmul.mubr.f32.gmra.mrb[0].mxu0 %v2837
    %v2905 = vpop.f32.mrb[0].mxu0
    %v2906 = vadd.f32 0.0, %v2905
    %v2907 = vpop.f32.mrb[0].mxu0
    %2908 = vdwg.mxu0
    %v2910 = vsel %vm1851, %v2685, 0
    %2912 = vmatprep.subr.mxu0 0.0
    %2913 = vmatpush1.msra.mxu0 %v2582
    %2914 = vmatprep.subr.mxu0 0.0
    %2915 = vmatpush1.msra.mxu0 0.0
    %2916 = vmatprep.subr.mxu0 0.0
    %2917 = vmatpush1.msra.mxu0 0.0
    %2918 = vmatprep.subr.mxu0 0.0
    %2919 = vmatpush1.msra.mxu0 0.0
    %2920 = vmatprep.subr.mxu0 0.0
    %2921 = vmatpush1.msra.mxu0 0.0
    %2922 = vmatprep.subr.mxu0 0.0
    %2923 = vmatpush1.msra.mxu0 0.0
    %2924 = vmatprep.subr.mxu0 0.0
    %2925 = vmatpush1.msra.mxu0 0.0
    %2926 = vmatprep.subr.mxu0 0.0
    %2927 = vmatpush1.msra.mxu0 0.0
    %2928 = vmatprep.subr.mxu0 0.0
    %2929 = vmatpush1.msra.mxu0 0.0
    %2930 = vmatprep.subr.mxu0 0.0
    %2931 = vmatpush1.msra.mxu0 0.0
    %2932 = vmatprep.subr.mxu0 0.0
    %2933 = vmatpush1.msra.mxu0 0.0
    %2934 = vmatprep.subr.mxu0 0.0
    %2935 = vmatpush1.msra.mxu0 0.0
    %2936 = vmatprep.subr.mxu0 0.0
    %2937 = vmatpush1.msra.mxu0 0.0
    %2938 = vmatprep.subr.mxu0 0.0
    %2939 = vmatpush1.msra.mxu0 0.0
    %2940 = vmatprep.subr.mxu0 0.0
    %2941 = vmatpush1.msra.mxu0 0.0
    %2942 = vmatprep.subr.mxu0 0.0
    %2943 = vmatpush1.msra.mxu0 0.0
    %2944 = vmatprep.subr.mxu0 0.0
    %2945 = vmatpush1.msra.mxu0 0.0
    %2946 = vmatprep.subr.mxu0 0.0
    %2947 = vmatpush1.msra.mxu0 0.0
    %2948 = vmatprep.subr.mxu0 0.0
    %2949 = vmatpush1.msra.mxu0 0.0
    %2950 = vmatprep.subr.mxu0 0.0
    %2951 = vmatpush1.msra.mxu0 0.0
    %2952 = vmatprep.subr.mxu0 0.0
    %2953 = vmatpush1.msra.mxu0 0.0
    %2954 = vmatprep.subr.mxu0 0.0
    %2955 = vmatpush1.msra.mxu0 0.0
    %2956 = vmatprep.subr.mxu0 0.0
    %2957 = vmatpush1.msra.mxu0 0.0
    %2958 = vmatprep.subr.mxu0 0.0
    %2959 = vmatpush1.msra.mxu0 0.0
    %2960 = vmatprep.subr.mxu0 0.0
    %2961 = vmatpush1.msra.mxu0 0.0
    %2962 = vmatprep.subr.mxu0 0.0
    %2963 = vmatpush1.msra.mxu0 0.0
    %2964 = vmatprep.subr.mxu0 0.0
    %2965 = vmatpush1.msra.mxu0 0.0
    %2966 = vmatprep.subr.mxu0 0.0
    %2967 = vmatpush1.msra.mxu0 0.0
    %2968 = vmatprep.subr.mxu0 0.0
    %2969 = vmatpush1.msra.mxu0 0.0
    %2970 = vmatprep.subr.mxu0 0.0
    %2971 = vmatpush1.msra.mxu0 0.0
    %2972 = vmatprep.subr.mxu0 0.0
    %2973 = vmatpush1.msra.mxu0 0.0
    %2974 = vmatprep.subr.mxu0 0.0
    %2975 = vmatpush1.msra.mxu0 0.0
    %2976 = vmatprep.mubr.f32.mxu0 0.0
    %2977 = vmatmul.mubr.f32.gmra.mrb[0].mxu0 %v2910
    %v2978 = vpop.f32.mrb[0].mxu0
    %v2979 = vadd.f32 0.0, %v2978
    %v2980 = vpop.f32.mrb[0].mxu0
    %2981 = vdwg.mxu0
    %v2982 = vadd.f32 %v2686, %v2760
    %v2983 = vadd.f32 %v2687, %v2833
    %v2984 = vadd.f32 %v2688, %v2906
    %v2985 = vadd.f32 %v2689, %v2979
    %v2991 = vunpack.c.l.s4 1966171168
    %v2992 = vunpack.c.0.s8 %v2991
    %v2993 = vlaneseq
    %v2994 = vshrl.u32 %v2993, 7
    %v2995 = vsub.s32 %v2992, %v2994
    %v2996 = vrot.slane %v2982, %v2995
    %v2997 = vcombine.high %v2996, %v2996
    %v2999 = vunpack.c.l.s4 1966171168
    %v3000 = vunpack.c.0.s8 %v2999
    %v3001 = vlaneseq
    %v3002 = vshrl.u32 %v3001, 7
    %v3003 = vsub.s32 %v3000, %v3002
    %v3004 = vrot.slane %v2996, %v3003
    %v3006 = vunpack.c.l.s4 1966171168
    %v3007 = vunpack.c.0.s8 %v3006
    %v3008 = vlaneseq
    %v3009 = vshrl.u32 %v3008, 7
    %v3010 = vsub.s32 %v3007, %v3009
    %v3011 = vrot.slane %v2997, %v3010
    %v3012 = vcombine.high %v3004, %v3004
    %v3014 = vunpack.c.l.s4 1966171168
    %v3015 = vunpack.c.0.s8 %v3014
    %v3016 = vlaneseq
    %v3017 = vshrl.u32 %v3016, 7
    %v3018 = vsub.s32 %v3015, %v3017
    %v3019 = vrot.slane %v2983, %v3018
    %v3020 = vcombine.high %v3019, %v3019
    %v3022 = vunpack.c.l.s4 1966171168
    %v3023 = vunpack.c.0.s8 %v3022
    %v3024 = vlaneseq
    %v3025 = vshrl.u32 %v3024, 7
    %v3026 = vsub.s32 %v3023, %v3025
    %v3027 = vrot.slane %v3019, %v3026
    %v3029 = vunpack.c.l.s4 1966171168
    %v3030 = vunpack.c.0.s8 %v3029
    %v3031 = vlaneseq
    %v3032 = vshrl.u32 %v3031, 7
    %v3033 = vsub.s32 %v3030, %v3032
    %v3034 = vrot.slane %v3020, %v3033
    %v3035 = vcombine.high %v3027, %v3027
    %v3037 = vunpack.c.l.s4 1966171168
    %v3038 = vunpack.c.0.s8 %v3037
    %v3039 = vlaneseq
    %v3040 = vshrl.u32 %v3039, 7
    %v3041 = vsub.s32 %v3038, %v3040
    %v3042 = vrot.slane %v2984, %v3041
    %v3043 = vcombine.high %v3042, %v3042
    %v3045 = vunpack.c.l.s4 1966171168
    %v3046 = vunpack.c.0.s8 %v3045
    %v3047 = vlaneseq
    %v3048 = vshrl.u32 %v3047, 7
    %v3049 = vsub.s32 %v3046, %v3048
    %v3050 = vrot.slane %v3042, %v3049
    %v3052 = vunpack.c.l.s4 1966171168
    %v3053 = vunpack.c.0.s8 %v3052
    %v3054 = vlaneseq
    %v3055 = vshrl.u32 %v3054, 7
    %v3056 = vsub.s32 %v3053, %v3055
    %v3057 = vrot.slane %v3043, %v3056
    %v3058 = vcombine.high %v3050, %v3050
    %v3060 = vunpack.c.l.s4 1966171168
    %v3061 = vunpack.c.0.s8 %v3060
    %v3062 = vlaneseq
    %v3063 = vshrl.u32 %v3062, 7
    %v3064 = vsub.s32 %v3061, %v3063
    %v3065 = vrot.slane %v2985, %v3064
    %v3066 = vcombine.high %v3065, %v3065
    %v3068 = vunpack.c.l.s4 1966171168
    %v3069 = vunpack.c.0.s8 %v3068
    %v3070 = vlaneseq
    %v3071 = vshrl.u32 %v3070, 7
    %v3072 = vsub.s32 %v3069, %v3071
    %v3073 = vrot.slane %v3065, %v3072
    %v3075 = vunpack.c.l.s4 1966171168
    %v3076 = vunpack.c.0.s8 %v3075
    %v3077 = vlaneseq
    %v3078 = vshrl.u32 %v3077, 7
    %v3079 = vsub.s32 %v3076, %v3078
    %v3080 = vrot.slane %v3066, %v3079
    %v3081 = vcombine.high %v3073, %v3073
    %v3082 = vlaneseq
    %v3083 = vshrl.u32 %v3082, 7
    %v3084 = vsub.s32 0, %v3083
    %v3085 = vrot.slane %v3004, %v3084
    %v3086 = vlaneseq
    %v3087 = vshrl.u32 %v3086, 7
    %v3088 = vsub.s32 0, %v3087
    %v3089 = vrot.slane %v3011, %v3088
    %v3090 = vlaneseq
    %v3091 = vshrl.u32 %v3090, 7
    %v3092 = vsub.s32 0, %v3091
    %v3093 = vrot.slane %v3012, %v3092
    %v3094 = vlaneseq
    %v3095 = vshrl.u32 %v3094, 7
    %v3096 = vsub.s32 0, %v3095
    %v3097 = vrot.slane %v3027, %v3096
    %v3098 = vlaneseq
    %v3099 = vshrl.u32 %v3098, 7
    %v3100 = vsub.s32 0, %v3099
    %v3101 = vrot.slane %v3034, %v3100
    %v3102 = vlaneseq
    %v3103 = vshrl.u32 %v3102, 7
    %v3104 = vsub.s32 0, %v3103
    %v3105 = vrot.slane %v3035, %v3104
    %v3106 = vlaneseq
    %v3107 = vshrl.u32 %v3106, 7
    %v3108 = vsub.s32 0, %v3107
    %v3109 = vrot.slane %v3050, %v3108
    %v3110 = vlaneseq
    %v3111 = vshrl.u32 %v3110, 7
    %v3112 = vsub.s32 0, %v3111
    %v3113 = vrot.slane %v3057, %v3112
    %v3114 = vlaneseq
    %v3115 = vshrl.u32 %v3114, 7
    %v3116 = vsub.s32 0, %v3115
    %v3117 = vrot.slane %v3058, %v3116
    %v3118 = vlaneseq
    %v3119 = vshrl.u32 %v3118, 7
    %v3120 = vsub.s32 0, %v3119
    %v3121 = vrot.slane %v3073, %v3120
    %v3122 = vlaneseq
    %v3123 = vshrl.u32 %v3122, 7
    %v3124 = vsub.s32 0, %v3123
    %v3125 = vrot.slane %v3080, %v3124
    %v3126 = vlaneseq
    %v3127 = vshrl.u32 %v3126, 7
    %v3128 = vsub.s32 0, %v3127
    %v3129 = vrot.slane %v3081, %v3128
    %v3142 = vadd.f32 %v3085, %v2678
    %v3143 = vadd.f32 %v3089, %v2678
    %v3144 = vadd.f32 %v3093, %v2678
    %v3145 = vadd.f32 %v3097, %v2679
    %v3146 = vadd.f32 %v3101, %v2679
    %v3147 = vadd.f32 %v3105, %v2679
    %v3148 = vadd.f32 %v3109, %v2680
    %v3149 = vadd.f32 %v3113, %v2680
    %v3150 = vadd.f32 %v3117, %v2680
    %v3151 = vadd.f32 %v3121, %v2681
    %v3152 = vadd.f32 %v3125, %v2681
    %v3153 = vadd.f32 %v3129, %v2681
    %v3154 = vxor.u32 %v3142, 2147483648
    %v3155 = vxor.u32 %v3143, 2147483648
    %v3156 = vxor.u32 %v3144, 2147483648
    %v3157 = vxor.u32 %v3145, 2147483648
    %v3158 = vxor.u32 %v3146, 2147483648
    %v3159 = vxor.u32 %v3147, 2147483648
    %v3160 = vxor.u32 %v3148, 2147483648
    %v3161 = vxor.u32 %v3149, 2147483648
    %v3162 = vxor.u32 %v3150, 2147483648
    %v3163 = vxor.u32 %v3151, 2147483648
    %v3164 = vxor.u32 %v3152, 2147483648
    %v3165 = vxor.u32 %v3153, 2147483648
    %v3166 = vmul.f32 %v3154, 1.442695
    %v3167 = vpow.pop %v3166
    %v3168 = vmul.f32 %v3155, 1.442695
    %v3169 = vpow.pop %v3168
    %v3170 = vmul.f32 %v3156, 1.442695
    %v3171 = vpow.pop %v3170
    %v3172 = vmul.f32 %v3157, 1.442695
    %v3173 = vpow.pop %v3172
    %v3174 = vmul.f32 %v3158, 1.442695
    %v3175 = vpow.pop %v3174
    %v3176 = vmul.f32 %v3159, 1.442695
    %v3177 = vpow.pop %v3176
    %v3178 = vmul.f32 %v3160, 1.442695
    %v3179 = vpow.pop %v3178
    %v3180 = vmul.f32 %v3161, 1.442695
    %v3181 = vpow.pop %v3180
    %v3182 = vmul.f32 %v3162, 1.442695
    %v3183 = vpow.pop %v3182
    %v3184 = vmul.f32 %v3163, 1.442695
    %v3185 = vpow.pop %v3184
    %v3186 = vmul.f32 %v3164, 1.442695
    %v3187 = vpow.pop %v3186
    %v3188 = vmul.f32 %v3165, 1.442695
    %v3189 = vpow.pop %v3188
    %v3190 = vadd.f32 %v3167, 1.0
    %v3191 = vadd.f32 %v3169, 1.0
    %v3192 = vadd.f32 %v3171, 1.0
    %v3193 = vadd.f32 %v3173, 1.0
    %v3194 = vadd.f32 %v3175, 1.0
    %v3195 = vadd.f32 %v3177, 1.0
    %v3196 = vadd.f32 %v3179, 1.0
    %v3197 = vadd.f32 %v3181, 1.0
    %v3198 = vadd.f32 %v3183, 1.0
    %v3199 = vadd.f32 %v3185, 1.0
    %v3200 = vadd.f32 %v3187, 1.0
    %v3201 = vadd.f32 %v3189, 1.0
    %v3202 = vrcp.pop %v3190
    %v3203 = vmul.f32 1.0, %v3202
    %v3204 = vrcp.pop %v3191
    %v3205 = vmul.f32 1.0, %v3204
    %v3206 = vrcp.pop %v3192
    %v3207 = vmul.f32 1.0, %v3206
    %v3208 = vrcp.pop %v3193
    %v3209 = vmul.f32 1.0, %v3208
    %v3210 = vrcp.pop %v3194
    %v3211 = vmul.f32 1.0, %v3210
    %v3212 = vrcp.pop %v3195
    %v3213 = vmul.f32 1.0, %v3212
    %v3214 = vrcp.pop %v3196
    %v3215 = vmul.f32 1.0, %v3214
    %v3216 = vrcp.pop %v3197
    %v3217 = vmul.f32 1.0, %v3216
    %v3218 = vrcp.pop %v3198
    %v3219 = vmul.f32 1.0, %v3218
    %v3220 = vrcp.pop %v3199
    %v3221 = vmul.f32 1.0, %v3220
    %v3222 = vrcp.pop %v3200
    %v3223 = vmul.f32 1.0, %v3222
    %v3224 = vrcp.pop %v3201
    %v3225 = vmul.f32 1.0, %v3224
    %v3226 = vld [vmem:[%s11] sm:$0x1]
    %v3228 = vlaneseq
    %v3229 = vshrl.u32 %v3228, 7
    %v3230 = vsub.s32 0, %v3229
    %v3231 = vrot.slane %v3226, %v3230
    %v3233 = vmul.f32 %v3203, %v3231
    %v3234 = vmul.f32 %v3205, %v3231
    %v3235 = vmul.f32 %v3207, %v3231
    %v3236 = vmul.f32 %v3209, %v3231
    %v3237 = vmul.f32 %v3211, %v3231
    %v3238 = vmul.f32 %v3213, %v3231
    %v3239 = vmul.f32 %v3215, %v3231
    %v3240 = vmul.f32 %v3217, %v3231
    %v3241 = vmul.f32 %v3219, %v3231
    %v3242 = vmul.f32 %v3221, %v3231
    %v3243 = vmul.f32 %v3223, %v3231
    %v3244 = vmul.f32 %v3225, %v3231
    %v3245 = vsel %vm503, %v3233, 0.0
    %3246 = vadd.xlane.f32.xlu0 %v3245
    %v3247 = vpop.xlane.xlu0 %3246
    %v3248 = vsel %vm503, %v3234, 0.0
    %3249 = vadd.xlane.f32.xlu0 %v3248
    %v3250 = vpop.xlane.xlu0 %3249
    %v3251 = vsel %vm503, %v3235, 0.0
    %3252 = vadd.xlane.f32.xlu0 %v3251
    %v3253 = vpop.xlane.xlu0 %3252
    %v3254 = vsel %vm503, %v3236, 0.0
    %3255 = vadd.xlane.f32.xlu0 %v3254
    %v3256 = vpop.xlane.xlu0 %3255
    %v3257 = vsel %vm503, %v3237, 0.0
    %3258 = vadd.xlane.f32.xlu0 %v3257
    %v3259 = vpop.xlane.xlu0 %3258
    %v3260 = vsel %vm503, %v3238, 0.0
    %3261 = vadd.xlane.f32.xlu0 %v3260
    %v3262 = vpop.xlane.xlu0 %3261
    %v3263 = vsel %vm503, %v3239, 0.0
    %3264 = vadd.xlane.f32.xlu0 %v3263
    %v3265 = vpop.xlane.xlu0 %3264
    %v3266 = vsel %vm503, %v3240, 0.0
    %3267 = vadd.xlane.f32.xlu0 %v3266
    %v3268 = vpop.xlane.xlu0 %3267
    %v3269 = vsel %vm503, %v3241, 0.0
    %3270 = vadd.xlane.f32.xlu0 %v3269
    %v3271 = vpop.xlane.xlu0 %3270
    %v3272 = vsel %vm503, %v3242, 0.0
    %3273 = vadd.xlane.f32.xlu0 %v3272
    %v3274 = vpop.xlane.xlu0 %3273
    %v3275 = vsel %vm503, %v3243, 0.0
    %3276 = vadd.xlane.f32.xlu0 %v3275
    %v3277 = vpop.xlane.xlu0 %3276
    %v3278 = vsel %vm503, %v3244, 0.0
    %3279 = vadd.xlane.f32.xlu0 %v3278
    %v3280 = vpop.xlane.xlu0 %3279
    %v3281 = vld [vmem:[%s12] sm:$0xf]
    %v3282 = vlaneseq
    %v3283 = vshrl.u32 %v3282, 7
    %v3284 = vsub.s32 0, %v3283
    %v3285 = vrot.slane %v3281, %v3284
    %3287 = vbcast.lane.b32.xlu0 %v3285, 256
    %v3288 = vpop.permute.xlu0 %3287
    %v3289 = vlaneseq
    %v3290 = vshrl.u32 %v3289, 7
    %v3291 = vsub.s32 1, %v3290
    %v3292 = vrot.slane %v3281, %v3291
    %3294 = vbcast.lane.b32.xlu0 %v3292, 256
    %v3295 = vpop.permute.xlu0 %3294
    %v3296 = vlaneseq
    %v3297 = vshrl.u32 %v3296, 7
    %v3298 = vsub.s32 2, %v3297
    %v3299 = vrot.slane %v3281, %v3298
    %3301 = vbcast.lane.b32.xlu0 %v3299, 256
    %v3302 = vpop.permute.xlu0 %3301
    %v3303 = vlaneseq
    %v3304 = vshrl.u32 %v3303, 7
    %v3305 = vsub.s32 3, %v3304
    %v3306 = vrot.slane %v3281, %v3305
    %3308 = vbcast.lane.b32.xlu0 %v3306, 256
    %v3309 = vpop.permute.xlu0 %3308
    %v3310 = vmul.f32 %v2262, %v3288
    %v3311 = vmul.f32 %v2335, %v3295
    %v3312 = vmul.f32 %v2408, %v3302
    %v3313 = vmul.f32 %v2481, %v3309
    %v3317 = vlaneseq
    %v3318 = vshrl.u32 %v3317, 7
    %v3319 = vsub.s32 %v1249, %v3318
    %v3320 = vrot.slane %v3247, %v3319
    %v3321 = vlaneseq
    %v3322 = vshrl.u32 %v3321, 7
    %v3323 = vsub.s32 %v1249, %v3322
    %v3324 = vrot.slane %v3250, %v3323
    %v3325 = vlaneseq
    %v3326 = vshrl.u32 %v3325, 7
    %v3327 = vsub.s32 %v1249, %v3326
    %v3328 = vrot.slane %v3253, %v3327
    %v3329 = vsel %vm1808, %v3324, %v3320
    %v3330 = vsel %vm1810, %v3328, %v3329
    %v3331 = vsel %vm1851, %v3330, 0
    %3333 = vmatprep.subr.mxu0 0.0
    %3334 = vmatpush1.msra.mxu0 %v3310
    %3335 = vmatprep.subr.mxu0 0.0
    %3336 = vmatpush1.msra.mxu0 0.0
    %3337 = vmatprep.subr.mxu0 0.0
    %3338 = vmatpush1.msra.mxu0 0.0
    %3339 = vmatprep.subr.mxu0 0.0
    %3340 = vmatpush1.msra.mxu0 0.0
    %3341 = vmatprep.subr.mxu0 0.0
    %3342 = vmatpush1.msra.mxu0 0.0
    %3343 = vmatprep.subr.mxu0 0.0
    %3344 = vmatpush1.msra.mxu0 0.0
    %3345 = vmatprep.subr.mxu0 0.0
    %3346 = vmatpush1.msra.mxu0 0.0
    %3347 = vmatprep.subr.mxu0 0.0
    %3348 = vmatpush1.msra.mxu0 0.0
    %3349 = vmatprep.subr.mxu0 0.0
    %3350 = vmatpush1.msra.mxu0 0.0
    %3351 = vmatprep.subr.mxu0 0.0
    %3352 = vmatpush1.msra.mxu0 0.0
    %3353 = vmatprep.subr.mxu0 0.0
    %3354 = vmatpush1.msra.mxu0 0.0
    %3355 = vmatprep.subr.mxu0 0.0
    %3356 = vmatpush1.msra.mxu0 0.0
    %3357 = vmatprep.subr.mxu0 0.0
    %3358 = vmatpush1.msra.mxu0 0.0
    %3359 = vmatprep.subr.mxu0 0.0
    %3360 = vmatpush1.msra.mxu0 0.0
    %3361 = vmatprep.subr.mxu0 0.0
    %3362 = vmatpush1.msra.mxu0 0.0
    %3363 = vmatprep.subr.mxu0 0.0
    %3364 = vmatpush1.msra.mxu0 0.0
    %3365 = vmatprep.subr.mxu0 0.0
    %3366 = vmatpush1.msra.mxu0 0.0
    %3367 = vmatprep.subr.mxu0 0.0
    %3368 = vmatpush1.msra.mxu0 0.0
    %3369 = vmatprep.subr.mxu0 0.0
    %3370 = vmatpush1.msra.mxu0 0.0
    %3371 = vmatprep.subr.mxu0 0.0
    %3372 = vmatpush1.msra.mxu0 0.0
    %3373 = vmatprep.subr.mxu0 0.0
    %3374 = vmatpush1.msra.mxu0 0.0
    %3375 = vmatprep.subr.mxu0 0.0
    %3376 = vmatpush1.msra.mxu0 0.0
    %3377 = vmatprep.subr.mxu0 0.0
    %3378 = vmatpush1.msra.mxu0 0.0
    %3379 = vmatprep.subr.mxu0 0.0
    %3380 = vmatpush1.msra.mxu0 0.0
    %3381 = vmatprep.subr.mxu0 0.0
    %3382 = vmatpush1.msra.mxu0 0.0
    %3383 = vmatprep.subr.mxu0 0.0
    %3384 = vmatpush1.msra.mxu0 0.0
    %3385 = vmatprep.subr.mxu0 0.0
    %3386 = vmatpush1.msra.mxu0 0.0
    %3387 = vmatprep.subr.mxu0 0.0
    %3388 = vmatpush1.msra.mxu0 0.0
    %3389 = vmatprep.subr.mxu0 0.0
    %3390 = vmatpush1.msra.mxu0 0.0
    %3391 = vmatprep.subr.mxu0 0.0
    %3392 = vmatpush1.msra.mxu0 0.0
    %3393 = vmatprep.subr.mxu0 0.0
    %3394 = vmatpush1.msra.mxu0 0.0
    %3395 = vmatprep.subr.mxu0 0.0
    %3396 = vmatpush1.msra.mxu0 0.0
    %3397 = vmatprep.mubr.f32.mxu0 0.0
    %3398 = vmatmul.mubr.f32.gmra.mrb[0].mxu0 %v3331
    %v3399 = vpop.f32.mrb[0].mxu0
    %v3400 = vadd.f32 0.0, %v3399
    %v3401 = vpop.f32.mrb[0].mxu0
    %3402 = vdwg.mxu0
    %v3406 = vlaneseq
    %v3407 = vshrl.u32 %v3406, 7
    %v3408 = vsub.s32 %v1249, %v3407
    %v3409 = vrot.slane %v3256, %v3408
    %v3410 = vlaneseq
    %v3411 = vshrl.u32 %v3410, 7
    %v3412 = vsub.s32 %v1249, %v3411
    %v3413 = vrot.slane %v3259, %v3412
    %v3414 = vlaneseq
    %v3415 = vshrl.u32 %v3414, 7
    %v3416 = vsub.s32 %v1249, %v3415
    %v3417 = vrot.slane %v3262, %v3416
    %v3418 = vsel %vm1808, %v3413, %v3409
    %v3419 = vsel %vm1810, %v3417, %v3418
    %v3420 = vsel %vm1851, %v3419, 0
    %3422 = vmatprep.subr.mxu0 0.0
    %3423 = vmatpush1.msra.mxu0 %v3311
    %3424 = vmatprep.subr.mxu0 0.0
    %3425 = vmatpush1.msra.mxu0 0.0
    %3426 = vmatprep.subr.mxu0 0.0
    %3427 = vmatpush1.msra.mxu0 0.0
    %3428 = vmatprep.subr.mxu0 0.0
    %3429 = vmatpush1.msra.mxu0 0.0
    %3430 = vmatprep.subr.mxu0 0.0
    %3431 = vmatpush1.msra.mxu0 0.0
    %3432 = vmatprep.subr.mxu0 0.0
    %3433 = vmatpush1.msra.mxu0 0.0
    %3434 = vmatprep.subr.mxu0 0.0
    %3435 = vmatpush1.msra.mxu0 0.0
    %3436 = vmatprep.subr.mxu0 0.0
    %3437 = vmatpush1.msra.mxu0 0.0
    %3438 = vmatprep.subr.mxu0 0.0
    %3439 = vmatpush1.msra.mxu0 0.0
    %3440 = vmatprep.subr.mxu0 0.0
    %3441 = vmatpush1.msra.mxu0 0.0
    %3442 = vmatprep.subr.mxu0 0.0
    %3443 = vmatpush1.msra.mxu0 0.0
    %3444 = vmatprep.subr.mxu0 0.0
    %3445 = vmatpush1.msra.mxu0 0.0
    %3446 = vmatprep.subr.mxu0 0.0
    %3447 = vmatpush1.msra.mxu0 0.0
    %3448 = vmatprep.subr.mxu0 0.0
    %3449 = vmatpush1.msra.mxu0 0.0
    %3450 = vmatprep.subr.mxu0 0.0
    %3451 = vmatpush1.msra.mxu0 0.0
    %3452 = vmatprep.subr.mxu0 0.0
    %3453 = vmatpush1.msra.mxu0 0.0
    %3454 = vmatprep.subr.mxu0 0.0
    %3455 = vmatpush1.msra.mxu0 0.0
    %3456 = vmatprep.subr.mxu0 0.0
    %3457 = vmatpush1.msra.mxu0 0.0
    %3458 = vmatprep.subr.mxu0 0.0
    %3459 = vmatpush1.msra.mxu0 0.0
    %3460 = vmatprep.subr.mxu0 0.0
    %3461 = vmatpush1.msra.mxu0 0.0
    %3462 = vmatprep.subr.mxu0 0.0
    %3463 = vmatpush1.msra.mxu0 0.0
    %3464 = vmatprep.subr.mxu0 0.0
    %3465 = vmatpush1.msra.mxu0 0.0
    %3466 = vmatprep.subr.mxu0 0.0
    %3467 = vmatpush1.msra.mxu0 0.0
    %3468 = vmatprep.subr.mxu0 0.0
    %3469 = vmatpush1.msra.mxu0 0.0
    %3470 = vmatprep.subr.mxu0 0.0
    %3471 = vmatpush1.msra.mxu0 0.0
    %3472 = vmatprep.subr.mxu0 0.0
    %3473 = vmatpush1.msra.mxu0 0.0
    %3474 = vmatprep.subr.mxu0 0.0
    %3475 = vmatpush1.msra.mxu0 0.0
    %3476 = vmatprep.subr.mxu0 0.0
    %3477 = vmatpush1.msra.mxu0 0.0
    %3478 = vmatprep.subr.mxu0 0.0
    %3479 = vmatpush1.msra.mxu0 0.0
    %3480 = vmatprep.subr.mxu0 0.0
    %3481 = vmatpush1.msra.mxu0 0.0
    %3482 = vmatprep.subr.mxu0 0.0
    %3483 = vmatpush1.msra.mxu0 0.0
    %3484 = vmatprep.subr.mxu0 0.0
    %3485 = vmatpush1.msra.mxu0 0.0
    %3486 = vmatprep.mubr.f32.mxu0 0.0
    %3487 = vmatmul.mubr.f32.gmra.mrb[0].mxu0 %v3420
    %v3488 = vpop.f32.mrb[0].mxu0
    %v3489 = vadd.f32 0.0, %v3488
    %v3490 = vpop.f32.mrb[0].mxu0
    %3491 = vdwg.mxu0
    %v3495 = vlaneseq
    %v3496 = vshrl.u32 %v3495, 7
    %v3497 = vsub.s32 %v1249, %v3496
    %v3498 = vrot.slane %v3265, %v3497
    %v3499 = vlaneseq
    %v3500 = vshrl.u32 %v3499, 7
    %v3501 = vsub.s32 %v1249, %v3500
    %v3502 = vrot.slane %v3268, %v3501
    %v3503 = vlaneseq
    %v3504 = vshrl.u32 %v3503, 7
    %v3505 = vsub.s32 %v1249, %v3504
    %v3506 = vrot.slane %v3271, %v3505
    %v3507 = vsel %vm1808, %v3502, %v3498
    %v3508 = vsel %vm1810, %v3506, %v3507
    %v3509 = vsel %vm1851, %v3508, 0
    %3511 = vmatprep.subr.mxu0 0.0
    %3512 = vmatpush1.msra.mxu0 %v3312
    %3513 = vmatprep.subr.mxu0 0.0
    %3514 = vmatpush1.msra.mxu0 0.0
    %3515 = vmatprep.subr.mxu0 0.0
    %3516 = vmatpush1.msra.mxu0 0.0
    %3517 = vmatprep.subr.mxu0 0.0
    %3518 = vmatpush1.msra.mxu0 0.0
    %3519 = vmatprep.subr.mxu0 0.0
    %3520 = vmatpush1.msra.mxu0 0.0
    %3521 = vmatprep.subr.mxu0 0.0
    %3522 = vmatpush1.msra.mxu0 0.0
    %3523 = vmatprep.subr.mxu0 0.0
    %3524 = vmatpush1.msra.mxu0 0.0
    %3525 = vmatprep.subr.mxu0 0.0
    %3526 = vmatpush1.msra.mxu0 0.0
    %3527 = vmatprep.subr.mxu0 0.0
    %3528 = vmatpush1.msra.mxu0 0.0
    %3529 = vmatprep.subr.mxu0 0.0
    %3530 = vmatpush1.msra.mxu0 0.0
    %3531 = vmatprep.subr.mxu0 0.0
    %3532 = vmatpush1.msra.mxu0 0.0
    %3533 = vmatprep.subr.mxu0 0.0
    %3534 = vmatpush1.msra.mxu0 0.0
    %3535 = vmatprep.subr.mxu0 0.0
    %3536 = vmatpush1.msra.mxu0 0.0
    %3537 = vmatprep.subr.mxu0 0.0
    %3538 = vmatpush1.msra.mxu0 0.0
    %3539 = vmatprep.subr.mxu0 0.0
    %3540 = vmatpush1.msra.mxu0 0.0
    %3541 = vmatprep.subr.mxu0 0.0
    %3542 = vmatpush1.msra.mxu0 0.0
    %3543 = vmatprep.subr.mxu0 0.0
    %3544 = vmatpush1.msra.mxu0 0.0
    %3545 = vmatprep.subr.mxu0 0.0
    %3546 = vmatpush1.msra.mxu0 0.0
    %3547 = vmatprep.subr.mxu0 0.0
    %3548 = vmatpush1.msra.mxu0 0.0
    %3549 = vmatprep.subr.mxu0 0.0
    %3550 = vmatpush1.msra.mxu0 0.0
    %3551 = vmatprep.subr.mxu0 0.0
    %3552 = vmatpush1.msra.mxu0 0.0
    %3553 = vmatprep.subr.mxu0 0.0
    %3554 = vmatpush1.msra.mxu0 0.0
    %3555 = vmatprep.subr.mxu0 0.0
    %3556 = vmatpush1.msra.mxu0 0.0
    %3557 = vmatprep.subr.mxu0 0.0
    %3558 = vmatpush1.msra.mxu0 0.0
    %3559 = vmatprep.subr.mxu0 0.0
    %3560 = vmatpush1.msra.mxu0 0.0
    %3561 = vmatprep.subr.mxu0 0.0
    %3562 = vmatpush1.msra.mxu0 0.0
    %3563 = vmatprep.subr.mxu0 0.0
    %3564 = vmatpush1.msra.mxu0 0.0
    %3565 = vmatprep.subr.mxu0 0.0
    %3566 = vmatpush1.msra.mxu0 0.0
    %3567 = vmatprep.subr.mxu0 0.0
    %3568 = vmatpush1.msra.mxu0 0.0
    %3569 = vmatprep.subr.mxu0 0.0
    %3570 = vmatpush1.msra.mxu0 0.0
    %3571 = vmatprep.subr.mxu0 0.0
    %3572 = vmatpush1.msra.mxu0 0.0
    %3573 = vmatprep.subr.mxu0 0.0
    %3574 = vmatpush1.msra.mxu0 0.0
    %3575 = vmatprep.mubr.f32.mxu0 0.0
    %3576 = vmatmul.mubr.f32.gmra.mrb[0].mxu0 %v3509
    %v3577 = vpop.f32.mrb[0].mxu0
    %v3578 = vadd.f32 0.0, %v3577
    %v3579 = vpop.f32.mrb[0].mxu0
    %3580 = vdwg.mxu0
    %v3584 = vlaneseq
    %v3585 = vshrl.u32 %v3584, 7
    %v3586 = vsub.s32 %v1249, %v3585
    %v3587 = vrot.slane %v3274, %v3586
    %v3588 = vlaneseq
    %v3589 = vshrl.u32 %v3588, 7
    %v3590 = vsub.s32 %v1249, %v3589
    %v3591 = vrot.slane %v3277, %v3590
    %v3592 = vlaneseq
    %v3593 = vshrl.u32 %v3592, 7
    %v3594 = vsub.s32 %v1249, %v3593
    %v3595 = vrot.slane %v3280, %v3594
    %v3596 = vsel %vm1808, %v3591, %v3587
    %v3597 = vsel %vm1810, %v3595, %v3596
    %v3598 = vsel %vm1851, %v3597, 0
    %3600 = vmatprep.subr.mxu0 0.0
    %3601 = vmatpush1.msra.mxu0 %v3313
    %3602 = vmatprep.subr.mxu0 0.0
    %3603 = vmatpush1.msra.mxu0 0.0
    %3604 = vmatprep.subr.mxu0 0.0
    %3605 = vmatpush1.msra.mxu0 0.0
    %3606 = vmatprep.subr.mxu0 0.0
    %3607 = vmatpush1.msra.mxu0 0.0
    %3608 = vmatprep.subr.mxu0 0.0
    %3609 = vmatpush1.msra.mxu0 0.0
    %3610 = vmatprep.subr.mxu0 0.0
    %3611 = vmatpush1.msra.mxu0 0.0
    %3612 = vmatprep.subr.mxu0 0.0
    %3613 = vmatpush1.msra.mxu0 0.0
    %3614 = vmatprep.subr.mxu0 0.0
    %3615 = vmatpush1.msra.mxu0 0.0
    %3616 = vmatprep.subr.mxu0 0.0
    %3617 = vmatpush1.msra.mxu0 0.0
    %3618 = vmatprep.subr.mxu0 0.0
    %3619 = vmatpush1.msra.mxu0 0.0
    %3620 = vmatprep.subr.mxu0 0.0
    %3621 = vmatpush1.msra.mxu0 0.0
    %3622 = vmatprep.subr.mxu0 0.0
    %3623 = vmatpush1.msra.mxu0 0.0
    %3624 = vmatprep.subr.mxu0 0.0
    %3625 = vmatpush1.msra.mxu0 0.0
    %3626 = vmatprep.subr.mxu0 0.0
    %3627 = vmatpush1.msra.mxu0 0.0
    %3628 = vmatprep.subr.mxu0 0.0
    %3629 = vmatpush1.msra.mxu0 0.0
    %3630 = vmatprep.subr.mxu0 0.0
    %3631 = vmatpush1.msra.mxu0 0.0
    %3632 = vmatprep.subr.mxu0 0.0
    %3633 = vmatpush1.msra.mxu0 0.0
    %3634 = vmatprep.subr.mxu0 0.0
    %3635 = vmatpush1.msra.mxu0 0.0
    %3636 = vmatprep.subr.mxu0 0.0
    %3637 = vmatpush1.msra.mxu0 0.0
    %3638 = vmatprep.subr.mxu0 0.0
    %3639 = vmatpush1.msra.mxu0 0.0
    %3640 = vmatprep.subr.mxu0 0.0
    %3641 = vmatpush1.msra.mxu0 0.0
    %3642 = vmatprep.subr.mxu0 0.0
    %3643 = vmatpush1.msra.mxu0 0.0
    %3644 = vmatprep.subr.mxu0 0.0
    %3645 = vmatpush1.msra.mxu0 0.0
    %3646 = vmatprep.subr.mxu0 0.0
    %3647 = vmatpush1.msra.mxu0 0.0
    %3648 = vmatprep.subr.mxu0 0.0
    %3649 = vmatpush1.msra.mxu0 0.0
    %3650 = vmatprep.subr.mxu0 0.0
    %3651 = vmatpush1.msra.mxu0 0.0
    %3652 = vmatprep.subr.mxu0 0.0
    %3653 = vmatpush1.msra.mxu0 0.0
    %3654 = vmatprep.subr.mxu0 0.0
    %3655 = vmatpush1.msra.mxu0 0.0
    %3656 = vmatprep.subr.mxu0 0.0
    %3657 = vmatpush1.msra.mxu0 0.0
    %3658 = vmatprep.subr.mxu0 0.0
    %3659 = vmatpush1.msra.mxu0 0.0
    %3660 = vmatprep.subr.mxu0 0.0
    %3661 = vmatpush1.msra.mxu0 0.0
    %3662 = vmatprep.subr.mxu0 0.0
    %3663 = vmatpush1.msra.mxu0 0.0
    %3664 = vmatprep.mubr.f32.mxu0 0.0
    %3665 = vmatmul.mubr.f32.gmra.mrb[0].mxu0 %v3598
    %v3666 = vpop.f32.mrb[0].mxu0
    %v3667 = vadd.f32 0.0, %v3666
    %v3668 = vpop.f32.mrb[0].mxu0
    %3669 = vdwg.mxu0
    %v3670 = vld [vmem:[%s13] sm:$0x7]
    %3672 = vset.pattern.permute.xlu0 0
    %3673 = vperm.xlu0 %3672, %v3670
    %v3674 = vpop.permute.xlu0 %3673
    %v3676 = vmul.f32 %v3674, %v3400
    %v3677 = vmul.f32 %v3674, %v3489
    %v3678 = vmul.f32 %v3674, %v3578
    %v3679 = vmul.f32 %v3674, %v3667
    %vm3680 = vcmask 256000
    %v3681 = vsel %vm3680, %v3676, 0.0
    %v3682 = vrot.slane %v3681, 4
    %v3683 = vadd.f32 %v3681, %v3682
    %v3684 = vrot.slane %v3683, 2
    %v3685 = vadd.f32 %v3683, %v3684
    %v3686 = vrot.slane %v3685, 1
    %v3687 = vadd.f32 %v3685, %v3686
    %v3688 = vsel %vm3680, %v3677, 0.0
    %v3689 = vrot.slane %v3688, 4
    %v3690 = vadd.f32 %v3688, %v3689
    %v3691 = vrot.slane %v3690, 2
    %v3692 = vadd.f32 %v3690, %v3691
    %v3693 = vrot.slane %v3692, 1
    %v3694 = vadd.f32 %v3692, %v3693
    %v3695 = vsel %vm3680, %v3678, 0.0
    %v3696 = vrot.slane %v3695, 4
    %v3697 = vadd.f32 %v3695, %v3696
    %v3698 = vrot.slane %v3697, 2
    %v3699 = vadd.f32 %v3697, %v3698
    %v3700 = vrot.slane %v3699, 1
    %v3701 = vadd.f32 %v3699, %v3700
    %v3702 = vsel %vm3680, %v3679, 0.0
    %v3703 = vrot.slane %v3702, 4
    %v3704 = vadd.f32 %v3702, %v3703
    %v3705 = vrot.slane %v3704, 2
    %v3706 = vadd.f32 %v3704, %v3705
    %v3707 = vrot.slane %v3706, 1
    %v3708 = vadd.f32 %v3706, %v3707
    %v3713 = vsel %vm1808, %v3694, %v3687
    %v3714 = vsel %vm1810, %v3701, %v3713
    %v3715 = vsel %vm1812, %v3708, %v3714
    %vm3717 = vcmask 257024
    %3718 = vst.msk [vmem:[%s20] sm:$0xf] %vm3717, %v3715
    %v3719 = vld [vmem:[%s14] sm:$0xff]
    %v3720 = vld [vmem:[%s15] sm:$0xff]
    %v3721 = vld [vmem:[%s17] sm:$0xff]
    %v3722 = vld [vmem:[%s17 + $0x8] sm:$0x1f]
    %v3723 = vld [vmem:[%s18] sm:$0xff]
    %v3724 = vld [vmem:[%s18 + $0x8] sm:$0x1f]
    %v3726 = vcombine.high %v3719, %v3719
    %v3728 = vunpack.c.l.s4 1966171168
    %v3729 = vunpack.c.0.s8 %v3728
    %v3730 = vlaneseq
    %v3731 = vshrl.u32 %v3730, 7
    %v3732 = vsub.s32 %v3729, %v3731
    %v3733 = vrot.slane %v3719, %v3732
    %v3735 = vunpack.c.l.s4 1966171168
    %v3736 = vunpack.c.0.s8 %v3735
    %v3737 = vlaneseq
    %v3738 = vshrl.u32 %v3737, 7
    %v3739 = vsub.s32 %v3736, %v3738
    %v3740 = vrot.slane %v3726, %v3739
    %v3741 = vcombine.high %v3733, %v3733
    %v3742 = vcombine.high %v3740, %v3740
    %v3744 = vunpack.c.l.s4 1966171168
    %v3745 = vunpack.c.0.s8 %v3744
    %v3746 = vlaneseq
    %v3747 = vshrl.u32 %v3746, 7
    %v3748 = vsub.s32 %v3745, %v3747
    %v3749 = vrot.slane %v3733, %v3748
    %v3751 = vunpack.c.l.s4 1966171168
    %v3752 = vunpack.c.0.s8 %v3751
    %v3753 = vlaneseq
    %v3754 = vshrl.u32 %v3753, 7
    %v3755 = vsub.s32 %v3752, %v3754
    %v3756 = vrot.slane %v3740, %v3755
    %v3758 = vunpack.c.l.s4 1966171168
    %v3759 = vunpack.c.0.s8 %v3758
    %v3760 = vlaneseq
    %v3761 = vshrl.u32 %v3760, 7
    %v3762 = vsub.s32 %v3759, %v3761
    %v3763 = vrot.slane %v3741, %v3762
    %v3765 = vunpack.c.l.s4 1966171168
    %v3766 = vunpack.c.0.s8 %v3765
    %v3767 = vlaneseq
    %v3768 = vshrl.u32 %v3767, 7
    %v3769 = vsub.s32 %v3766, %v3768
    %v3770 = vrot.slane %v3742, %v3769
    %v3771 = vcombine.high %v3749, %v3749
    %v3772 = vcombine.high %v3756, %v3756
    %v3773 = vcombine.high %v3763, %v3763
    %v3774 = vcombine.high %v3770, %v3770
    %v3775 = vlaneseq
    %v3776 = vshrl.u32 %v3775, 7
    %v3777 = vsub.s32 0, %v3776
    %v3778 = vrot.slane %v3749, %v3777
    %v3779 = vlaneseq
    %v3780 = vshrl.u32 %v3779, 7
    %v3781 = vsub.s32 0, %v3780
    %v3782 = vrot.slane %v3763, %v3781
    %v3783 = vlaneseq
    %v3784 = vshrl.u32 %v3783, 7
    %v3785 = vsub.s32 0, %v3784
    %v3786 = vrot.slane %v3771, %v3785
    %v3787 = vlaneseq
    %v3788 = vshrl.u32 %v3787, 7
    %v3789 = vsub.s32 0, %v3788
    %v3790 = vrot.slane %v3773, %v3789
    %v3791 = vlaneseq
    %v3792 = vshrl.u32 %v3791, 7
    %v3793 = vsub.s32 0, %v3792
    %v3794 = vrot.slane %v3756, %v3793
    %v3795 = vlaneseq
    %v3796 = vshrl.u32 %v3795, 7
    %v3797 = vsub.s32 0, %v3796
    %v3798 = vrot.slane %v3770, %v3797
    %v3799 = vlaneseq
    %v3800 = vshrl.u32 %v3799, 7
    %v3801 = vsub.s32 0, %v3800
    %v3802 = vrot.slane %v3772, %v3801
    %v3803 = vlaneseq
    %v3804 = vshrl.u32 %v3803, 7
    %v3805 = vsub.s32 0, %v3804
    %v3806 = vrot.slane %v3774, %v3805
    %v3815 = vmul.f32 %v3778, %v3719
    %v3816 = vmul.f32 %v3782, %v3719
    %v3817 = vmul.f32 %v3786, %v3719
    %v3818 = vmul.f32 %v3790, %v3719
    %v3819 = vmul.f32 %v3794, %v3719
    %v3820 = vmul.f32 %v3798, %v3719
    %v3821 = vmul.f32 %v3802, %v3719
    %v3822 = vmul.f32 %v3806, %v3719
    %v3823 = vld [vmem:[%s16] sm:$0xff]
    %v3824 = vld [vmem:[%s16 + $0x8] sm:$0xff]
    %v3825 = vld [vmem:[%s16 + $0x10] sm:$0xff]
    %v3826 = vld [vmem:[%s16 + $0x18] sm:$0xff]
    %v3827 = vld [vmem:[%s16 + $0x20] sm:$0xff]
    %v3828 = vld [vmem:[%s16 + $0x28] sm:$0xff]
    %v3829 = vld [vmem:[%s16 + $0x30] sm:$0xff]
    %v3830 = vld [vmem:[%s16 + $0x38] sm:$0xff]
    %v3832 = vsel %vm503, %v3823, 0
    %v3835 = vsel %vm503, %v3824, 0
    %v3838 = vsel %vm503, %v3825, 0
    %v3841 = vsel %vm503, %v3826, 0
    %v3844 = vsel %vm503, %v3827, 0
    %v3847 = vsel %vm503, %v3828, 0
    %v3850 = vsel %vm503, %v3829, 0
    %v3853 = vsel %vm503, %v3830, 0
    %v3856 = vsel %vm503, %v3723, 0
    %v3859 = vsel %vm503, %v3724, 0
    %3861 = vmatprep.subr.mxu0 0.0
    %3862 = vmatpush1.xpose.msra.mxu0 %v3856
    %3863 = vmatprep.subr.mxu0 0.0
    %3864 = vmatpush1.xpose.msra.mxu0 %v3859
    %3865 = vmatprep.subr.mxu0 0.0
    %3866 = vmatpush1.xpose.msra.mxu0 0.0
    %3867 = vmatprep.subr.mxu0 0.0
    %3868 = vmatpush1.xpose.msra.mxu0 0.0
    %3869 = vmatprep.subr.mxu0 0.0
    %3870 = vmatpush1.xpose.msra.mxu0 0.0
    %3871 = vmatprep.subr.mxu0 0.0
    %3872 = vmatpush1.xpose.msra.mxu0 0.0
    %3873 = vmatprep.subr.mxu0 0.0
    %3874 = vmatpush1.xpose.msra.mxu0 0.0
    %3875 = vmatprep.subr.mxu0 0.0
    %3876 = vmatpush1.xpose.msra.mxu0 0.0
    %3877 = vmatprep.subr.mxu0 0.0
    %3878 = vmatpush1.xpose.msra.mxu0 0.0
    %3879 = vmatprep.subr.mxu0 0.0
    %3880 = vmatpush1.xpose.msra.mxu0 0.0
    %3881 = vmatprep.subr.mxu0 0.0
    %3882 = vmatpush1.xpose.msra.mxu0 0.0
    %3883 = vmatprep.subr.mxu0 0.0
    %3884 = vmatpush1.xpose.msra.mxu0 0.0
    %3885 = vmatprep.subr.mxu0 0.0
    %3886 = vmatpush1.xpose.msra.mxu0 0.0
    %3887 = vmatprep.subr.mxu0 0.0
    %3888 = vmatpush1.xpose.msra.mxu0 0.0
    %3889 = vmatprep.subr.mxu0 0.0
    %3890 = vmatpush1.xpose.msra.mxu0 0.0
    %3891 = vmatprep.subr.mxu0 0.0
    %3892 = vmatpush1.xpose.msra.mxu0 0.0
    %3893 = vmatprep.subr.mxu0 0.0
    %3894 = vmatpush1.xpose.msra.mxu0 0.0
    %3895 = vmatprep.subr.mxu0 0.0
    %3896 = vmatpush1.xpose.msra.mxu0 0.0
    %3897 = vmatprep.subr.mxu0 0.0
    %3898 = vmatpush1.xpose.msra.mxu0 0.0
    %3899 = vmatprep.subr.mxu0 0.0
    %3900 = vmatpush1.xpose.msra.mxu0 0.0
    %3901 = vmatprep.subr.mxu0 0.0
    %3902 = vmatpush1.xpose.msra.mxu0 0.0
    %3903 = vmatprep.subr.mxu0 0.0
    %3904 = vmatpush1.xpose.msra.mxu0 0.0
    %3905 = vmatprep.subr.mxu0 0.0
    %3906 = vmatpush1.xpose.msra.mxu0 0.0
    %3907 = vmatprep.subr.mxu0 0.0
    %3908 = vmatpush1.xpose.msra.mxu0 0.0
    %3909 = vmatprep.subr.mxu0 0.0
    %3910 = vmatpush1.xpose.msra.mxu0 0.0
    %3911 = vmatprep.subr.mxu0 0.0
    %3912 = vmatpush1.xpose.msra.mxu0 0.0
    %3913 = vmatprep.subr.mxu0 0.0
    %3914 = vmatpush1.xpose.msra.mxu0 0.0
    %3915 = vmatprep.subr.mxu0 0.0
    %3916 = vmatpush1.xpose.msra.mxu0 0.0
    %3917 = vmatprep.subr.mxu0 0.0
    %3918 = vmatpush1.xpose.msra.mxu0 0.0
    %3919 = vmatprep.subr.mxu0 0.0
    %3920 = vmatpush1.xpose.msra.mxu0 0.0
    %3921 = vmatprep.subr.mxu0 0.0
    %3922 = vmatpush1.xpose.msra.mxu0 0.0
    %3923 = vmatprep.subr.mxu0 0.0
    %3924 = vmatpush1.xpose.msra.mxu0 0.0
    %3925 = vmatprep.mubr.f32.mxu0 0.0
    %3926 = vmatmul.mubr.f32.gmra.mrb[0].mxu0 %v3832
    %v3927 = vpop.f32.mrb[0].mxu0
    %v3928 = vadd.f32 0.0, %v3927
    %v3929 = vpop.f32.mrb[0].mxu0
    %3930 = vmatprep.mubr.f32.mxu0 0.0
    %3931 = vmatmul.mubr.f32.gmra.mrb[0].mxu0 %v3835
    %v3932 = vpop.f32.mrb[0].mxu0
    %v3933 = vadd.f32 0.0, %v3932
    %v3934 = vpop.f32.mrb[0].mxu0
    %3935 = vmatprep.mubr.f32.mxu0 0.0
    %3936 = vmatmul.mubr.f32.gmra.mrb[0].mxu0 %v3838
    %v3937 = vpop.f32.mrb[0].mxu0
    %v3938 = vadd.f32 0.0, %v3937
    %v3939 = vpop.f32.mrb[0].mxu0
    %3940 = vmatprep.mubr.f32.mxu0 0.0
    %3941 = vmatmul.mubr.f32.gmra.mrb[0].mxu0 %v3841
    %v3942 = vpop.f32.mrb[0].mxu0
    %v3943 = vadd.f32 0.0, %v3942
    %v3944 = vpop.f32.mrb[0].mxu0
    %3945 = vmatprep.mubr.f32.mxu0 0.0
    %3946 = vmatmul.mubr.f32.gmra.mrb[0].mxu0 %v3844
    %v3947 = vpop.f32.mrb[0].mxu0
    %v3948 = vadd.f32 0.0, %v3947
    %v3949 = vpop.f32.mrb[0].mxu0
    %3950 = vmatprep.mubr.f32.mxu0 0.0
    %3951 = vmatmul.mubr.f32.gmra.mrb[0].mxu0 %v3847
    %v3952 = vpop.f32.mrb[0].mxu0
    %v3953 = vadd.f32 0.0, %v3952
    %v3954 = vpop.f32.mrb[0].mxu0
    %3955 = vmatprep.mubr.f32.mxu0 0.0
    %3956 = vmatmul.mubr.f32.gmra.mrb[0].mxu0 %v3850
    %v3957 = vpop.f32.mrb[0].mxu0
    %v3958 = vadd.f32 0.0, %v3957
    %v3959 = vpop.f32.mrb[0].mxu0
    %3960 = vmatprep.mubr.f32.mxu0 0.0
    %3961 = vmatmul.mubr.f32.gmra.mrb[0].mxu0 %v3853
    %v3962 = vpop.f32.mrb[0].mxu0
    %v3963 = vadd.f32 0.0, %v3962
    %v3964 = vpop.f32.mrb[0].mxu0
    %3965 = vdwg.mxu0
    %v3967 = vsel %vm503, %v3815, 0
    %v3970 = vsel %vm503, %v3816, 0
    %v3973 = vsel %vm503, %v3817, 0
    %v3976 = vsel %vm503, %v3818, 0
    %v3979 = vsel %vm503, %v3819, 0
    %v3982 = vsel %vm503, %v3820, 0
    %v3985 = vsel %vm503, %v3821, 0
    %v3988 = vsel %vm503, %v3822, 0
    %v3991 = vsel %vm503, %v3721, 0
    %v3994 = vsel %vm503, %v3722, 0
    %3996 = vmatprep.subr.mxu0 0.0
    %3997 = vmatpush1.xpose.msra.mxu0 %v3991
    %3998 = vmatprep.subr.mxu0 0.0
    %3999 = vmatpush1.xpose.msra.mxu0 %v3994
    %4000 = vmatprep.subr.mxu0 0.0
    %4001 = vmatpush1.xpose.msra.mxu0 0.0
    %4002 = vmatprep.subr.mxu0 0.0
    %4003 = vmatpush1.xpose.msra.mxu0 0.0
    %4004 = vmatprep.subr.mxu0 0.0
    %4005 = vmatpush1.xpose.msra.mxu0 0.0
    %4006 = vmatprep.subr.mxu0 0.0
    %4007 = vmatpush1.xpose.msra.mxu0 0.0
    %4008 = vmatprep.subr.mxu0 0.0
    %4009 = vmatpush1.xpose.msra.mxu0 0.0
    %4010 = vmatprep.subr.mxu0 0.0
    %4011 = vmatpush1.xpose.msra.mxu0 0.0
    %4012 = vmatprep.subr.mxu0 0.0
    %4013 = vmatpush1.xpose.msra.mxu0 0.0
    %4014 = vmatprep.subr.mxu0 0.0
    %4015 = vmatpush1.xpose.msra.mxu0 0.0
    %4016 = vmatprep.subr.mxu0 0.0
    %4017 = vmatpush1.xpose.msra.mxu0 0.0
    %4018 = vmatprep.subr.mxu0 0.0
    %4019 = vmatpush1.xpose.msra.mxu0 0.0
    %4020 = vmatprep.subr.mxu0 0.0
    %4021 = vmatpush1.xpose.msra.mxu0 0.0
    %4022 = vmatprep.subr.mxu0 0.0
    %4023 = vmatpush1.xpose.msra.mxu0 0.0
    %4024 = vmatprep.subr.mxu0 0.0
    %4025 = vmatpush1.xpose.msra.mxu0 0.0
    %4026 = vmatprep.subr.mxu0 0.0
    %4027 = vmatpush1.xpose.msra.mxu0 0.0
    %4028 = vmatprep.subr.mxu0 0.0
    %4029 = vmatpush1.xpose.msra.mxu0 0.0
    %4030 = vmatprep.subr.mxu0 0.0
    %4031 = vmatpush1.xpose.msra.mxu0 0.0
    %4032 = vmatprep.subr.mxu0 0.0
    %4033 = vmatpush1.xpose.msra.mxu0 0.0
    %4034 = vmatprep.subr.mxu0 0.0
    %4035 = vmatpush1.xpose.msra.mxu0 0.0
    %4036 = vmatprep.subr.mxu0 0.0
    %4037 = vmatpush1.xpose.msra.mxu0 0.0
    %4038 = vmatprep.subr.mxu0 0.0
    %4039 = vmatpush1.xpose.msra.mxu0 0.0
    %4040 = vmatprep.subr.mxu0 0.0
    %4041 = vmatpush1.xpose.msra.mxu0 0.0
    %4042 = vmatprep.subr.mxu0 0.0
    %4043 = vmatpush1.xpose.msra.mxu0 0.0
    %4044 = vmatprep.subr.mxu0 0.0
    %4045 = vmatpush1.xpose.msra.mxu0 0.0
    %4046 = vmatprep.subr.mxu0 0.0
    %4047 = vmatpush1.xpose.msra.mxu0 0.0
    %4048 = vmatprep.subr.mxu0 0.0
    %4049 = vmatpush1.xpose.msra.mxu0 0.0
    %4050 = vmatprep.subr.mxu0 0.0
    %4051 = vmatpush1.xpose.msra.mxu0 0.0
    %4052 = vmatprep.subr.mxu0 0.0
    %4053 = vmatpush1.xpose.msra.mxu0 0.0
    %4054 = vmatprep.subr.mxu0 0.0
    %4055 = vmatpush1.xpose.msra.mxu0 0.0
    %4056 = vmatprep.subr.mxu0 0.0
    %4057 = vmatpush1.xpose.msra.mxu0 0.0
    %4058 = vmatprep.subr.mxu0 0.0
    %4059 = vmatpush1.xpose.msra.mxu0 0.0
    %4060 = vmatprep.mubr.f32.mxu0 0.0
    %4061 = vmatmul.mubr.f32.gmra.mrb[0].mxu0 %v3967
    %v4062 = vpop.f32.mrb[0].mxu0
    %v4063 = vadd.f32 %v3928, %v4062
    %v4064 = vpop.f32.mrb[0].mxu0
    %4065 = vmatprep.mubr.f32.mxu0 0.0
    %4066 = vmatmul.mubr.f32.gmra.mrb[0].mxu0 %v3970
    %v4067 = vpop.f32.mrb[0].mxu0
    %v4068 = vadd.f32 %v3933, %v4067
    %v4069 = vpop.f32.mrb[0].mxu0
    %4070 = vmatprep.mubr.f32.mxu0 0.0
    %4071 = vmatmul.mubr.f32.gmra.mrb[0].mxu0 %v3973
    %v4072 = vpop.f32.mrb[0].mxu0
    %v4073 = vadd.f32 %v3938, %v4072
    %v4074 = vpop.f32.mrb[0].mxu0
    %4075 = vmatprep.mubr.f32.mxu0 0.0
    %4076 = vmatmul.mubr.f32.gmra.mrb[0].mxu0 %v3976
    %v4077 = vpop.f32.mrb[0].mxu0
    %v4078 = vadd.f32 %v3943, %v4077
    %v4079 = vpop.f32.mrb[0].mxu0
    %4080 = vmatprep.mubr.f32.mxu0 0.0
    %4081 = vmatmul.mubr.f32.gmra.mrb[0].mxu0 %v3979
    %v4082 = vpop.f32.mrb[0].mxu0
    %v4083 = vadd.f32 %v3948, %v4082
    %v4084 = vpop.f32.mrb[0].mxu0
    %4085 = vmatprep.mubr.f32.mxu0 0.0
    %4086 = vmatmul.mubr.f32.gmra.mrb[0].mxu0 %v3982
    %v4087 = vpop.f32.mrb[0].mxu0
    %v4088 = vadd.f32 %v3953, %v4087
    %v4089 = vpop.f32.mrb[0].mxu0
    %4090 = vmatprep.mubr.f32.mxu0 0.0
    %4091 = vmatmul.mubr.f32.gmra.mrb[0].mxu0 %v3985
    %v4092 = vpop.f32.mrb[0].mxu0
    %v4093 = vadd.f32 %v3958, %v4092
    %v4094 = vpop.f32.mrb[0].mxu0
    %4095 = vmatprep.mubr.f32.mxu0 0.0
    %4096 = vmatmul.mubr.f32.gmra.mrb[0].mxu0 %v3988
    %v4097 = vpop.f32.mrb[0].mxu0
    %v4098 = vadd.f32 %v3963, %v4097
    %v4099 = vpop.f32.mrb[0].mxu0
    %4100 = vdwg.mxu0
    %vm4101 = vcmp.gt.f32.partialorder %v4063, 0.0
    %vm4102 = vcmp.gt.f32.partialorder %v4068, 0.0
    %vm4103 = vcmp.gt.f32.partialorder %v4073, 0.0
    %vm4104 = vcmp.gt.f32.partialorder %v4078, 0.0
    %vm4105 = vcmp.gt.f32.partialorder %v4083, 0.0
    %vm4106 = vcmp.gt.f32.partialorder %v4088, 0.0
    %vm4107 = vcmp.gt.f32.partialorder %v4093, 0.0
    %vm4108 = vcmp.gt.f32.partialorder %v4098, 0.0
    %v4109 = vmul.f32 %v4063, 0.2
    %v4110 = vmul.f32 %v4068, 0.2
    %v4111 = vmul.f32 %v4073, 0.2
    %v4112 = vmul.f32 %v4078, 0.2
    %v4113 = vmul.f32 %v4083, 0.2
    %v4114 = vmul.f32 %v4088, 0.2
    %v4115 = vmul.f32 %v4093, 0.2
    %v4116 = vmul.f32 %v4098, 0.2
    %v4117 = vsel %vm4101, %v4063, %v4109
    %v4118 = vsel %vm4102, %v4068, %v4110
    %v4119 = vsel %vm4103, %v4073, %v4111
    %v4120 = vsel %vm4104, %v4078, %v4112
    %v4121 = vsel %vm4105, %v4083, %v4113
    %v4122 = vsel %vm4106, %v4088, %v4114
    %v4123 = vsel %vm4107, %v4093, %v4115
    %v4124 = vsel %vm4108, %v4098, %v4116
    %v4125 = vlaneseq
    %v4126 = vshrl.u32 %v4125, 7
    %v4127 = vsub.s32 0, %v4126
    %v4128 = vrot.slane %v3720, %v4127
    %4130 = vbcast.lane.b32.xlu0 %v4128, 256
    %v4131 = vpop.permute.xlu0 %4130
    %v4132 = vlaneseq
    %v4133 = vshrl.u32 %v4132, 7
    %v4134 = vsub.s32 1, %v4133
    %v4135 = vrot.slane %v3720, %v4134
    %4137 = vbcast.lane.b32.xlu0 %v4135, 256
    %v4138 = vpop.permute.xlu0 %4137
    %v4139 = vlaneseq
    %v4140 = vshrl.u32 %v4139, 7
    %v4141 = vsub.s32 2, %v4140
    %v4142 = vrot.slane %v3720, %v4141
    %4144 = vbcast.lane.b32.xlu0 %v4142, 256
    %v4145 = vpop.permute.xlu0 %4144
    %v4146 = vlaneseq
    %v4147 = vshrl.u32 %v4146, 7
    %v4148 = vsub.s32 3, %v4147
    %v4149 = vrot.slane %v3720, %v4148
    %4151 = vbcast.lane.b32.xlu0 %v4149, 256
    %v4152 = vpop.permute.xlu0 %4151
    %v4153 = vlaneseq
    %v4154 = vshrl.u32 %v4153, 7
    %v4155 = vsub.s32 4, %v4154
    %v4156 = vrot.slane %v3720, %v4155
    %4158 = vbcast.lane.b32.xlu0 %v4156, 256
    %v4159 = vpop.permute.xlu0 %4158
    %v4160 = vlaneseq
    %v4161 = vshrl.u32 %v4160, 7
    %v4162 = vsub.s32 5, %v4161
    %v4163 = vrot.slane %v3720, %v4162
    %4165 = vbcast.lane.b32.xlu0 %v4163, 256
    %v4166 = vpop.permute.xlu0 %4165
    %v4167 = vlaneseq
    %v4168 = vshrl.u32 %v4167, 7
    %v4169 = vsub.s32 6, %v4168
    %v4170 = vrot.slane %v3720, %v4169
    %4172 = vbcast.lane.b32.xlu0 %v4170, 256
    %v4173 = vpop.permute.xlu0 %4172
    %v4174 = vlaneseq
    %v4175 = vshrl.u32 %v4174, 7
    %v4176 = vsub.s32 7, %v4175
    %v4177 = vrot.slane %v3720, %v4176
    %4179 = vbcast.lane.b32.xlu0 %v4177, 256
    %v4180 = vpop.permute.xlu0 %4179
    %vm4181 = vcmp.eq.s32.totalorder %v4131, %v1250
    %vm4182 = vcmp.eq.s32.totalorder %v4138, %v1250
    %vm4183 = vcmp.eq.s32.totalorder %v4145, %v1250
    %vm4184 = vcmp.eq.s32.totalorder %v4152, %v1250
    %vm4185 = vcmp.eq.s32.totalorder %v4159, %v1250
    %vm4186 = vcmp.eq.s32.totalorder %v4166, %v1250
    %vm4187 = vcmp.eq.s32.totalorder %v4173, %v1250
    %vm4188 = vcmp.eq.s32.totalorder %v4180, %v1250
    %v4189 = vsel %vm4181, %v4117, 0.0
    %v4190 = vsel %vm4182, %v4118, 0.0
    %v4191 = vsel %vm4183, %v4119, 0.0
    %v4192 = vsel %vm4184, %v4120, 0.0
    %v4193 = vsel %vm4185, %v4121, 0.0
    %v4194 = vsel %vm4186, %v4122, 0.0
    %v4195 = vsel %vm4187, %v4123, 0.0
    %v4196 = vsel %vm4188, %v4124, 0.0
    %vm4197 = vcmask 105472
    %v4198 = vsel %vm4197, %v4189, 0.0
    %4199 = vadd.xlane.f32.xlu0 %v4198
    %v4200 = vpop.xlane.xlu0 %4199
    %v4201 = vsel %vm4197, %v4190, 0.0
    %4202 = vadd.xlane.f32.xlu0 %v4201
    %v4203 = vpop.xlane.xlu0 %4202
    %v4204 = vsel %vm4197, %v4191, 0.0
    %4205 = vadd.xlane.f32.xlu0 %v4204
    %v4206 = vpop.xlane.xlu0 %4205
    %v4207 = vsel %vm4197, %v4192, 0.0
    %4208 = vadd.xlane.f32.xlu0 %v4207
    %v4209 = vpop.xlane.xlu0 %4208
    %v4210 = vsel %vm4197, %v4193, 0.0
    %4211 = vadd.xlane.f32.xlu0 %v4210
    %v4212 = vpop.xlane.xlu0 %4211
    %v4213 = vsel %vm4197, %v4194, 0.0
    %4214 = vadd.xlane.f32.xlu0 %v4213
    %v4215 = vpop.xlane.xlu0 %4214
    %v4216 = vsel %vm4197, %v4195, 0.0
    %4217 = vadd.xlane.f32.xlu0 %v4216
    %v4218 = vpop.xlane.xlu0 %4217
    %v4219 = vsel %vm4197, %v4196, 0.0
    %4220 = vadd.xlane.f32.xlu0 %v4219
    %v4221 = vpop.xlane.xlu0 %4220
    %vm4222 = vcmp.ge.s32.totalorder %v3720, 1
    %vm4223 = vcmp.le.s32.totalorder %v3720, 13
    %vm4224 = vmand %vm4222, %vm4223
    %v4233 = vlaneseq
    %v4234 = vshrl.u32 %v4233, 7
    %v4235 = vsub.s32 %v1249, %v4234
    %v4236 = vrot.slane %v4200, %v4235
    %v4237 = vlaneseq
    %v4238 = vshrl.u32 %v4237, 7
    %v4239 = vsub.s32 %v1249, %v4238
    %v4240 = vrot.slane %v4203, %v4239
    %v4241 = vlaneseq
    %v4242 = vshrl.u32 %v4241, 7
    %v4243 = vsub.s32 %v1249, %v4242
    %v4244 = vrot.slane %v4206, %v4243
    %v4245 = vlaneseq
    %v4246 = vshrl.u32 %v4245, 7
    %v4247 = vsub.s32 %v1249, %v4246
    %v4248 = vrot.slane %v4209, %v4247
    %v4249 = vlaneseq
    %v4250 = vshrl.u32 %v4249, 7
    %v4251 = vsub.s32 %v1249, %v4250
    %v4252 = vrot.slane %v4212, %v4251
    %v4253 = vlaneseq
    %v4254 = vshrl.u32 %v4253, 7
    %v4255 = vsub.s32 %v1249, %v4254
    %v4256 = vrot.slane %v4215, %v4255
    %v4257 = vlaneseq
    %v4258 = vshrl.u32 %v4257, 7
    %v4259 = vsub.s32 %v1249, %v4258
    %v4260 = vrot.slane %v4218, %v4259
    %v4261 = vlaneseq
    %v4262 = vshrl.u32 %v4261, 7
    %v4263 = vsub.s32 %v1249, %v4262
    %v4264 = vrot.slane %v4221, %v4263
    %v4265 = vsel %vm1808, %v4240, %v4236
    %v4266 = vsel %vm1810, %v4244, %v4265
    %v4267 = vsel %vm1812, %v4248, %v4266
    %v4268 = vsel %vm1814, %v4252, %v4267
    %v4269 = vsel %vm1816, %v4256, %v4268
    %v4270 = vsel %vm1818, %v4260, %v4269
    %v4271 = vsel %vm1820, %v4264, %v4270
    %v4273 = vsel %vm4224, %v4271, -9e+15
    %v4274 = vsel %vm1851, %v4273, -inf
    %4275 = vmax.xlane.f32.xlu0 %v4274
    %v4276 = vpop.xlane.xlu0 %4275
    %v4277 = vsub.f32 %v4273, %v4276
    %v4278 = vmul.f32 %v4277, 1.442695
    %v4279 = vpow.pop %v4278
    %v4280 = vsel %vm1851, %v4279, 0.0
    %4281 = vadd.xlane.f32.xlu0 %v4280
    %v4282 = vpop.xlane.xlu0 %4281
    %v4283 = vrcp.pop %v4282
    %v4284 = vmul.f32 %v4279, %v4283
    %v4286 = vsel %vm1851, %v4284, 0
    %4288 = vmatprep.subr.mxu0 0.0
    %4289 = vmatpush1.msra.mxu0 %v3719
    %4290 = vmatprep.subr.mxu0 0.0
    %4291 = vmatpush1.msra.mxu0 0.0
    %4292 = vmatprep.subr.mxu0 0.0
    %4293 = vmatpush1.msra.mxu0 0.0
    %4294 = vmatprep.subr.mxu0 0.0
    %4295 = vmatpush1.msra.mxu0 0.0
    %4296 = vmatprep.subr.mxu0 0.0
    %4297 = vmatpush1.msra.mxu0 0.0
    %4298 = vmatprep.subr.mxu0 0.0
    %4299 = vmatpush1.msra.mxu0 0.0
    %4300 = vmatprep.subr.mxu0 0.0
    %4301 = vmatpush1.msra.mxu0 0.0
    %4302 = vmatprep.subr.mxu0 0.0
    %4303 = vmatpush1.msra.mxu0 0.0
    %4304 = vmatprep.subr.mxu0 0.0
    %4305 = vmatpush1.msra.mxu0 0.0
    %4306 = vmatprep.subr.mxu0 0.0
    %4307 = vmatpush1.msra.mxu0 0.0
    %4308 = vmatprep.subr.mxu0 0.0
    %4309 = vmatpush1.msra.mxu0 0.0
    %4310 = vmatprep.subr.mxu0 0.0
    %4311 = vmatpush1.msra.mxu0 0.0
    %4312 = vmatprep.subr.mxu0 0.0
    %4313 = vmatpush1.msra.mxu0 0.0
    %4314 = vmatprep.subr.mxu0 0.0
    %4315 = vmatpush1.msra.mxu0 0.0
    %4316 = vmatprep.subr.mxu0 0.0
    %4317 = vmatpush1.msra.mxu0 0.0
    %4318 = vmatprep.subr.mxu0 0.0
    %4319 = vmatpush1.msra.mxu0 0.0
    %4320 = vmatprep.subr.mxu0 0.0
    %4321 = vmatpush1.msra.mxu0 0.0
    %4322 = vmatprep.subr.mxu0 0.0
    %4323 = vmatpush1.msra.mxu0 0.0
    %4324 = vmatprep.subr.mxu0 0.0
    %4325 = vmatpush1.msra.mxu0 0.0
    %4326 = vmatprep.subr.mxu0 0.0
    %4327 = vmatpush1.msra.mxu0 0.0
    %4328 = vmatprep.subr.mxu0 0.0
    %4329 = vmatpush1.msra.mxu0 0.0
    %4330 = vmatprep.subr.mxu0 0.0
    %4331 = vmatpush1.msra.mxu0 0.0
    %4332 = vmatprep.subr.mxu0 0.0
    %4333 = vmatpush1.msra.mxu0 0.0
    %4334 = vmatprep.subr.mxu0 0.0
    %4335 = vmatpush1.msra.mxu0 0.0
    %4336 = vmatprep.subr.mxu0 0.0
    %4337 = vmatpush1.msra.mxu0 0.0
    %4338 = vmatprep.subr.mxu0 0.0
    %4339 = vmatpush1.msra.mxu0 0.0
    %4340 = vmatprep.subr.mxu0 0.0
    %4341 = vmatpush1.msra.mxu0 0.0
    %4342 = vmatprep.subr.mxu0 0.0
    %4343 = vmatpush1.msra.mxu0 0.0
    %4344 = vmatprep.subr.mxu0 0.0
    %4345 = vmatpush1.msra.mxu0 0.0
    %4346 = vmatprep.subr.mxu0 0.0
    %4347 = vmatpush1.msra.mxu0 0.0
    %4348 = vmatprep.subr.mxu0 0.0
    %4349 = vmatpush1.msra.mxu0 0.0
    %4350 = vmatprep.subr.mxu0 0.0
    %4351 = vmatpush1.msra.mxu0 0.0
    %4352 = vmatprep.mubr.f32.mxu0 0.0
    %4353 = vmatmul.mubr.f32.gmra.mrb[0].mxu0 %v4286
    %v4354 = vpop.f32.mrb[0].mxu0
    %v4355 = vadd.f32 0.0, %v4354
    %v4356 = vpop.f32.mrb[0].mxu0
    %4357 = vdwg.mxu0
    %4358 = vst.msk [vmem:[%s21] sm:$0xff] %vm503, %v4355
    %v4359 = vld [vmem:[%s19] sm:$0xff]
    %v4360 = vld [vmem:[%s19 + $0x8] sm:$0xff]
    %v4361 = vld [vmem:[%s19 + $0x10] sm:$0xff]
    %v4362 = vld [vmem:[%s19 + $0x18] sm:$0xff]
    %v4363 = vsel %vm503, %v3715, 0
    %4365 = vmatprep.subr.mxu0 0.0
    %4366 = vmatpush1.msra.mxu0 %v4359
    %4367 = vmatprep.subr.mxu0 0.0
    %4368 = vmatpush1.msra.mxu0 %v4360
    %4369 = vmatprep.subr.mxu0 0.0
    %4370 = vmatpush1.msra.mxu0 %v4361
    %4371 = vmatprep.subr.mxu0 0.0
    %4372 = vmatpush1.msra.mxu0 %v4362
    %4373 = vmatprep.subr.mxu0 0.0
    %4374 = vmatpush1.msra.mxu0 0.0
    %4375 = vmatprep.subr.mxu0 0.0
    %4376 = vmatpush1.msra.mxu0 0.0
    %4377 = vmatprep.subr.mxu0 0.0
    %4378 = vmatpush1.msra.mxu0 0.0
    %4379 = vmatprep.subr.mxu0 0.0
    %4380 = vmatpush1.msra.mxu0 0.0
    %4381 = vmatprep.subr.mxu0 0.0
    %4382 = vmatpush1.msra.mxu0 0.0
    %4383 = vmatprep.subr.mxu0 0.0
    %4384 = vmatpush1.msra.mxu0 0.0
    %4385 = vmatprep.subr.mxu0 0.0
    %4386 = vmatpush1.msra.mxu0 0.0
    %4387 = vmatprep.subr.mxu0 0.0
    %4388 = vmatpush1.msra.mxu0 0.0
    %4389 = vmatprep.subr.mxu0 0.0
    %4390 = vmatpush1.msra.mxu0 0.0
    %4391 = vmatprep.subr.mxu0 0.0
    %4392 = vmatpush1.msra.mxu0 0.0
    %4393 = vmatprep.subr.mxu0 0.0
    %4394 = vmatpush1.msra.mxu0 0.0
    %4395 = vmatprep.subr.mxu0 0.0
    %4396 = vmatpush1.msra.mxu0 0.0
    %4397 = vmatprep.subr.mxu0 0.0
    %4398 = vmatpush1.msra.mxu0 0.0
    %4399 = vmatprep.subr.mxu0 0.0
    %4400 = vmatpush1.msra.mxu0 0.0
    %4401 = vmatprep.subr.mxu0 0.0
    %4402 = vmatpush1.msra.mxu0 0.0
    %4403 = vmatprep.subr.mxu0 0.0
    %4404 = vmatpush1.msra.mxu0 0.0
    %4405 = vmatprep.subr.mxu0 0.0
    %4406 = vmatpush1.msra.mxu0 0.0
    %4407 = vmatprep.subr.mxu0 0.0
    %4408 = vmatpush1.msra.mxu0 0.0
    %4409 = vmatprep.subr.mxu0 0.0
    %4410 = vmatpush1.msra.mxu0 0.0
    %4411 = vmatprep.subr.mxu0 0.0
    %4412 = vmatpush1.msra.mxu0 0.0
    %4413 = vmatprep.subr.mxu0 0.0
    %4414 = vmatpush1.msra.mxu0 0.0
    %4415 = vmatprep.subr.mxu0 0.0
    %4416 = vmatpush1.msra.mxu0 0.0
    %4417 = vmatprep.subr.mxu0 0.0
    %4418 = vmatpush1.msra.mxu0 0.0
    %4419 = vmatprep.subr.mxu0 0.0
    %4420 = vmatpush1.msra.mxu0 0.0
    %4421 = vmatprep.subr.mxu0 0.0
    %4422 = vmatpush1.msra.mxu0 0.0
    %4423 = vmatprep.subr.mxu0 0.0
    %4424 = vmatpush1.msra.mxu0 0.0
    %4425 = vmatprep.subr.mxu0 0.0
    %4426 = vmatpush1.msra.mxu0 0.0
    %4427 = vmatprep.subr.mxu0 0.0
    %4428 = vmatpush1.msra.mxu0 0.0
    %4429 = vmatprep.mubr.f32.mxu0 0.0
    %4430 = vmatmul.mubr.f32.gmra.mrb[0].mxu0 %v4363
    %v4431 = vpop.f32.mrb[0].mxu0
    %v4432 = vadd.f32 0.0, %v4431
    %v4433 = vpop.f32.mrb[0].mxu0
    %4434 = vdwg.mxu0
    %4435 = vst [vmem:[#allocation2] sm:$0xf] %v4432
    // Predicated region
    $region82: #{enhsg_forward.1} parent=1 // pred_check
      _
    $region83: #{enhsg_forward.1} parent=1 // pred_check_branch
      %4437 = sbr.rel (0) target = $region85
    $region84: #{enhsg_forward.1} parent=1 // pred_region
      _
    $region85: #{enhsg_forward.1} parent=1 // pred_fallthru
      _
    // Predicated region
    $region86: #{enhsg_forward.1} parent=1 // pred_check
      _
    $region87: #{enhsg_forward.1} parent=1 // pred_check_branch
      %4439 = sbr.rel (0) target = $region89
    $region88: #{enhsg_forward.1} parent=1 // pred_region
      _
    $region89: #{enhsg_forward.1} parent=1 // pred_fallthru
      _
    // Predicated region
    $region90: #{enhsg_forward.1} parent=1 // pred_check
      _
    $region91: #{enhsg_forward.1} parent=1 // pred_check_branch
      %4441 = sbr.rel (0) target = $region93
    $region92: #{enhsg_forward.1} parent=1 // pred_region
      %s4443 = ssub.s32 64, 64
      %4444 = vsyncadd [#allocation3], %s4443
      %s4446 = sshll.u32 [#allocation2], 4
      %s4447 = int_to_ptr.vmem [resolvable:$true] %s4446
      %4449 = dma.vmem_to_hbm [thread:$0]  %s4447, 64, %s22, [#allocation3]
    $region93: #{enhsg_forward.1} parent=1 // pred_fallthru
      _
    // Predicated region
    $region94: #{enhsg_forward.1} parent=1 // pred_check
      _
    $region95: #{enhsg_forward.1} parent=1 // pred_check_branch
      %4451 = sbr.rel (0) target = $region97
    $region96: #{enhsg_forward.1} parent=1 // pred_region
      _
    $region97: #{enhsg_forward.1} parent=1 // pred_fallthru
      _
    // Predicated region
    $region98: #{enhsg_forward.1} parent=1 // pred_check
      _
    $region99: #{enhsg_forward.1} parent=1 // pred_check_branch
      %4453 = sbr.rel (0) target = $region101
    $region100: #{enhsg_forward.1} parent=1 // pred_region
      _
    $region101: #{enhsg_forward.1} parent=1 // pred_fallthru
      _
    // Predicated region
    $region102: #{enhsg_forward.1} parent=1 // pred_check
      _
    $region103: #{enhsg_forward.1} parent=1 // pred_check_branch
      %4455 = sbr.rel (0) target = $region105
    $region104: #{enhsg_forward.1} parent=1 // pred_region
      %4456 = dma.done [#allocation3], 64
    $region105: #{enhsg_forward.1} parent=1 // pred_fallthru
      _
    %4457 = vsyncpa [#allocation3], 1

</llo_original>
